<compile_context>
chip_gen: v7x
topology: tpu7x:2x2x1
jax: 0.10.0
libtpu: 0.0.40
codegen_flags: <defaults>
</compile_context>

<pallas_src>
import math

import jax
import jax.numpy as jnp
from jax import lax
from jax.experimental import pallas as pl
from jax.experimental.pallas import tpu as pltpu

# --- hyperparameters (module-level globals of the PyTorch script) ---
VOCAB_SIZE = 64
EMBED_DIM = 32            # embedding_dimensions
NUM_HEADS = 4             # number_heads
HEAD_SIZE = EMBED_DIM // NUM_HEADS
BLOCK_SIZE = 16           # block_size (causal buffer / YaRN scaling)
MAX_SEQ_LEN = 16          # max_seq_len
YARN_ALPHA = 0.1          # YaRN_alpha
NUM_LAYERS = 2
FF_DIM = 4 * EMBED_DIM
LN_EPS = 1e-5
VOCAB_PAD = 128           # lane-dense embedding K and LM-head output
PROJ_PAD = 3 * 128        # fused projection: [q|k|0][qSW|kSW|0][v|0]


# ----------------------------------------------------------------------------
# Fused Pallas kernel: whole forward pass for one tile of Bt sequences
# ----------------------------------------------------------------------------
def _transformer_kernel(idx_ref, emb_ref, wqkv_ref, wo_ref, w1_ref, w2_ref,
                        wh_ref, vecs_ref, fvecs_ref, cs_ref, amask_ref, o_ref):
    E = EMBED_DIM
    H = NUM_HEADS
    hs = HEAD_SIZE
    bt = o_ref.shape[0]
    T = o_ref.shape[1]
    R = bt * T                       # flattened (batch, token) rows in this tile
    bf16 = jnp.bfloat16

    # ---- embedding lookup: lane-dense one-hot (R,128) x emb (128,E) on MXU ----
    ids = idx_ref[0]                                                   # (R, 1) i32
    onehot = ids == lax.broadcasted_iota(jnp.int32, (R, VOCAB_PAD), 1)
    x = jnp.dot(onehot.astype(bf16), emb_ref[...],
                preferred_element_type=jnp.float32)                    # (R, E) f32

    # ---- constants hoisted out of the layer loop ----
    cs = cs_ref[...]                  # (R, 384) f32: cos at lanes 0:64, sin at 128:192
    amask = amask_ref[...]            # (H*R, R) f32 additive block-causal mask
    scale = HEAD_SIZE ** -0.5

    def layernorm(y, gamma, beta):
        mu = jnp.mean(y, axis=-1, keepdims=True)
        var = jnp.mean((y - mu) ** 2, axis=-1, keepdims=True)
        return (y - mu) * lax.rsqrt(var + LN_EPS) * gamma + beta

    # static unroll over layers (NUM_LAYERS is small and fixed)
    for l in range(NUM_LAYERS):
        vl = vecs_ref[l]                                               # (8, 128) f32
        g1, be1 = vl[0:1, :E], vl[1:2, :E]
        g2, be2 = vl[2:3, :E], vl[3:4, :E]
        bo, b2 = vl[4:5, :E], vl[5:6, :E]
        b1 = vl[6:7, :FF_DIM]
        wo_l = wo_ref[l]                                               # (E, E) f32

        # --- attention sub-block: x + MHA(LN1(x)) ---
        xn = layernorm(x, g1, be1)
        # fused projection -> [q|k|0][q@SW|k@SW|0][v|0], 128-lane-aligned slabs;
        # the RoPE signed pair-swap was folded into the weights on the host.
        a = jnp.dot(xn.astype(bf16), wqkv_ref[l],
                    preferred_element_type=jnp.float32)                # (R, 384)
        rot = (a[:, :2 * E] * cs[:, :2 * E]
               + a[:, 128:128 + 2 * E] * cs[:, 128:128 + 2 * E])       # YaRN RoPE
        q16 = rot[:, :E].astype(bf16)
        k16 = rot[:, E:2 * E].astype(bf16)
        v16 = a[:, 256:256 + E].astype(bf16)

        # per-head scores stacked along sublanes -> (H*R, R); no explicit .T
        s_parts = []
        for h in range(H):
            lo = h * hs
            s_parts.append(lax.dot_general(
                q16[:, lo:lo + hs], k16[:, lo:lo + hs],
                dimension_numbers=(((1,), (1,)), ((), ())),            # 'rd,sd->rs'
                preferred_element_type=jnp.float32))                   # (R, R)
        s = jnp.concatenate(s_parts, axis=0) * scale + amask           # (H*R, R)

        # ONE softmax over the whole head-stacked slab (f32)
        p = jnp.exp(s - jnp.max(s, axis=-1, keepdims=True))
        p = p * pl.reciprocal(jnp.sum(p, axis=-1, keepdims=True), approx=True)
        p16 = p.astype(bf16)

        # PV + output projection summed over heads (no lane-concat of fragments)
        attn = None
        for h in range(H):
            lo = h * hs
            oh = jnp.dot(p16[h * R:(h + 1) * R, :], v16[:, lo:lo + hs],
                         preferred_element_type=jnp.float32)           # (R, hs)
            term = jnp.dot(oh, wo_l[lo:lo + hs, :],
                           preferred_element_type=jnp.float32)         # (R, E)
            attn = term if attn is None else attn + term
        x = x + attn + bo                       # dropout = identity (eval)

        # --- feed-forward sub-block: x + FFN(LN2(x)) ---
        xn2 = layernorm(x, g2, be2)
        h1 = jnp.maximum(
            jnp.dot(xn2.astype(bf16), w1_ref[l],
                    preferred_element_type=jnp.float32) + b1, 0.0)
        ff = jnp.dot(h1.astype(bf16), w2_ref[l],
                     preferred_element_type=jnp.float32) + b2
        x = x + ff                              # dropout = identity (eval)

    # ---- final LayerNorm + LM head (lane-dense 128-wide output) ----
    fv = fvecs_ref[...]
    xnf = layernorm(x, fv[0:1, :E], fv[1:2, :E])
    logits = jnp.dot(xnf.astype(bf16), wh_ref[...],
                     preferred_element_type=jnp.float32) + fv[2:3, :]  # (R, 128)
    for b in range(bt):
        o_ref[b] = logits[b * T:(b + 1) * T, :].astype(o_ref.dtype)


# ----------------------------------------------------------------------------
# pallas_call wrapper
# ----------------------------------------------------------------------------
def _full_spec(shape):
    nd = len(shape)
    return pl.BlockSpec(shape, lambda i, nd=nd: (0,) * nd)


def transformer_forward(idx, params):
    """Fused forward pass; grid=(tiles,) "parallel" — 2 tiles == one per v7x TC."""
    B, T = idx.shape
    num_tiles = 2 if (B % 2 == 0 and B >= 2) else 1
    bt = B // num_tiles
    R = bt * T

    cs = _rope_cs_table(T, bt)                     # (R, 384) f32, lane-aligned
    amask = _attention_bias(T, bt)                 # (H*R, R) f32 additive mask
    idx3 = idx.astype(jnp.int32).reshape(num_tiles, R, 1)

    args = [idx3, params["emb"], params["wqkv"], params["wo"], params["w1"],
            params["w2"], params["wh"], params["vecs"], params["fvecs"],
            cs, amask]

    in_specs = [pl.BlockSpec((1, R, 1), lambda i: (i, 0, 0))]     # per-tile token ids
    in_specs += [_full_spec(a.shape) for a in args[1:]]           # weights: resident

    out = pl.pallas_call(
        _transformer_kernel,
        out_shape=jax.ShapeDtypeStruct((B, T, VOCAB_PAD), jnp.float32),
        grid=(num_tiles,),
        in_specs=in_specs,
        out_specs=pl.BlockSpec((bt, T, VOCAB_PAD), lambda i: (i, 0, 0)),
        compiler_params=pltpu.CompilerParams(
            dimension_semantics=("parallel",)),
    )(*args)
    return out[..., :VOCAB_SIZE]                                  # drop lane padding


# ----------------------------------------------------------------------------
# Host-side glue: RoPE tables, attention mask, parameter init
# ----------------------------------------------------------------------------
def _rope_tables(seq_len):
    i = jnp.arange(0, HEAD_SIZE, 2, dtype=jnp.float32)
    ntk_alpha = seq_len / MAX_SEQ_LEN                      # eval branch of YaRN_RoPE
    inv_freq = 1.0 / (10000.0 ** (i / (HEAD_SIZE * ntk_alpha)))
    pos = jnp.arange(seq_len, dtype=jnp.float32)
    yarn = (1.0 / jnp.sqrt(1.0 + YARN_ALPHA * (pos / BLOCK_SIZE) ** 2))[:, None]
    theta = pos[:, None] * inv_freq[None, :] * yarn        # (T, HEAD_SIZE//2)
    cos = jnp.tile(jnp.repeat(jnp.cos(theta), 2, axis=-1), (1, NUM_HEADS))  # (T, E)
    sin = jnp.tile(jnp.repeat(jnp.sin(theta), 2, axis=-1), (1, NUM_HEADS))
    return cos, sin


def _rope_cs_table(seq_len, bt):
    """(R, 384) table: cos for [q|k] at lanes 0:64, sin at lanes 128:192."""
    cos, sin = _rope_tables(seq_len)
    cos2 = jnp.tile(jnp.concatenate([cos, cos], axis=-1), (bt, 1))   # (R, 2E)
    sin2 = jnp.tile(jnp.concatenate([sin, sin], axis=-1), (bt, 1))
    R = bt * seq_len
    cs = jnp.zeros((R, PROJ_PAD), jnp.float32)
    cs = cs.at[:, :2 * EMBED_DIM].set(cos2)
    cs = cs.at[:, 128:128 + 2 * EMBED_DIM].set(sin2)
    return cs


def _attention_bias(seq_len, bt):
    """(H*R, R) additive mask: 0 where same sequence & causal, else -1e30."""
    R = bt * seq_len
    r = jnp.arange(R)
    c = jnp.arange(R)
    same = (r[:, None] // seq_len) == (c[None, :] // seq_len)
    ok = same & (c[None, :] <= r[:, None])
    bias = jnp.where(ok, 0.0, -1e30).astype(jnp.float32)
    return jnp.tile(bias, (NUM_HEADS, 1))


def _signed_swap_matrix():
    # (x @ SW)[2i] = -x[2i+1], (x @ SW)[2i+1] = x[2i]  (interleaved RoPE pair swap)
    s2 = jnp.array([[0.0, 1.0], [-1.0, 0.0]], dtype=jnp.float32)
    return jnp.kron(jnp.eye(EMBED_DIM // 2, dtype=jnp.float32), s2)   # (E, E)


def init_params(key):
    E = EMBED_DIM

    def linear(k, fan_in, fan_out):
        bound = 1.0 / math.sqrt(fan_in)
        kw, kb = jax.random.split(k)
        w = jax.random.uniform(kw, (fan_in, fan_out), jnp.float32, -bound, bound)
        b = jax.random.uniform(kb, (fan_out,), jnp.float32, -bound, bound)
        return w, b

    keys = jax.random.split(key, NUM_LAYERS + 2)
    emb = jax.random.normal(keys[0], (VOCAB_SIZE, E), jnp.float32)
    emb_pad = jnp.zeros((VOCAB_PAD, E), jnp.float32).at[:VOCAB_SIZE].set(emb)
    sw = _signed_swap_matrix()

    wqkv, wo, w1, w2, vecs = [], [], [], [], []
    for l in range(NUM_LAYERS):
        ks = jax.random.split(keys[1 + l], 6)
        wq, _ = linear(ks[0], E, E)          # q/k/v projections: bias=False
        wk, _ = linear(ks[1], E, E)
        wv, _ = linear(ks[2], E, E)
        wo_l, bo_l = linear(ks[3], E, E)
        w1_l, b1_l = linear(ks[4], E, FF_DIM)
        w2_l, b2_l = linear(ks[5], FF_DIM, E)

        # fused projection as three 128-lane slabs: [q|k|0][q@SW|k@SW|0][v|0]
        slab = jnp.zeros((E, PROJ_PAD), jnp.float32)
        slab = slab.at[:, 0:E].set(wq).at[:, E:2 * E].set(wk)
        slab = slab.at[:, 128:128 + E].set(wq @ sw).at[:, 128 + E:128 + 2 * E].set(wk @ sw)
        slab = slab.at[:, 256:256 + E].set(wv)
        wqkv.append(slab)
        wo.append(wo_l)
        w1.append(w1_l)
        w2.append(w2_l)

        # packed per-layer vectors: rows [g1, be1, g2, be2, bo, b2, b1, unused]
        vrows = jnp.zeros((8, 128), jnp.float32)
        vrows = vrows.at[0, :E].set(1.0)                  # LayerNorm1 gamma
        vrows = vrows.at[2, :E].set(1.0)                  # LayerNorm2 gamma
        vrows = vrows.at[4, :E].set(bo_l)
        vrows = vrows.at[5, :E].set(b2_l)
        vrows = vrows.at[6, :FF_DIM].set(b1_l)
        vecs.append(vrows)

    wh, bh = linear(keys[-1], E, VOCAB_SIZE)
    wh_pad = jnp.zeros((E, VOCAB_PAD), jnp.float32).at[:, :VOCAB_SIZE].set(wh)
    fvecs = jnp.zeros((8, 128), jnp.float32)
    fvecs = fvecs.at[0, :E].set(1.0)                      # final LayerNorm gamma
    fvecs = fvecs.at[2, :VOCAB_SIZE].set(bh)              # LM-head bias (lane-padded)

    bf16 = jnp.bfloat16
    return {
        "emb": emb_pad.astype(bf16),
        "wqkv": jnp.stack(wqkv).astype(bf16),
        "wo": jnp.stack(wo),                 # f32: tiny, keeps per-head slices aligned
        "w1": jnp.stack(w1).astype(bf16),
        "w2": jnp.stack(w2).astype(bf16),
        "wh": wh_pad.astype(bf16),
        "vecs": jnp.stack(vecs),
        "fvecs": fvecs,
    }


# TODO(synk): `generate()` uses torch.multinomial sampling; only the forward
# pass (logits) is implemented here.

if __name__ == "__main__":
    key = jax.random.PRNGKey(0)
    pkey, ikey = jax.random.split(key)
    params = init_params(pkey)

    B, T = 4, 8
    idx = jax.random.randint(ikey, (B, T), 0, VOCAB_SIZE, dtype=jnp.int32)

    logits = jax.jit(transformer_forward)(idx, params)
    jax.block_until_ready(logits)
    assert logits.shape == (B, T, VOCAB_SIZE) and logits.dtype == jnp.float32
    assert bool(jnp.all(jnp.isfinite(logits)))
    print("KERNEL_OK")
</pallas_src>

<mosaic_0001>
module attributes {stable_mosaic.version = 11 : i64} {
  func.func @_transformer_kernel(%arg0: i32, %arg1: memref<1x16x1xi32, #tpu.memory_space<vmem>>, %arg2: memref<128x32xbf16, #tpu.memory_space<vmem>>, %arg3: memref<2x32x384xbf16, #tpu.memory_space<vmem>>, %arg4: memref<2x32x32xf32, #tpu.memory_space<vmem>>, %arg5: memref<2x32x128xbf16, #tpu.memory_space<vmem>>, %arg6: memref<2x128x32xbf16, #tpu.memory_space<vmem>>, %arg7: memref<32x128xbf16, #tpu.memory_space<vmem>>, %arg8: memref<2x8x128xf32, #tpu.memory_space<vmem>>, %arg9: memref<8x128xf32, #tpu.memory_space<vmem>>, %arg10: memref<16x384xf32, #tpu.memory_space<vmem>>, %arg11: memref<64x16xf32, #tpu.memory_space<vmem>>, %arg12: memref<2x8x128xf32, #tpu.memory_space<vmem>>) attributes {dimension_semantics = [#tpu.dimension_semantics<parallel>], iteration_bounds = array<i64: 2>, scalar_prefetch = 0 : i64, scratch_operands = 0 : i64, tpu.core_type = #tpu.core_type<tc>, window_params = [{transform_indices = @transform_0, window_bounds = array<i64: 1, 16, 1>}, {pipeline_mode = #tpu.pipeline_mode<synchronous>, transform_indices = @transform_1, window_bounds = array<i64: 128, 32>}, {pipeline_mode = #tpu.pipeline_mode<synchronous>, transform_indices = @transform_2, window_bounds = array<i64: 2, 32, 384>}, {pipeline_mode = #tpu.pipeline_mode<synchronous>, transform_indices = @transform_3, window_bounds = array<i64: 2, 32, 32>}, {pipeline_mode = #tpu.pipeline_mode<synchronous>, transform_indices = @transform_4, window_bounds = array<i64: 2, 32, 128>}, {pipeline_mode = #tpu.pipeline_mode<synchronous>, transform_indices = @transform_5, window_bounds = array<i64: 2, 128, 32>}, {pipeline_mode = #tpu.pipeline_mode<synchronous>, transform_indices = @transform_6, window_bounds = array<i64: 32, 128>}, {pipeline_mode = #tpu.pipeline_mode<synchronous>, transform_indices = @transform_7, window_bounds = array<i64: 2, 8, 128>}, {pipeline_mode = #tpu.pipeline_mode<synchronous>, transform_indices = @transform_8, window_bounds = array<i64: 8, 128>}, {pipeline_mode = #tpu.pipeline_mode<synchronous>, transform_indices = @transform_9, window_bounds = array<i64: 16, 384>}, {pipeline_mode = #tpu.pipeline_mode<synchronous>, transform_indices = @transform_10, window_bounds = array<i64: 64, 16>}, {transform_indices = @transform_11, window_bounds = array<i64: 2, 8, 128>}]} {
    %c0 = arith.constant 0 : index
    %c0_0 = arith.constant 0 : index
    %c0_1 = arith.constant 0 : index
    %0 = vector.load %arg1[%c0, %c0_0, %c0_1] : memref<1x16x1xi32, #tpu.memory_space<vmem>>, vector<1x16x1xi32>
    %1 = vector.shape_cast %0 : vector<1x16x1xi32> to vector<16x1xi32>
    %2 = tpu.iota {dimensions = array<i32: 1>} : vector<16x128xi32>
    %3 = vector.broadcast %1 : vector<16x1xi32> to vector<16x128xi32>
    %4 = arith.cmpi eq, %3, %2 : vector<16x128xi32>
    %5 = arith.extui %4 : vector<16x128xi1> to vector<16x128xi32>
    %6 = arith.sitofp %5 : vector<16x128xi32> to vector<16x128xf32>
    %7 = arith.truncf %6 : vector<16x128xf32> to vector<16x128xbf16>
    %c0_2 = arith.constant 0 : index
    %c0_3 = arith.constant 0 : index
    %8 = vector.load %arg2[%c0_2, %c0_3] : memref<128x32xbf16, #tpu.memory_space<vmem>>, vector<128x32xbf16>
    %cst = arith.constant dense<0.000000e+00> : vector<16x32xf32>
    %9 = tpu.matmul %7, %8, %cst {dimension_numbers = #tpu.dot_dimension_numbers<[1], [0], [0], [1], [0, 0, 1, 1], [], []>} : vector<16x128xbf16>, vector<128x32xbf16>, vector<16x32xf32> -> vector<16x32xf32>
    %c0_4 = arith.constant 0 : index
    %c0_5 = arith.constant 0 : index
    %10 = vector.load %arg10[%c0_4, %c0_5] : memref<16x384xf32, #tpu.memory_space<vmem>>, vector<16x384xf32>
    %c0_6 = arith.constant 0 : index
    %c0_7 = arith.constant 0 : index
    %11 = vector.load %arg11[%c0_6, %c0_7] : memref<64x16xf32, #tpu.memory_space<vmem>>, vector<64x16xf32>
    %c0_8 = arith.constant 0 : index
    %c0_9 = arith.constant 0 : index
    %c0_10 = arith.constant 0 : index
    %12 = vector.load %arg8[%c0_8, %c0_9, %c0_10] : memref<2x8x128xf32, #tpu.memory_space<vmem>>, vector<1x8x128xf32>
    %13 = vector.shape_cast %12 : vector<1x8x128xf32> to vector<8x128xf32>
    %14 = vector.extract_strided_slice %13 {offsets = [0, 0], sizes = [1, 32], strides = [1, 1]} : vector<8x128xf32> to vector<1x32xf32>
    %15 = vector.extract_strided_slice %13 {offsets = [1, 0], sizes = [1, 32], strides = [1, 1]} : vector<8x128xf32> to vector<1x32xf32>
    %16 = vector.extract_strided_slice %13 {offsets = [2, 0], sizes = [1, 32], strides = [1, 1]} : vector<8x128xf32> to vector<1x32xf32>
    %17 = vector.extract_strided_slice %13 {offsets = [3, 0], sizes = [1, 32], strides = [1, 1]} : vector<8x128xf32> to vector<1x32xf32>
    %18 = vector.extract_strided_slice %13 {offsets = [4, 0], sizes = [1, 32], strides = [1, 1]} : vector<8x128xf32> to vector<1x32xf32>
    %19 = vector.extract_strided_slice %13 {offsets = [5, 0], sizes = [1, 32], strides = [1, 1]} : vector<8x128xf32> to vector<1x32xf32>
    %20 = vector.extract_strided_slice %13 {offsets = [6, 0], sizes = [1, 128], strides = [1, 1]} : vector<8x128xf32> to vector<1x128xf32>
    %c0_11 = arith.constant 0 : index
    %c0_12 = arith.constant 0 : index
    %c0_13 = arith.constant 0 : index
    %21 = vector.load %arg4[%c0_11, %c0_12, %c0_13] : memref<2x32x32xf32, #tpu.memory_space<vmem>>, vector<1x32x32xf32>
    %22 = vector.shape_cast %21 : vector<1x32x32xf32> to vector<32x32xf32>
    %cst_14 = arith.constant dense<0.000000e+00> : vector<16xf32>
    %23 = vector.multi_reduction <add>, %9, %cst_14 [1] : vector<16x32xf32> to vector<16xf32>
    %24 = vector.shape_cast %23 : vector<16xf32> to vector<16x1xf32>
    %cst_15 = arith.constant 3.200000e+01 : f32
    %25 = vector.broadcast %cst_15 : f32 to vector<16x1xf32>
    %26 = arith.divf %24, %25 : vector<16x1xf32>
    %27 = vector.broadcast %26 : vector<16x1xf32> to vector<16x32xf32>
    %28 = arith.subf %9, %27 : vector<16x32xf32>
    %29 = arith.mulf %28, %28 : vector<16x32xf32>
    %cst_16 = arith.constant dense<0.000000e+00> : vector<16xf32>
    %30 = vector.multi_reduction <add>, %29, %cst_16 [1] : vector<16x32xf32> to vector<16xf32>
    %31 = vector.shape_cast %30 : vector<16xf32> to vector<16x1xf32>
    %cst_17 = arith.constant 3.200000e+01 : f32
    %32 = vector.broadcast %cst_17 : f32 to vector<16x1xf32>
    %33 = arith.divf %31, %32 : vector<16x1xf32>
    %34 = vector.broadcast %26 : vector<16x1xf32> to vector<16x32xf32>
    %35 = arith.subf %9, %34 : vector<16x32xf32>
    %cst_18 = arith.constant 9.99999974E-6 : f32
    %36 = vector.broadcast %cst_18 : f32 to vector<16x1xf32>
    %37 = arith.addf %33, %36 : vector<16x1xf32>
    %38 = math.rsqrt %37 : vector<16x1xf32>
    %39 = vector.broadcast %38 : vector<16x1xf32> to vector<16x32xf32>
    %40 = arith.mulf %35, %39 : vector<16x32xf32>
    %41 = vector.broadcast %14 : vector<1x32xf32> to vector<16x32xf32>
    %42 = arith.mulf %40, %41 : vector<16x32xf32>
    %43 = vector.broadcast %15 : vector<1x32xf32> to vector<16x32xf32>
    %44 = arith.addf %42, %43 : vector<16x32xf32>
    %45 = arith.truncf %44 : vector<16x32xf32> to vector<16x32xbf16>
    %c0_19 = arith.constant 0 : index
    %c0_20 = arith.constant 0 : index
    %c0_21 = arith.constant 0 : index
    %46 = vector.load %arg3[%c0_19, %c0_20, %c0_21] : memref<2x32x384xbf16, #tpu.memory_space<vmem>>, vector<1x32x384xbf16>
    %47 = vector.shape_cast %46 : vector<1x32x384xbf16> to vector<32x384xbf16>
    %cst_22 = arith.constant dense<0.000000e+00> : vector<16x384xf32>
    %48 = tpu.matmul %45, %47, %cst_22 {dimension_numbers = #tpu.dot_dimension_numbers<[1], [0], [0], [1], [0, 0, 1, 1], [], []>} : vector<16x32xbf16>, vector<32x384xbf16>, vector<16x384xf32> -> vector<16x384xf32>
    %49 = vector.extract_strided_slice %48 {offsets = [0, 0], sizes = [16, 64], strides = [1, 1]} : vector<16x384xf32> to vector<16x64xf32>
    %50 = vector.extract_strided_slice %10 {offsets = [0, 0], sizes = [16, 64], strides = [1, 1]} : vector<16x384xf32> to vector<16x64xf32>
    %51 = arith.mulf %49, %50 : vector<16x64xf32>
    %52 = vector.extract_strided_slice %48 {offsets = [0, 128], sizes = [16, 64], strides = [1, 1]} : vector<16x384xf32> to vector<16x64xf32>
    %53 = vector.extract_strided_slice %10 {offsets = [0, 128], sizes = [16, 64], strides = [1, 1]} : vector<16x384xf32> to vector<16x64xf32>
    %54 = arith.mulf %52, %53 : vector<16x64xf32>
    %55 = arith.addf %51, %54 : vector<16x64xf32>
    %56 = vector.extract_strided_slice %55 {offsets = [0, 0], sizes = [16, 32], strides = [1, 1]} : vector<16x64xf32> to vector<16x32xf32>
    %57 = arith.truncf %56 : vector<16x32xf32> to vector<16x32xbf16>
    %58 = vector.extract_strided_slice %55 {offsets = [0, 32], sizes = [16, 32], strides = [1, 1]} : vector<16x64xf32> to vector<16x32xf32>
    %59 = arith.truncf %58 : vector<16x32xf32> to vector<16x32xbf16>
    %60 = vector.extract_strided_slice %48 {offsets = [0, 256], sizes = [16, 32], strides = [1, 1]} : vector<16x384xf32> to vector<16x32xf32>
    %61 = arith.truncf %60 : vector<16x32xf32> to vector<16x32xbf16>
    %62 = vector.extract_strided_slice %57 {offsets = [0, 0], sizes = [16, 8], strides = [1, 1]} : vector<16x32xbf16> to vector<16x8xbf16>
    %63 = vector.extract_strided_slice %59 {offsets = [0, 0], sizes = [16, 8], strides = [1, 1]} : vector<16x32xbf16> to vector<16x8xbf16>
    %cst_23 = arith.constant dense<0.000000e+00> : vector<16x16xf32>
    %64 = tpu.matmul %62, %63, %cst_23 {dimension_numbers = #tpu.dot_dimension_numbers<[1], [1], [0], [0], [0, 0, 1, 0], [], []>} : vector<16x8xbf16>, vector<16x8xbf16>, vector<16x16xf32> -> vector<16x16xf32>
    %65 = vector.extract_strided_slice %57 {offsets = [0, 8], sizes = [16, 8], strides = [1, 1]} : vector<16x32xbf16> to vector<16x8xbf16>
    %66 = vector.extract_strided_slice %59 {offsets = [0, 8], sizes = [16, 8], strides = [1, 1]} : vector<16x32xbf16> to vector<16x8xbf16>
    %cst_24 = arith.constant dense<0.000000e+00> : vector<16x16xf32>
    %67 = tpu.matmul %65, %66, %cst_24 {dimension_numbers = #tpu.dot_dimension_numbers<[1], [1], [0], [0], [0, 0, 1, 0], [], []>} : vector<16x8xbf16>, vector<16x8xbf16>, vector<16x16xf32> -> vector<16x16xf32>
    %68 = vector.extract_strided_slice %57 {offsets = [0, 16], sizes = [16, 8], strides = [1, 1]} : vector<16x32xbf16> to vector<16x8xbf16>
    %69 = vector.extract_strided_slice %59 {offsets = [0, 16], sizes = [16, 8], strides = [1, 1]} : vector<16x32xbf16> to vector<16x8xbf16>
    %cst_25 = arith.constant dense<0.000000e+00> : vector<16x16xf32>
    %70 = tpu.matmul %68, %69, %cst_25 {dimension_numbers = #tpu.dot_dimension_numbers<[1], [1], [0], [0], [0, 0, 1, 0], [], []>} : vector<16x8xbf16>, vector<16x8xbf16>, vector<16x16xf32> -> vector<16x16xf32>
    %71 = vector.extract_strided_slice %57 {offsets = [0, 24], sizes = [16, 8], strides = [1, 1]} : vector<16x32xbf16> to vector<16x8xbf16>
    %72 = vector.extract_strided_slice %59 {offsets = [0, 24], sizes = [16, 8], strides = [1, 1]} : vector<16x32xbf16> to vector<16x8xbf16>
    %cst_26 = arith.constant dense<0.000000e+00> : vector<16x16xf32>
    %73 = tpu.matmul %71, %72, %cst_26 {dimension_numbers = #tpu.dot_dimension_numbers<[1], [1], [0], [0], [0, 0, 1, 0], [], []>} : vector<16x8xbf16>, vector<16x8xbf16>, vector<16x16xf32> -> vector<16x16xf32>
    %74 = tpu.concatenate %64, %67, %70, %73 in 0 : vector<16x16xf32>, vector<16x16xf32>, vector<16x16xf32>, vector<16x16xf32> -> vector<64x16xf32>
    %cst_27 = arith.constant 0.353553385 : f32
    %75 = vector.broadcast %cst_27 : f32 to vector<64x16xf32>
    %76 = arith.mulf %74, %75 : vector<64x16xf32>
    %77 = arith.addf %76, %11 : vector<64x16xf32>
    %cst_28 = arith.constant dense<0xFF800000> : vector<64xf32>
    %78 = vector.multi_reduction <maximumf>, %77, %cst_28 [1] : vector<64x16xf32> to vector<64xf32>
    %79 = vector.shape_cast %78 : vector<64xf32> to vector<64x1xf32>
    %80 = vector.broadcast %79 : vector<64x1xf32> to vector<64x16xf32>
    %81 = arith.subf %77, %80 : vector<64x16xf32>
    %82 = math.exp %81 : vector<64x16xf32>
    %cst_29 = arith.constant dense<0.000000e+00> : vector<64xf32>
    %83 = vector.multi_reduction <add>, %82, %cst_29 [1] : vector<64x16xf32> to vector<64xf32>
    %84 = vector.shape_cast %83 : vector<64xf32> to vector<64x1xf32>
    %85 = tpu.reciprocal %84 {approx = true} : vector<64x1xf32> -> vector<64x1xf32>
    %86 = vector.broadcast %85 : vector<64x1xf32> to vector<64x16xf32>
    %87 = arith.mulf %82, %86 : vector<64x16xf32>
    %88 = arith.truncf %87 : vector<64x16xf32> to vector<64x16xbf16>
    %89 = vector.extract_strided_slice %88 {offsets = [0, 0], sizes = [16, 16], strides = [1, 1]} : vector<64x16xbf16> to vector<16x16xbf16>
    %90 = vector.extract_strided_slice %61 {offsets = [0, 0], sizes = [16, 8], strides = [1, 1]} : vector<16x32xbf16> to vector<16x8xbf16>
    %cst_30 = arith.constant dense<0.000000e+00> : vector<16x8xf32>
    %91 = tpu.matmul %89, %90, %cst_30 {dimension_numbers = #tpu.dot_dimension_numbers<[1], [0], [0], [1], [0, 0, 1, 1], [], []>} : vector<16x16xbf16>, vector<16x8xbf16>, vector<16x8xf32> -> vector<16x8xf32>
    %92 = vector.extract_strided_slice %22 {offsets = [0, 0], sizes = [8, 32], strides = [1, 1]} : vector<32x32xf32> to vector<8x32xf32>
    %cst_31 = arith.constant dense<0.000000e+00> : vector<16x32xf32>
    %93 = tpu.matmul %91, %92, %cst_31 {dimension_numbers = #tpu.dot_dimension_numbers<[1], [0], [0], [1], [0, 0, 1, 1], [], []>} : vector<16x8xf32>, vector<8x32xf32>, vector<16x32xf32> -> vector<16x32xf32>
    %94 = vector.extract_strided_slice %88 {offsets = [16, 0], sizes = [16, 16], strides = [1, 1]} : vector<64x16xbf16> to vector<16x16xbf16>
    %95 = vector.extract_strided_slice %61 {offsets = [0, 8], sizes = [16, 8], strides = [1, 1]} : vector<16x32xbf16> to vector<16x8xbf16>
    %cst_32 = arith.constant dense<0.000000e+00> : vector<16x8xf32>
    %96 = tpu.matmul %94, %95, %cst_32 {dimension_numbers = #tpu.dot_dimension_numbers<[1], [0], [0], [1], [0, 0, 1, 1], [], []>} : vector<16x16xbf16>, vector<16x8xbf16>, vector<16x8xf32> -> vector<16x8xf32>
    %97 = vector.extract_strided_slice %22 {offsets = [8, 0], sizes = [8, 32], strides = [1, 1]} : vector<32x32xf32> to vector<8x32xf32>
    %cst_33 = arith.constant dense<0.000000e+00> : vector<16x32xf32>
    %98 = tpu.matmul %96, %97, %cst_33 {dimension_numbers = #tpu.dot_dimension_numbers<[1], [0], [0], [1], [0, 0, 1, 1], [], []>} : vector<16x8xf32>, vector<8x32xf32>, vector<16x32xf32> -> vector<16x32xf32>
    %99 = arith.addf %93, %98 : vector<16x32xf32>
    %100 = vector.extract_strided_slice %88 {offsets = [32, 0], sizes = [16, 16], strides = [1, 1]} : vector<64x16xbf16> to vector<16x16xbf16>
    %101 = vector.extract_strided_slice %61 {offsets = [0, 16], sizes = [16, 8], strides = [1, 1]} : vector<16x32xbf16> to vector<16x8xbf16>
    %cst_34 = arith.constant dense<0.000000e+00> : vector<16x8xf32>
    %102 = tpu.matmul %100, %101, %cst_34 {dimension_numbers = #tpu.dot_dimension_numbers<[1], [0], [0], [1], [0, 0, 1, 1], [], []>} : vector<16x16xbf16>, vector<16x8xbf16>, vector<16x8xf32> -> vector<16x8xf32>
    %103 = vector.extract_strided_slice %22 {offsets = [16, 0], sizes = [8, 32], strides = [1, 1]} : vector<32x32xf32> to vector<8x32xf32>
    %cst_35 = arith.constant dense<0.000000e+00> : vector<16x32xf32>
    %104 = tpu.matmul %102, %103, %cst_35 {dimension_numbers = #tpu.dot_dimension_numbers<[1], [0], [0], [1], [0, 0, 1, 1], [], []>} : vector<16x8xf32>, vector<8x32xf32>, vector<16x32xf32> -> vector<16x32xf32>
    %105 = arith.addf %99, %104 : vector<16x32xf32>
    %106 = vector.extract_strided_slice %88 {offsets = [48, 0], sizes = [16, 16], strides = [1, 1]} : vector<64x16xbf16> to vector<16x16xbf16>
    %107 = vector.extract_strided_slice %61 {offsets = [0, 24], sizes = [16, 8], strides = [1, 1]} : vector<16x32xbf16> to vector<16x8xbf16>
    %cst_36 = arith.constant dense<0.000000e+00> : vector<16x8xf32>
    %108 = tpu.matmul %106, %107, %cst_36 {dimension_numbers = #tpu.dot_dimension_numbers<[1], [0], [0], [1], [0, 0, 1, 1], [], []>} : vector<16x16xbf16>, vector<16x8xbf16>, vector<16x8xf32> -> vector<16x8xf32>
    %109 = vector.extract_strided_slice %22 {offsets = [24, 0], sizes = [8, 32], strides = [1, 1]} : vector<32x32xf32> to vector<8x32xf32>
    %cst_37 = arith.constant dense<0.000000e+00> : vector<16x32xf32>
    %110 = tpu.matmul %108, %109, %cst_37 {dimension_numbers = #tpu.dot_dimension_numbers<[1], [0], [0], [1], [0, 0, 1, 1], [], []>} : vector<16x8xf32>, vector<8x32xf32>, vector<16x32xf32> -> vector<16x32xf32>
    %111 = arith.addf %105, %110 : vector<16x32xf32>
    %112 = arith.addf %9, %111 : vector<16x32xf32>
    %113 = vector.broadcast %18 : vector<1x32xf32> to vector<16x32xf32>
    %114 = arith.addf %112, %113 : vector<16x32xf32>
    %cst_38 = arith.constant dense<0.000000e+00> : vector<16xf32>
    %115 = vector.multi_reduction <add>, %114, %cst_38 [1] : vector<16x32xf32> to vector<16xf32>
    %116 = vector.shape_cast %115 : vector<16xf32> to vector<16x1xf32>
    %cst_39 = arith.constant 3.200000e+01 : f32
    %117 = vector.broadcast %cst_39 : f32 to vector<16x1xf32>
    %118 = arith.divf %116, %117 : vector<16x1xf32>
    %119 = vector.broadcast %118 : vector<16x1xf32> to vector<16x32xf32>
    %120 = arith.subf %114, %119 : vector<16x32xf32>
    %121 = arith.mulf %120, %120 : vector<16x32xf32>
    %cst_40 = arith.constant dense<0.000000e+00> : vector<16xf32>
    %122 = vector.multi_reduction <add>, %121, %cst_40 [1] : vector<16x32xf32> to vector<16xf32>
    %123 = vector.shape_cast %122 : vector<16xf32> to vector<16x1xf32>
    %cst_41 = arith.constant 3.200000e+01 : f32
    %124 = vector.broadcast %cst_41 : f32 to vector<16x1xf32>
    %125 = arith.divf %123, %124 : vector<16x1xf32>
    %126 = vector.broadcast %118 : vector<16x1xf32> to vector<16x32xf32>
    %127 = arith.subf %114, %126 : vector<16x32xf32>
    %cst_42 = arith.constant 9.99999974E-6 : f32
    %128 = vector.broadcast %cst_42 : f32 to vector<16x1xf32>
    %129 = arith.addf %125, %128 : vector<16x1xf32>
    %130 = math.rsqrt %129 : vector<16x1xf32>
    %131 = vector.broadcast %130 : vector<16x1xf32> to vector<16x32xf32>
    %132 = arith.mulf %127, %131 : vector<16x32xf32>
    %133 = vector.broadcast %16 : vector<1x32xf32> to vector<16x32xf32>
    %134 = arith.mulf %132, %133 : vector<16x32xf32>
    %135 = vector.broadcast %17 : vector<1x32xf32> to vector<16x32xf32>
    %136 = arith.addf %134, %135 : vector<16x32xf32>
    %137 = arith.truncf %136 : vector<16x32xf32> to vector<16x32xbf16>
    %c0_43 = arith.constant 0 : index
    %c0_44 = arith.constant 0 : index
    %c0_45 = arith.constant 0 : index
    %138 = vector.load %arg5[%c0_43, %c0_44, %c0_45] : memref<2x32x128xbf16, #tpu.memory_space<vmem>>, vector<1x32x128xbf16>
    %139 = vector.shape_cast %138 : vector<1x32x128xbf16> to vector<32x128xbf16>
    %cst_46 = arith.constant dense<0.000000e+00> : vector<16x128xf32>
    %140 = tpu.matmul %137, %139, %cst_46 {dimension_numbers = #tpu.dot_dimension_numbers<[1], [0], [0], [1], [0, 0, 1, 1], [], []>} : vector<16x32xbf16>, vector<32x128xbf16>, vector<16x128xf32> -> vector<16x128xf32>
    %141 = vector.broadcast %20 : vector<1x128xf32> to vector<16x128xf32>
    %142 = arith.addf %140, %141 : vector<16x128xf32>
    %cst_47 = arith.constant 0.000000e+00 : f32
    %143 = vector.broadcast %cst_47 : f32 to vector<16x128xf32>
    %144 = arith.maximumf %142, %143 : vector<16x128xf32>
    %145 = arith.truncf %144 : vector<16x128xf32> to vector<16x128xbf16>
    %c0_48 = arith.constant 0 : index
    %c0_49 = arith.constant 0 : index
    %c0_50 = arith.constant 0 : index
    %146 = vector.load %arg6[%c0_48, %c0_49, %c0_50] : memref<2x128x32xbf16, #tpu.memory_space<vmem>>, vector<1x128x32xbf16>
    %147 = vector.shape_cast %146 : vector<1x128x32xbf16> to vector<128x32xbf16>
    %cst_51 = arith.constant dense<0.000000e+00> : vector<16x32xf32>
    %148 = tpu.matmul %145, %147, %cst_51 {dimension_numbers = #tpu.dot_dimension_numbers<[1], [0], [0], [1], [0, 0, 1, 1], [], []>} : vector<16x128xbf16>, vector<128x32xbf16>, vector<16x32xf32> -> vector<16x32xf32>
    %149 = vector.broadcast %19 : vector<1x32xf32> to vector<16x32xf32>
    %150 = arith.addf %148, %149 : vector<16x32xf32>
    %151 = arith.addf %114, %150 : vector<16x32xf32>
    %c1 = arith.constant 1 : index
    %c0_52 = arith.constant 0 : index
    %c0_53 = arith.constant 0 : index
    %152 = vector.load %arg8[%c1, %c0_52, %c0_53] : memref<2x8x128xf32, #tpu.memory_space<vmem>>, vector<1x8x128xf32>
    %153 = vector.shape_cast %152 : vector<1x8x128xf32> to vector<8x128xf32>
    %154 = vector.extract_strided_slice %153 {offsets = [0, 0], sizes = [1, 32], strides = [1, 1]} : vector<8x128xf32> to vector<1x32xf32>
    %155 = vector.extract_strided_slice %153 {offsets = [1, 0], sizes = [1, 32], strides = [1, 1]} : vector<8x128xf32> to vector<1x32xf32>
    %156 = vector.extract_strided_slice %153 {offsets = [2, 0], sizes = [1, 32], strides = [1, 1]} : vector<8x128xf32> to vector<1x32xf32>
    %157 = vector.extract_strided_slice %153 {offsets = [3, 0], sizes = [1, 32], strides = [1, 1]} : vector<8x128xf32> to vector<1x32xf32>
    %158 = vector.extract_strided_slice %153 {offsets = [4, 0], sizes = [1, 32], strides = [1, 1]} : vector<8x128xf32> to vector<1x32xf32>
    %159 = vector.extract_strided_slice %153 {offsets = [5, 0], sizes = [1, 32], strides = [1, 1]} : vector<8x128xf32> to vector<1x32xf32>
    %160 = vector.extract_strided_slice %153 {offsets = [6, 0], sizes = [1, 128], strides = [1, 1]} : vector<8x128xf32> to vector<1x128xf32>
    %c1_54 = arith.constant 1 : index
    %c0_55 = arith.constant 0 : index
    %c0_56 = arith.constant 0 : index
    %161 = vector.load %arg4[%c1_54, %c0_55, %c0_56] : memref<2x32x32xf32, #tpu.memory_space<vmem>>, vector<1x32x32xf32>
    %162 = vector.shape_cast %161 : vector<1x32x32xf32> to vector<32x32xf32>
    %cst_57 = arith.constant dense<0.000000e+00> : vector<16xf32>
    %163 = vector.multi_reduction <add>, %151, %cst_57 [1] : vector<16x32xf32> to vector<16xf32>
    %164 = vector.shape_cast %163 : vector<16xf32> to vector<16x1xf32>
    %cst_58 = arith.constant 3.200000e+01 : f32
    %165 = vector.broadcast %cst_58 : f32 to vector<16x1xf32>
    %166 = arith.divf %164, %165 : vector<16x1xf32>
    %167 = vector.broadcast %166 : vector<16x1xf32> to vector<16x32xf32>
    %168 = arith.subf %151, %167 : vector<16x32xf32>
    %169 = arith.mulf %168, %168 : vector<16x32xf32>
    %cst_59 = arith.constant dense<0.000000e+00> : vector<16xf32>
    %170 = vector.multi_reduction <add>, %169, %cst_59 [1] : vector<16x32xf32> to vector<16xf32>
    %171 = vector.shape_cast %170 : vector<16xf32> to vector<16x1xf32>
    %cst_60 = arith.constant 3.200000e+01 : f32
    %172 = vector.broadcast %cst_60 : f32 to vector<16x1xf32>
    %173 = arith.divf %171, %172 : vector<16x1xf32>
    %174 = vector.broadcast %166 : vector<16x1xf32> to vector<16x32xf32>
    %175 = arith.subf %151, %174 : vector<16x32xf32>
    %cst_61 = arith.constant 9.99999974E-6 : f32
    %176 = vector.broadcast %cst_61 : f32 to vector<16x1xf32>
    %177 = arith.addf %173, %176 : vector<16x1xf32>
    %178 = math.rsqrt %177 : vector<16x1xf32>
    %179 = vector.broadcast %178 : vector<16x1xf32> to vector<16x32xf32>
    %180 = arith.mulf %175, %179 : vector<16x32xf32>
    %181 = vector.broadcast %154 : vector<1x32xf32> to vector<16x32xf32>
    %182 = arith.mulf %180, %181 : vector<16x32xf32>
    %183 = vector.broadcast %155 : vector<1x32xf32> to vector<16x32xf32>
    %184 = arith.addf %182, %183 : vector<16x32xf32>
    %185 = arith.truncf %184 : vector<16x32xf32> to vector<16x32xbf16>
    %c1_62 = arith.constant 1 : index
    %c0_63 = arith.constant 0 : index
    %c0_64 = arith.constant 0 : index
    %186 = vector.load %arg3[%c1_62, %c0_63, %c0_64] : memref<2x32x384xbf16, #tpu.memory_space<vmem>>, vector<1x32x384xbf16>
    %187 = vector.shape_cast %186 : vector<1x32x384xbf16> to vector<32x384xbf16>
    %cst_65 = arith.constant dense<0.000000e+00> : vector<16x384xf32>
    %188 = tpu.matmul %185, %187, %cst_65 {dimension_numbers = #tpu.dot_dimension_numbers<[1], [0], [0], [1], [0, 0, 1, 1], [], []>} : vector<16x32xbf16>, vector<32x384xbf16>, vector<16x384xf32> -> vector<16x384xf32>
    %189 = vector.extract_strided_slice %188 {offsets = [0, 0], sizes = [16, 64], strides = [1, 1]} : vector<16x384xf32> to vector<16x64xf32>
    %190 = vector.extract_strided_slice %10 {offsets = [0, 0], sizes = [16, 64], strides = [1, 1]} : vector<16x384xf32> to vector<16x64xf32>
    %191 = arith.mulf %189, %190 : vector<16x64xf32>
    %192 = vector.extract_strided_slice %188 {offsets = [0, 128], sizes = [16, 64], strides = [1, 1]} : vector<16x384xf32> to vector<16x64xf32>
    %193 = vector.extract_strided_slice %10 {offsets = [0, 128], sizes = [16, 64], strides = [1, 1]} : vector<16x384xf32> to vector<16x64xf32>
    %194 = arith.mulf %192, %193 : vector<16x64xf32>
    %195 = arith.addf %191, %194 : vector<16x64xf32>
    %196 = vector.extract_strided_slice %195 {offsets = [0, 0], sizes = [16, 32], strides = [1, 1]} : vector<16x64xf32> to vector<16x32xf32>
    %197 = arith.truncf %196 : vector<16x32xf32> to vector<16x32xbf16>
    %198 = vector.extract_strided_slice %195 {offsets = [0, 32], sizes = [16, 32], strides = [1, 1]} : vector<16x64xf32> to vector<16x32xf32>
    %199 = arith.truncf %198 : vector<16x32xf32> to vector<16x32xbf16>
    %200 = vector.extract_strided_slice %188 {offsets = [0, 256], sizes = [16, 32], strides = [1, 1]} : vector<16x384xf32> to vector<16x32xf32>
    %201 = arith.truncf %200 : vector<16x32xf32> to vector<16x32xbf16>
    %202 = vector.extract_strided_slice %197 {offsets = [0, 0], sizes = [16, 8], strides = [1, 1]} : vector<16x32xbf16> to vector<16x8xbf16>
    %203 = vector.extract_strided_slice %199 {offsets = [0, 0], sizes = [16, 8], strides = [1, 1]} : vector<16x32xbf16> to vector<16x8xbf16>
    %cst_66 = arith.constant dense<0.000000e+00> : vector<16x16xf32>
    %204 = tpu.matmul %202, %203, %cst_66 {dimension_numbers = #tpu.dot_dimension_numbers<[1], [1], [0], [0], [0, 0, 1, 0], [], []>} : vector<16x8xbf16>, vector<16x8xbf16>, vector<16x16xf32> -> vector<16x16xf32>
    %205 = vector.extract_strided_slice %197 {offsets = [0, 8], sizes = [16, 8], strides = [1, 1]} : vector<16x32xbf16> to vector<16x8xbf16>
    %206 = vector.extract_strided_slice %199 {offsets = [0, 8], sizes = [16, 8], strides = [1, 1]} : vector<16x32xbf16> to vector<16x8xbf16>
    %cst_67 = arith.constant dense<0.000000e+00> : vector<16x16xf32>
    %207 = tpu.matmul %205, %206, %cst_67 {dimension_numbers = #tpu.dot_dimension_numbers<[1], [1], [0], [0], [0, 0, 1, 0], [], []>} : vector<16x8xbf16>, vector<16x8xbf16>, vector<16x16xf32> -> vector<16x16xf32>
    %208 = vector.extract_strided_slice %197 {offsets = [0, 16], sizes = [16, 8], strides = [1, 1]} : vector<16x32xbf16> to vector<16x8xbf16>
    %209 = vector.extract_strided_slice %199 {offsets = [0, 16], sizes = [16, 8], strides = [1, 1]} : vector<16x32xbf16> to vector<16x8xbf16>
    %cst_68 = arith.constant dense<0.000000e+00> : vector<16x16xf32>
    %210 = tpu.matmul %208, %209, %cst_68 {dimension_numbers = #tpu.dot_dimension_numbers<[1], [1], [0], [0], [0, 0, 1, 0], [], []>} : vector<16x8xbf16>, vector<16x8xbf16>, vector<16x16xf32> -> vector<16x16xf32>
    %211 = vector.extract_strided_slice %197 {offsets = [0, 24], sizes = [16, 8], strides = [1, 1]} : vector<16x32xbf16> to vector<16x8xbf16>
    %212 = vector.extract_strided_slice %199 {offsets = [0, 24], sizes = [16, 8], strides = [1, 1]} : vector<16x32xbf16> to vector<16x8xbf16>
    %cst_69 = arith.constant dense<0.000000e+00> : vector<16x16xf32>
    %213 = tpu.matmul %211, %212, %cst_69 {dimension_numbers = #tpu.dot_dimension_numbers<[1], [1], [0], [0], [0, 0, 1, 0], [], []>} : vector<16x8xbf16>, vector<16x8xbf16>, vector<16x16xf32> -> vector<16x16xf32>
    %214 = tpu.concatenate %204, %207, %210, %213 in 0 : vector<16x16xf32>, vector<16x16xf32>, vector<16x16xf32>, vector<16x16xf32> -> vector<64x16xf32>
    %cst_70 = arith.constant 0.353553385 : f32
    %215 = vector.broadcast %cst_70 : f32 to vector<64x16xf32>
    %216 = arith.mulf %214, %215 : vector<64x16xf32>
    %217 = arith.addf %216, %11 : vector<64x16xf32>
    %cst_71 = arith.constant dense<0xFF800000> : vector<64xf32>
    %218 = vector.multi_reduction <maximumf>, %217, %cst_71 [1] : vector<64x16xf32> to vector<64xf32>
    %219 = vector.shape_cast %218 : vector<64xf32> to vector<64x1xf32>
    %220 = vector.broadcast %219 : vector<64x1xf32> to vector<64x16xf32>
    %221 = arith.subf %217, %220 : vector<64x16xf32>
    %222 = math.exp %221 : vector<64x16xf32>
    %cst_72 = arith.constant dense<0.000000e+00> : vector<64xf32>
    %223 = vector.multi_reduction <add>, %222, %cst_72 [1] : vector<64x16xf32> to vector<64xf32>
    %224 = vector.shape_cast %223 : vector<64xf32> to vector<64x1xf32>
    %225 = tpu.reciprocal %224 {approx = true} : vector<64x1xf32> -> vector<64x1xf32>
    %226 = vector.broadcast %225 : vector<64x1xf32> to vector<64x16xf32>
    %227 = arith.mulf %222, %226 : vector<64x16xf32>
    %228 = arith.truncf %227 : vector<64x16xf32> to vector<64x16xbf16>
    %229 = vector.extract_strided_slice %228 {offsets = [0, 0], sizes = [16, 16], strides = [1, 1]} : vector<64x16xbf16> to vector<16x16xbf16>
    %230 = vector.extract_strided_slice %201 {offsets = [0, 0], sizes = [16, 8], strides = [1, 1]} : vector<16x32xbf16> to vector<16x8xbf16>
    %cst_73 = arith.constant dense<0.000000e+00> : vector<16x8xf32>
    %231 = tpu.matmul %229, %230, %cst_73 {dimension_numbers = #tpu.dot_dimension_numbers<[1], [0], [0], [1], [0, 0, 1, 1], [], []>} : vector<16x16xbf16>, vector<16x8xbf16>, vector<16x8xf32> -> vector<16x8xf32>
    %232 = vector.extract_strided_slice %162 {offsets = [0, 0], sizes = [8, 32], strides = [1, 1]} : vector<32x32xf32> to vector<8x32xf32>
    %cst_74 = arith.constant dense<0.000000e+00> : vector<16x32xf32>
    %233 = tpu.matmul %231, %232, %cst_74 {dimension_numbers = #tpu.dot_dimension_numbers<[1], [0], [0], [1], [0, 0, 1, 1], [], []>} : vector<16x8xf32>, vector<8x32xf32>, vector<16x32xf32> -> vector<16x32xf32>
    %234 = vector.extract_strided_slice %228 {offsets = [16, 0], sizes = [16, 16], strides = [1, 1]} : vector<64x16xbf16> to vector<16x16xbf16>
    %235 = vector.extract_strided_slice %201 {offsets = [0, 8], sizes = [16, 8], strides = [1, 1]} : vector<16x32xbf16> to vector<16x8xbf16>
    %cst_75 = arith.constant dense<0.000000e+00> : vector<16x8xf32>
    %236 = tpu.matmul %234, %235, %cst_75 {dimension_numbers = #tpu.dot_dimension_numbers<[1], [0], [0], [1], [0, 0, 1, 1], [], []>} : vector<16x16xbf16>, vector<16x8xbf16>, vector<16x8xf32> -> vector<16x8xf32>
    %237 = vector.extract_strided_slice %162 {offsets = [8, 0], sizes = [8, 32], strides = [1, 1]} : vector<32x32xf32> to vector<8x32xf32>
    %cst_76 = arith.constant dense<0.000000e+00> : vector<16x32xf32>
    %238 = tpu.matmul %236, %237, %cst_76 {dimension_numbers = #tpu.dot_dimension_numbers<[1], [0], [0], [1], [0, 0, 1, 1], [], []>} : vector<16x8xf32>, vector<8x32xf32>, vector<16x32xf32> -> vector<16x32xf32>
    %239 = arith.addf %233, %238 : vector<16x32xf32>
    %240 = vector.extract_strided_slice %228 {offsets = [32, 0], sizes = [16, 16], strides = [1, 1]} : vector<64x16xbf16> to vector<16x16xbf16>
    %241 = vector.extract_strided_slice %201 {offsets = [0, 16], sizes = [16, 8], strides = [1, 1]} : vector<16x32xbf16> to vector<16x8xbf16>
    %cst_77 = arith.constant dense<0.000000e+00> : vector<16x8xf32>
    %242 = tpu.matmul %240, %241, %cst_77 {dimension_numbers = #tpu.dot_dimension_numbers<[1], [0], [0], [1], [0, 0, 1, 1], [], []>} : vector<16x16xbf16>, vector<16x8xbf16>, vector<16x8xf32> -> vector<16x8xf32>
    %243 = vector.extract_strided_slice %162 {offsets = [16, 0], sizes = [8, 32], strides = [1, 1]} : vector<32x32xf32> to vector<8x32xf32>
    %cst_78 = arith.constant dense<0.000000e+00> : vector<16x32xf32>
    %244 = tpu.matmul %242, %243, %cst_78 {dimension_numbers = #tpu.dot_dimension_numbers<[1], [0], [0], [1], [0, 0, 1, 1], [], []>} : vector<16x8xf32>, vector<8x32xf32>, vector<16x32xf32> -> vector<16x32xf32>
    %245 = arith.addf %239, %244 : vector<16x32xf32>
    %246 = vector.extract_strided_slice %228 {offsets = [48, 0], sizes = [16, 16], strides = [1, 1]} : vector<64x16xbf16> to vector<16x16xbf16>
    %247 = vector.extract_strided_slice %201 {offsets = [0, 24], sizes = [16, 8], strides = [1, 1]} : vector<16x32xbf16> to vector<16x8xbf16>
    %cst_79 = arith.constant dense<0.000000e+00> : vector<16x8xf32>
    %248 = tpu.matmul %246, %247, %cst_79 {dimension_numbers = #tpu.dot_dimension_numbers<[1], [0], [0], [1], [0, 0, 1, 1], [], []>} : vector<16x16xbf16>, vector<16x8xbf16>, vector<16x8xf32> -> vector<16x8xf32>
    %249 = vector.extract_strided_slice %162 {offsets = [24, 0], sizes = [8, 32], strides = [1, 1]} : vector<32x32xf32> to vector<8x32xf32>
    %cst_80 = arith.constant dense<0.000000e+00> : vector<16x32xf32>
    %250 = tpu.matmul %248, %249, %cst_80 {dimension_numbers = #tpu.dot_dimension_numbers<[1], [0], [0], [1], [0, 0, 1, 1], [], []>} : vector<16x8xf32>, vector<8x32xf32>, vector<16x32xf32> -> vector<16x32xf32>
    %251 = arith.addf %245, %250 : vector<16x32xf32>
    %252 = arith.addf %151, %251 : vector<16x32xf32>
    %253 = vector.broadcast %158 : vector<1x32xf32> to vector<16x32xf32>
    %254 = arith.addf %252, %253 : vector<16x32xf32>
    %cst_81 = arith.constant dense<0.000000e+00> : vector<16xf32>
    %255 = vector.multi_reduction <add>, %254, %cst_81 [1] : vector<16x32xf32> to vector<16xf32>
    %256 = vector.shape_cast %255 : vector<16xf32> to vector<16x1xf32>
    %cst_82 = arith.constant 3.200000e+01 : f32
    %257 = vector.broadcast %cst_82 : f32 to vector<16x1xf32>
    %258 = arith.divf %256, %257 : vector<16x1xf32>
    %259 = vector.broadcast %258 : vector<16x1xf32> to vector<16x32xf32>
    %260 = arith.subf %254, %259 : vector<16x32xf32>
    %261 = arith.mulf %260, %260 : vector<16x32xf32>
    %cst_83 = arith.constant dense<0.000000e+00> : vector<16xf32>
    %262 = vector.multi_reduction <add>, %261, %cst_83 [1] : vector<16x32xf32> to vector<16xf32>
    %263 = vector.shape_cast %262 : vector<16xf32> to vector<16x1xf32>
    %cst_84 = arith.constant 3.200000e+01 : f32
    %264 = vector.broadcast %cst_84 : f32 to vector<16x1xf32>
    %265 = arith.divf %263, %264 : vector<16x1xf32>
    %266 = vector.broadcast %258 : vector<16x1xf32> to vector<16x32xf32>
    %267 = arith.subf %254, %266 : vector<16x32xf32>
    %cst_85 = arith.constant 9.99999974E-6 : f32
    %268 = vector.broadcast %cst_85 : f32 to vector<16x1xf32>
    %269 = arith.addf %265, %268 : vector<16x1xf32>
    %270 = math.rsqrt %269 : vector<16x1xf32>
    %271 = vector.broadcast %270 : vector<16x1xf32> to vector<16x32xf32>
    %272 = arith.mulf %267, %271 : vector<16x32xf32>
    %273 = vector.broadcast %156 : vector<1x32xf32> to vector<16x32xf32>
    %274 = arith.mulf %272, %273 : vector<16x32xf32>
    %275 = vector.broadcast %157 : vector<1x32xf32> to vector<16x32xf32>
    %276 = arith.addf %274, %275 : vector<16x32xf32>
    %277 = arith.truncf %276 : vector<16x32xf32> to vector<16x32xbf16>
    %c1_86 = arith.constant 1 : index
    %c0_87 = arith.constant 0 : index
    %c0_88 = arith.constant 0 : index
    %278 = vector.load %arg5[%c1_86, %c0_87, %c0_88] : memref<2x32x128xbf16, #tpu.memory_space<vmem>>, vector<1x32x128xbf16>
    %279 = vector.shape_cast %278 : vector<1x32x128xbf16> to vector<32x128xbf16>
    %cst_89 = arith.constant dense<0.000000e+00> : vector<16x128xf32>
    %280 = tpu.matmul %277, %279, %cst_89 {dimension_numbers = #tpu.dot_dimension_numbers<[1], [0], [0], [1], [0, 0, 1, 1], [], []>} : vector<16x32xbf16>, vector<32x128xbf16>, vector<16x128xf32> -> vector<16x128xf32>
    %281 = vector.broadcast %160 : vector<1x128xf32> to vector<16x128xf32>
    %282 = arith.addf %280, %281 : vector<16x128xf32>
    %cst_90 = arith.constant 0.000000e+00 : f32
    %283 = vector.broadcast %cst_90 : f32 to vector<16x128xf32>
    %284 = arith.maximumf %282, %283 : vector<16x128xf32>
    %285 = arith.truncf %284 : vector<16x128xf32> to vector<16x128xbf16>
    %c1_91 = arith.constant 1 : index
    %c0_92 = arith.constant 0 : index
    %c0_93 = arith.constant 0 : index
    %286 = vector.load %arg6[%c1_91, %c0_92, %c0_93] : memref<2x128x32xbf16, #tpu.memory_space<vmem>>, vector<1x128x32xbf16>
    %287 = vector.shape_cast %286 : vector<1x128x32xbf16> to vector<128x32xbf16>
    %cst_94 = arith.constant dense<0.000000e+00> : vector<16x32xf32>
    %288 = tpu.matmul %285, %287, %cst_94 {dimension_numbers = #tpu.dot_dimension_numbers<[1], [0], [0], [1], [0, 0, 1, 1], [], []>} : vector<16x128xbf16>, vector<128x32xbf16>, vector<16x32xf32> -> vector<16x32xf32>
    %289 = vector.broadcast %159 : vector<1x32xf32> to vector<16x32xf32>
    %290 = arith.addf %288, %289 : vector<16x32xf32>
    %291 = arith.addf %254, %290 : vector<16x32xf32>
    %c0_95 = arith.constant 0 : index
    %c0_96 = arith.constant 0 : index
    %292 = vector.load %arg9[%c0_95, %c0_96] : memref<8x128xf32, #tpu.memory_space<vmem>>, vector<8x128xf32>
    %293 = vector.extract_strided_slice %292 {offsets = [0, 0], sizes = [1, 32], strides = [1, 1]} : vector<8x128xf32> to vector<1x32xf32>
    %294 = vector.extract_strided_slice %292 {offsets = [1, 0], sizes = [1, 32], strides = [1, 1]} : vector<8x128xf32> to vector<1x32xf32>
    %cst_97 = arith.constant dense<0.000000e+00> : vector<16xf32>
    %295 = vector.multi_reduction <add>, %291, %cst_97 [1] : vector<16x32xf32> to vector<16xf32>
    %296 = vector.shape_cast %295 : vector<16xf32> to vector<16x1xf32>
    %cst_98 = arith.constant 3.200000e+01 : f32
    %297 = vector.broadcast %cst_98 : f32 to vector<16x1xf32>
    %298 = arith.divf %296, %297 : vector<16x1xf32>
    %299 = vector.broadcast %298 : vector<16x1xf32> to vector<16x32xf32>
    %300 = arith.subf %291, %299 : vector<16x32xf32>
    %301 = arith.mulf %300, %300 : vector<16x32xf32>
    %cst_99 = arith.constant dense<0.000000e+00> : vector<16xf32>
    %302 = vector.multi_reduction <add>, %301, %cst_99 [1] : vector<16x32xf32> to vector<16xf32>
    %303 = vector.shape_cast %302 : vector<16xf32> to vector<16x1xf32>
    %cst_100 = arith.constant 3.200000e+01 : f32
    %304 = vector.broadcast %cst_100 : f32 to vector<16x1xf32>
    %305 = arith.divf %303, %304 : vector<16x1xf32>
    %306 = vector.broadcast %298 : vector<16x1xf32> to vector<16x32xf32>
    %307 = arith.subf %291, %306 : vector<16x32xf32>
    %cst_101 = arith.constant 9.99999974E-6 : f32
    %308 = vector.broadcast %cst_101 : f32 to vector<16x1xf32>
    %309 = arith.addf %305, %308 : vector<16x1xf32>
    %310 = math.rsqrt %309 : vector<16x1xf32>
    %311 = vector.broadcast %310 : vector<16x1xf32> to vector<16x32xf32>
    %312 = arith.mulf %307, %311 : vector<16x32xf32>
    %313 = vector.broadcast %293 : vector<1x32xf32> to vector<16x32xf32>
    %314 = arith.mulf %312, %313 : vector<16x32xf32>
    %315 = vector.broadcast %294 : vector<1x32xf32> to vector<16x32xf32>
    %316 = arith.addf %314, %315 : vector<16x32xf32>
    %317 = arith.truncf %316 : vector<16x32xf32> to vector<16x32xbf16>
    %c0_102 = arith.constant 0 : index
    %c0_103 = arith.constant 0 : index
    %318 = vector.load %arg7[%c0_102, %c0_103] : memref<32x128xbf16, #tpu.memory_space<vmem>>, vector<32x128xbf16>
    %cst_104 = arith.constant dense<0.000000e+00> : vector<16x128xf32>
    %319 = tpu.matmul %317, %318, %cst_104 {dimension_numbers = #tpu.dot_dimension_numbers<[1], [0], [0], [1], [0, 0, 1, 1], [], []>} : vector<16x32xbf16>, vector<32x128xbf16>, vector<16x128xf32> -> vector<16x128xf32>
    %320 = vector.extract_strided_slice %292 {offsets = [2, 0], sizes = [1, 128], strides = [1, 1]} : vector<8x128xf32> to vector<1x128xf32>
    %321 = vector.broadcast %320 : vector<1x128xf32> to vector<16x128xf32>
    %322 = arith.addf %319, %321 : vector<16x128xf32>
    %323 = vector.extract_strided_slice %322 {offsets = [0, 0], sizes = [8, 128], strides = [1, 1]} : vector<16x128xf32> to vector<8x128xf32>
    %c0_105 = arith.constant 0 : index
    %c0_106 = arith.constant 0 : index
    %c0_107 = arith.constant 0 : index
    %324 = vector.load %arg12[%c0_105, %c0_106, %c0_107] : memref<2x8x128xf32, #tpu.memory_space<vmem>>, vector<1x8x128xf32>
    %325 = vector.shape_cast %324 : vector<1x8x128xf32> to vector<8x128xf32>
    %326 = vector.shape_cast %323 : vector<8x128xf32> to vector<1x8x128xf32>
    tpu.vector_store %arg12[%c0_105, %c0_106, %c0_107], %326 {strides = array<i32>} : memref<2x8x128xf32, #tpu.memory_space<vmem>>, vector<1x8x128xf32>,
    %327 = vector.extract_strided_slice %322 {offsets = [8, 0], sizes = [8, 128], strides = [1, 1]} : vector<16x128xf32> to vector<8x128xf32>
    %c1_108 = arith.constant 1 : index
    %c0_109 = arith.constant 0 : index
    %c0_110 = arith.constant 0 : index
    %328 = vector.load %arg12[%c1_108, %c0_109, %c0_110] : memref<2x8x128xf32, #tpu.memory_space<vmem>>, vector<1x8x128xf32>
    %329 = vector.shape_cast %328 : vector<1x8x128xf32> to vector<8x128xf32>
    %330 = vector.shape_cast %327 : vector<8x128xf32> to vector<1x8x128xf32>
    tpu.vector_store %arg12[%c1_108, %c0_109, %c0_110], %330 {strides = array<i32>} : memref<2x8x128xf32, #tpu.memory_space<vmem>>, vector<1x8x128xf32>,
    return
  }
  func.func @transform_0(%arg0: i32) -> (i32, i32, i32) {
    %c0_i32 = arith.constant 0 : i32
    %c0_i32_0 = arith.constant 0 : i32
    %c0_i32_1 = arith.constant 0 : i32
    return %arg0, %c0_i32, %c0_i32_0 : i32, i32, i32
  }
  func.func @transform_1(%arg0: i32) -> (i32, i32) {
    %c0_i32 = arith.constant 0 : i32
    %c0_i32_0 = arith.constant 0 : i32
    %c0_i32_1 = arith.constant 0 : i32
    return %c0_i32, %c0_i32_0 : i32, i32
  }
  func.func @transform_2(%arg0: i32) -> (i32, i32, i32) {
    %c0_i32 = arith.constant 0 : i32
    %c0_i32_0 = arith.constant 0 : i32
    %c0_i32_1 = arith.constant 0 : i32
    %c0_i32_2 = arith.constant 0 : i32
    return %c0_i32, %c0_i32_0, %c0_i32_1 : i32, i32, i32
  }
  func.func @transform_3(%arg0: i32) -> (i32, i32, i32) {
    %c0_i32 = arith.constant 0 : i32
    %c0_i32_0 = arith.constant 0 : i32
    %c0_i32_1 = arith.constant 0 : i32
    %c0_i32_2 = arith.constant 0 : i32
    return %c0_i32, %c0_i32_0, %c0_i32_1 : i32, i32, i32
  }
  func.func @transform_4(%arg0: i32) -> (i32, i32, i32) {
    %c0_i32 = arith.constant 0 : i32
    %c0_i32_0 = arith.constant 0 : i32
    %c0_i32_1 = arith.constant 0 : i32
    %c0_i32_2 = arith.constant 0 : i32
    return %c0_i32, %c0_i32_0, %c0_i32_1 : i32, i32, i32
  }
  func.func @transform_5(%arg0: i32) -> (i32, i32, i32) {
    %c0_i32 = arith.constant 0 : i32
    %c0_i32_0 = arith.constant 0 : i32
    %c0_i32_1 = arith.constant 0 : i32
    %c0_i32_2 = arith.constant 0 : i32
    return %c0_i32, %c0_i32_0, %c0_i32_1 : i32, i32, i32
  }
  func.func @transform_6(%arg0: i32) -> (i32, i32) {
    %c0_i32 = arith.constant 0 : i32
    %c0_i32_0 = arith.constant 0 : i32
    %c0_i32_1 = arith.constant 0 : i32
    return %c0_i32, %c0_i32_0 : i32, i32
  }
  func.func @transform_7(%arg0: i32) -> (i32, i32, i32) {
    %c0_i32 = arith.constant 0 : i32
    %c0_i32_0 = arith.constant 0 : i32
    %c0_i32_1 = arith.constant 0 : i32
    %c0_i32_2 = arith.constant 0 : i32
    return %c0_i32, %c0_i32_0, %c0_i32_1 : i32, i32, i32
  }
  func.func @transform_8(%arg0: i32) -> (i32, i32) {
    %c0_i32 = arith.constant 0 : i32
    %c0_i32_0 = arith.constant 0 : i32
    %c0_i32_1 = arith.constant 0 : i32
    return %c0_i32, %c0_i32_0 : i32, i32
  }
  func.func @transform_9(%arg0: i32) -> (i32, i32) {
    %c0_i32 = arith.constant 0 : i32
    %c0_i32_0 = arith.constant 0 : i32
    %c0_i32_1 = arith.constant 0 : i32
    return %c0_i32, %c0_i32_0 : i32, i32
  }
  func.func @transform_10(%arg0: i32) -> (i32, i32) {
    %c0_i32 = arith.constant 0 : i32
    %c0_i32_0 = arith.constant 0 : i32
    %c0_i32_1 = arith.constant 0 : i32
    return %c0_i32, %c0_i32_0 : i32, i32
  }
  func.func @transform_11(%arg0: i32) -> (i32, i32, i32) {
    %c0_i32 = arith.constant 0 : i32
    %c0_i32_0 = arith.constant 0 : i32
    %c0_i32_1 = arith.constant 0 : i32
    return %arg0, %c0_i32, %c0_i32_0 : i32, i32, i32
  }
}

</mosaic_0001>

<llo_original>
// kernel: tile.26
$region0: #{tile.26}
  %s0 = inlined_call_operand.vmem [shape: f32[8,4,8], index: 0, kind: input, shape index: {}]
  %s1 = inlined_call_operand.vmem [shape: f32[8,32], index: 1, kind: output, shape index: {}]
  $region1: #{tile.26} parent=0
    #allocation0 [shape = 'u8[32768]{0}', space=vmem, size = 0x8000, scoped, tag = 'scoped mem for input reshape']
    %s3 = sshllo.u32 0, 4
    %s4 = smul.addr 4, 7
    %s5 = scalar_lea.vmem %s0, %s4
    %v6 = vld [vmem:[%s5] sm:%s3]
    %s7 = scalar_lea.vmem [#allocation0], 56
    %8 = vst [vmem:[%s7] sm:%s3] %v6
    %s9 = smul.addr 4, 6
    %s10 = scalar_lea.vmem %s0, %s9
    %v11 = vld [vmem:[%s10] sm:%s3]
    %s12 = scalar_lea.vmem [#allocation0], 48
    %13 = vst [vmem:[%s12] sm:%s3] %v11
    %s14 = smul.addr 4, 5
    %s15 = scalar_lea.vmem %s0, %s14
    %v16 = vld [vmem:[%s15] sm:%s3]
    %s17 = scalar_lea.vmem [#allocation0], 40
    %18 = vst [vmem:[%s17] sm:%s3] %v16
    %s19 = smul.addr 4, 4
    %s20 = scalar_lea.vmem %s0, %s19
    %v21 = vld [vmem:[%s20] sm:%s3]
    %s22 = scalar_lea.vmem [#allocation0], 32
    %23 = vst [vmem:[%s22] sm:%s3] %v21
    %s24 = smul.addr 4, 3
    %s25 = scalar_lea.vmem %s0, %s24
    %v26 = vld [vmem:[%s25] sm:%s3]
    %s27 = scalar_lea.vmem [#allocation0], 24
    %28 = vst [vmem:[%s27] sm:%s3] %v26
    %s29 = smul.addr 4, 2
    %s30 = scalar_lea.vmem %s0, %s29
    %v31 = vld [vmem:[%s30] sm:%s3]
    %s32 = scalar_lea.vmem [#allocation0], 16
    %33 = vst [vmem:[%s32] sm:%s3] %v31
    %s34 = scalar_lea.vmem %s0, 4
    %v35 = vld [vmem:[%s34] sm:%s3]
    %s36 = scalar_lea.vmem [#allocation0], 8
    %37 = vst [vmem:[%s36] sm:%s3] %v35
    %v38 = vld [vmem:[%s0] sm:%s3]
    %39 = vst [vmem:[#allocation0] sm:%s3] %v38
    %v40 = vld [vmem:[#allocation0] ss:$8 sm:$0xf]
    %v41 = vld [vmem:[#allocation0] ss:$8 sm:$0xf0]
    %vm42 = vcmask 1047556
    %v43 = vsel %vm42, %v41, %v40
    %vm44 = vcmask 64512
    %45 = vst.msk [vmem:[%s1] sm:$0xff] %vm44, %v43
    %s46 = scalar_lea.vmem [#allocation0], 3
    %v47 = vld [vmem:[%s46] ss:$8 sm:$0xf]
    %s48 = scalar_lea.vmem [#allocation0], 3
    %v49 = vld [vmem:[%s48] ss:$8 sm:$0xf0]
    %vm50 = vcmask 1047556
    %v51 = vsel %vm50, %v49, %v47
    %52 = vrot.lane.b32.xlu0 %v51, 24
    %v53 = vpop.permute.xlu0 %52
    %vm54 = vcmask 261312
    %55 = vst.msk [vmem:[%s1] sm:$0xff] %vm54, %v53
    %s56 = scalar_lea.vmem [#allocation0], 2
    %v57 = vld [vmem:[%s56] ss:$8 sm:$0xf]
    %s58 = scalar_lea.vmem [#allocation0], 2
    %v59 = vld [vmem:[%s58] ss:$8 sm:$0xf0]
    %vm60 = vcmask 1047556
    %v61 = vsel %vm60, %v59, %v57
    %62 = vrot.lane.b32.xlu0 %v61, 16
    %v63 = vpop.permute.xlu0 %62
    %vm64 = vcmask 195712
    %65 = vst.msk [vmem:[%s1] sm:$0xff] %vm64, %v63
    %s66 = scalar_lea.vmem [#allocation0], 1
    %v67 = vld [vmem:[%s66] ss:$8 sm:$0xf]
    %s68 = scalar_lea.vmem [#allocation0], 1
    %v69 = vld [vmem:[%s68] ss:$8 sm:$0xf0]
    %vm70 = vcmask 1047556
    %v71 = vsel %vm70, %v69, %v67
    %72 = vrot.lane.b32.xlu0 %v71, 8
    %v73 = vpop.permute.xlu0 %72
    %vm74 = vcmask 130112
    %75 = vst.msk [vmem:[%s1] sm:$0xff] %vm74, %v73

// kernel: transformer_forward.1
$region0: #{transformer_forward.1}
  #allocation0 [shape = 'u32[]', space=smem, size = 0x4, offset = 0x4, fixed_abs, tag = 'smem constant byte address 0x4 - core index']
  #allocation1 [shape = 'u32[144,128]{1,0:T(1,128)}', space=vmem, size = 0x12000, scoped, tag = 'internal scratch']
  %s0 = inlined_call_operand.vmem [shape: s32[2,16,1], index: 0, kind: input, shape index: {}]
  %s1 = inlined_call_operand.vmem [shape: bf16[128,32], index: 1, kind: input, shape index: {}]
  %s2 = inlined_call_operand.vmem [shape: bf16[2,32,384], index: 2, kind: input, shape index: {}]
  %s3 = inlined_call_operand.vmem [shape: f32[2,32,32], index: 3, kind: input, shape index: {}]
  %s4 = inlined_call_operand.vmem [shape: bf16[2,32,128], index: 4, kind: input, shape index: {}]
  %s5 = inlined_call_operand.vmem [shape: bf16[2,128,32], index: 5, kind: input, shape index: {}]
  %s6 = inlined_call_operand.vmem [shape: bf16[32,128], index: 6, kind: input, shape index: {}]
  %s7 = inlined_call_operand.vmem [shape: f32[2,8,128], index: 7, kind: input, shape index: {}]
  %s8 = inlined_call_operand.vmem [shape: f32[8,128], index: 8, kind: input, shape index: {}]
  %s9 = inlined_call_operand.vmem [shape: f32[16,384], index: 9, kind: input, shape index: {}]
  %s10 = inlined_call_operand.vmem [shape: f32[64,16], index: 10, kind: input, shape index: {}]
  %s11 = inlined_call_operand.hbm [shape: f32[4,8,128], index: 11, kind: output, shape index: {}]
  %s12 = sld [smem:[#allocation0]]
  $region77: #{transformer_forward.1} parent=0
    _
  %s14 = ssub.s32 1, %s12
  %s15 = scalar_select 0, %s14, %s12
  $region1: #{transformer_forward.1} parent=0
    #allocation2 [shape = 'u8[16384]{0}', space=vmem, size = 0x4000, scoped, tag = 'output window, operand 0']
    #allocation3 [shape = 's32[2]{0}', space=sflag, size = 0x8, scoped, tag = 'scoped memory for transformer_forward.1']
    %16 = vsyncpa [#allocation3], 0
    %s17 = scalar_lea.sflag [#allocation3], 1
    %18 = vsyncpa %s17, 0
    loop: start=0, step=1, limit=4
    $region2: #{transformer_forward.1} parent=1 // loop_pre_header
      _
    $region3: #{transformer_forward.1} parent=1 // loop_header
      %s20 = sphi 0, %s24
      %p21 = scmp.ge.s32.totalorder %s20, 4
      %s30 = sphi 0, %s32
      %s33 = sphi 0, %s30
      %s34 = sphi 0, %s33
      %s50 = sphi 0, %s34
      %s54 = sphi 0, %s54
      %s56 = sphi 0, %s54
      %s57 = sphi 0, %s56
      %s71 = sphi 0, %s57
      %s75 = sphi 0, %s75
      %s77 = sphi 0, %s75
      %s78 = sphi 0, %s77
      %s92 = sphi 0, %s78
      %s96 = sphi 0, %s96
      %s98 = sphi 0, %s96
      %s99 = sphi 0, %s98
      %s113 = sphi 0, %s99
      %s117 = sphi 0, %s117
      %s119 = sphi 0, %s117
      %s120 = sphi 0, %s119
      %s134 = sphi 0, %s120
      %s138 = sphi 0, %s138
      %s140 = sphi 0, %s138
      %s141 = sphi 0, %s140
      %s155 = sphi 0, %s141
      %s159 = sphi 0, %s159
      %s161 = sphi 0, %s159
      %s162 = sphi 0, %s161
      %s176 = sphi 0, %s162
      %s180 = sphi 0, %s180
      %s182 = sphi 0, %s180
      %s183 = sphi 0, %s182
      %s197 = sphi 0, %s183
      %s201 = sphi 0, %s201
      %s203 = sphi 0, %s201
      %s204 = sphi 0, %s203
      %s218 = sphi 0, %s204
      %s222 = sphi 0, %s222
      %s224 = sphi 0, %s222
      %s225 = sphi 0, %s224
      %s239 = sphi 0, %s225
      %s243 = sphi 0, %s243
      %s245 = sphi 0, %s243
      %s246 = sphi 0, %s245
      %s260 = sphi 0, %s246
      %s266 = sphi 0, %s268
      %s269 = sphi 0, %s266
      %s270 = sphi 0, %s269
      %s286 = sphi 0, %s270
    $region4: #{transformer_forward.1} parent=1 // loop_header_branch
      %23 = sbr.rel (%p21) target = $region8
    $region5: #{transformer_forward.1} parent=1 // loop_body
      %s25 = ssub.s32 %s20, 1
      %s26 = ssub.s32 %s20, 2
      %s27 = sadd.s32 %s20, 1
      %s28 = ssub.s32 %s20, %s27
      %p29 = scmp.eq.s32.totalorder %s28, 0
      %s31 = sadd.s32 %s30, 1
      %s32 = scalar_select %p29, %s30, %s31
      %p35 = pneg %p29
      %p36 = scmp.eq.s32.totalorder %s20, 1
      %p37 = por %p35, %p36
      %p38 = scmp.ne.s32.totalorder %s30, %s33
      %p39 = scmp.eq.s32.totalorder %s20, 0
      %p40 = por %p38, %p39
      %p41 = scmp.ne.s32.totalorder %s30, %s33
      %p42 = scmp.eq.s32.totalorder %s25, 1
      %p43 = por %p41, %p42
      %p44 = scmp.ne.s32.totalorder %s33, %s34
      %p45 = scmp.eq.s32.totalorder %s25, 0
      %p46 = por %p44, %p45
      %p47 = scmp.ne.s32.totalorder %s33, %s34
      %p48 = scmp.eq.s32.totalorder %s26, 1
      %p49 = por %p47, %p48
      %p51 = scmp.ne.s32.totalorder %s34, %s50
      %p52 = scmp.eq.s32.totalorder %s26, 0
      %p53 = por %p51, %p52
      %s55 = sadd.s32 %s54, 1
      %p58 = scmp.eq.s32.totalorder %s20, 1
      %p59 = scmp.ne.s32.totalorder %s54, %s56
      %p60 = scmp.eq.s32.totalorder %s20, 0
      %p61 = por %p59, %p60
      %p62 = scmp.ne.s32.totalorder %s54, %s56
      %p63 = scmp.eq.s32.totalorder %s25, 1
      %p64 = por %p62, %p63
      %p65 = scmp.ne.s32.totalorder %s56, %s57
      %p66 = scmp.eq.s32.totalorder %s25, 0
      %p67 = por %p65, %p66
      %p68 = scmp.ne.s32.totalorder %s56, %s57
      %p69 = scmp.eq.s32.totalorder %s26, 1
      %p70 = por %p68, %p69
      %p72 = scmp.ne.s32.totalorder %s57, %s71
      %p73 = scmp.eq.s32.totalorder %s26, 0
      %p74 = por %p72, %p73
      %s76 = sadd.s32 %s75, 1
      %p79 = scmp.eq.s32.totalorder %s20, 1
      %p80 = scmp.ne.s32.totalorder %s75, %s77
      %p81 = scmp.eq.s32.totalorder %s20, 0
      %p82 = por %p80, %p81
      %p83 = scmp.ne.s32.totalorder %s75, %s77
      %p84 = scmp.eq.s32.totalorder %s25, 1
      %p85 = por %p83, %p84
      %p86 = scmp.ne.s32.totalorder %s77, %s78
      %p87 = scmp.eq.s32.totalorder %s25, 0
      %p88 = por %p86, %p87
      %p89 = scmp.ne.s32.totalorder %s77, %s78
      %p90 = scmp.eq.s32.totalorder %s26, 1
      %p91 = por %p89, %p90
      %p93 = scmp.ne.s32.totalorder %s78, %s92
      %p94 = scmp.eq.s32.totalorder %s26, 0
      %p95 = por %p93, %p94
      %s97 = sadd.s32 %s96, 1
      %p100 = scmp.eq.s32.totalorder %s20, 1
      %p101 = scmp.ne.s32.totalorder %s96, %s98
      %p102 = scmp.eq.s32.totalorder %s20, 0
      %p103 = por %p101, %p102
      %p104 = scmp.ne.s32.totalorder %s96, %s98
      %p105 = scmp.eq.s32.totalorder %s25, 1
      %p106 = por %p104, %p105
      %p107 = scmp.ne.s32.totalorder %s98, %s99
      %p108 = scmp.eq.s32.totalorder %s25, 0
      %p109 = por %p107, %p108
      %p110 = scmp.ne.s32.totalorder %s98, %s99
      %p111 = scmp.eq.s32.totalorder %s26, 1
      %p112 = por %p110, %p111
      %p114 = scmp.ne.s32.totalorder %s99, %s113
      %p115 = scmp.eq.s32.totalorder %s26, 0
      %p116 = por %p114, %p115
      %s118 = sadd.s32 %s117, 1
      %p121 = scmp.eq.s32.totalorder %s20, 1
      %p122 = scmp.ne.s32.totalorder %s117, %s119
      %p123 = scmp.eq.s32.totalorder %s20, 0
      %p124 = por %p122, %p123
      %p125 = scmp.ne.s32.totalorder %s117, %s119
      %p126 = scmp.eq.s32.totalorder %s25, 1
      %p127 = por %p125, %p126
      %p128 = scmp.ne.s32.totalorder %s119, %s120
      %p129 = scmp.eq.s32.totalorder %s25, 0
      %p130 = por %p128, %p129
      %p131 = scmp.ne.s32.totalorder %s119, %s120
      %p132 = scmp.eq.s32.totalorder %s26, 1
      %p133 = por %p131, %p132
      %p135 = scmp.ne.s32.totalorder %s120, %s134
      %p136 = scmp.eq.s32.totalorder %s26, 0
      %p137 = por %p135, %p136
      %s139 = sadd.s32 %s138, 1
      %p142 = scmp.eq.s32.totalorder %s20, 1
      %p143 = scmp.ne.s32.totalorder %s138, %s140
      %p144 = scmp.eq.s32.totalorder %s20, 0
      %p145 = por %p143, %p144
      %p146 = scmp.ne.s32.totalorder %s138, %s140
      %p147 = scmp.eq.s32.totalorder %s25, 1
      %p148 = por %p146, %p147
      %p149 = scmp.ne.s32.totalorder %s140, %s141
      %p150 = scmp.eq.s32.totalorder %s25, 0
      %p151 = por %p149, %p150
      %p152 = scmp.ne.s32.totalorder %s140, %s141
      %p153 = scmp.eq.s32.totalorder %s26, 1
      %p154 = por %p152, %p153
      %p156 = scmp.ne.s32.totalorder %s141, %s155
      %p157 = scmp.eq.s32.totalorder %s26, 0
      %p158 = por %p156, %p157
      %s160 = sadd.s32 %s159, 1
      %p163 = scmp.eq.s32.totalorder %s20, 1
      %p164 = scmp.ne.s32.totalorder %s159, %s161
      %p165 = scmp.eq.s32.totalorder %s20, 0
      %p166 = por %p164, %p165
      %p167 = scmp.ne.s32.totalorder %s159, %s161
      %p168 = scmp.eq.s32.totalorder %s25, 1
      %p169 = por %p167, %p168
      %p170 = scmp.ne.s32.totalorder %s161, %s162
      %p171 = scmp.eq.s32.totalorder %s25, 0
      %p172 = por %p170, %p171
      %p173 = scmp.ne.s32.totalorder %s161, %s162
      %p174 = scmp.eq.s32.totalorder %s26, 1
      %p175 = por %p173, %p174
      %p177 = scmp.ne.s32.totalorder %s162, %s176
      %p178 = scmp.eq.s32.totalorder %s26, 0
      %p179 = por %p177, %p178
      %s181 = sadd.s32 %s180, 1
      %p184 = scmp.eq.s32.totalorder %s20, 1
      %p185 = scmp.ne.s32.totalorder %s180, %s182
      %p186 = scmp.eq.s32.totalorder %s20, 0
      %p187 = por %p185, %p186
      %p188 = scmp.ne.s32.totalorder %s180, %s182
      %p189 = scmp.eq.s32.totalorder %s25, 1
      %p190 = por %p188, %p189
      %p191 = scmp.ne.s32.totalorder %s182, %s183
      %p192 = scmp.eq.s32.totalorder %s25, 0
      %p193 = por %p191, %p192
      %p194 = scmp.ne.s32.totalorder %s182, %s183
      %p195 = scmp.eq.s32.totalorder %s26, 1
      %p196 = por %p194, %p195
      %p198 = scmp.ne.s32.totalorder %s183, %s197
      %p199 = scmp.eq.s32.totalorder %s26, 0
      %p200 = por %p198, %p199
      %s202 = sadd.s32 %s201, 1
      %p205 = scmp.eq.s32.totalorder %s20, 1
      %p206 = scmp.ne.s32.totalorder %s201, %s203
      %p207 = scmp.eq.s32.totalorder %s20, 0
      %p208 = por %p206, %p207
      %p209 = scmp.ne.s32.totalorder %s201, %s203
      %p210 = scmp.eq.s32.totalorder %s25, 1
      %p211 = por %p209, %p210
      %p212 = scmp.ne.s32.totalorder %s203, %s204
      %p213 = scmp.eq.s32.totalorder %s25, 0
      %p214 = por %p212, %p213
      %p215 = scmp.ne.s32.totalorder %s203, %s204
      %p216 = scmp.eq.s32.totalorder %s26, 1
      %p217 = por %p215, %p216
      %p219 = scmp.ne.s32.totalorder %s204, %s218
      %p220 = scmp.eq.s32.totalorder %s26, 0
      %p221 = por %p219, %p220
      %s223 = sadd.s32 %s222, 1
      %p226 = scmp.eq.s32.totalorder %s20, 1
      %p227 = scmp.ne.s32.totalorder %s222, %s224
      %p228 = scmp.eq.s32.totalorder %s20, 0
      %p229 = por %p227, %p228
      %p230 = scmp.ne.s32.totalorder %s222, %s224
      %p231 = scmp.eq.s32.totalorder %s25, 1
      %p232 = por %p230, %p231
      %p233 = scmp.ne.s32.totalorder %s224, %s225
      %p234 = scmp.eq.s32.totalorder %s25, 0
      %p235 = por %p233, %p234
      %p236 = scmp.ne.s32.totalorder %s224, %s225
      %p237 = scmp.eq.s32.totalorder %s26, 1
      %p238 = por %p236, %p237
      %p240 = scmp.ne.s32.totalorder %s225, %s239
      %p241 = scmp.eq.s32.totalorder %s26, 0
      %p242 = por %p240, %p241
      %s244 = sadd.s32 %s243, 1
      %p247 = scmp.eq.s32.totalorder %s20, 1
      %p248 = scmp.ne.s32.totalorder %s243, %s245
      %p249 = scmp.eq.s32.totalorder %s20, 0
      %p250 = por %p248, %p249
      %p251 = scmp.ne.s32.totalorder %s243, %s245
      %p252 = scmp.eq.s32.totalorder %s25, 1
      %p253 = por %p251, %p252
      %p254 = scmp.ne.s32.totalorder %s245, %s246
      %p255 = scmp.eq.s32.totalorder %s25, 0
      %p256 = por %p254, %p255
      %p257 = scmp.ne.s32.totalorder %s245, %s246
      %p258 = scmp.eq.s32.totalorder %s26, 1
      %p259 = por %p257, %p258
      %p261 = scmp.ne.s32.totalorder %s246, %s260
      %p262 = scmp.eq.s32.totalorder %s26, 0
      %p263 = por %p261, %p262
      %s264 = ssub.s32 %s20, %s27
      %p265 = scmp.eq.s32.totalorder %s264, 0
      %s267 = sadd.s32 %s266, 1
      %s268 = scalar_select %p265, %s266, %s267
      %p271 = pneg %p265
      %p272 = scmp.eq.s32.totalorder %s20, 1
      %p273 = por %p271, %p272
      %p274 = scmp.ne.s32.totalorder %s266, %s269
      %p275 = scmp.eq.s32.totalorder %s20, 0
      %p276 = por %p274, %p275
      %p277 = scmp.ne.s32.totalorder %s266, %s269
      %p278 = scmp.eq.s32.totalorder %s25, 1
      %p279 = por %p277, %p278
      %p280 = scmp.ne.s32.totalorder %s269, %s270
      %p281 = scmp.eq.s32.totalorder %s25, 0
      %p282 = por %p280, %p281
      %p283 = scmp.ne.s32.totalorder %s269, %s270
      %p284 = scmp.eq.s32.totalorder %s26, 1
      %p285 = por %p283, %p284
      %p287 = scmp.ne.s32.totalorder %s270, %s286
      %p288 = scmp.eq.s32.totalorder %s26, 0
      %p289 = por %p287, %p288
      %p290 = scmp.le.s32.totalorder 1, %s20
      %p291 = scmp.lt.s32.totalorder %s20, 3
      %p292 = pnand %p290, %p291
      %p293 = pneg %p292
      // Predicated region
      $region9: #{transformer_forward.1} parent=5 // pred_check
        _
      $region10: #{transformer_forward.1} parent=5 // pred_check_branch
        %295 = sbr.rel (%p292) target = $region12
      $region11: #{transformer_forward.1} parent=5 // pred_region
        %s296 = ssub.s32 %s20, 1
        // Predicated region
        $region13: #{transformer_forward.1} parent=11 // pred_check
          %p297 = pneg %p67
        $region14: #{transformer_forward.1} parent=11 // pred_check_branch
          %299 = sbr.rel (%p297) target = $region16
        $region15: #{transformer_forward.1} parent=11 // pred_region
          _
        $region16: #{transformer_forward.1} parent=11 // pred_fallthru
          _
        // Predicated region
        $region17: #{transformer_forward.1} parent=11 // pred_check
          %p300 = pneg %p88
        $region18: #{transformer_forward.1} parent=11 // pred_check_branch
          %302 = sbr.rel (%p300) target = $region20
        $region19: #{transformer_forward.1} parent=11 // pred_region
          _
        $region20: #{transformer_forward.1} parent=11 // pred_fallthru
          _
        // Predicated region
        $region21: #{transformer_forward.1} parent=11 // pred_check
          %p303 = pneg %p109
        $region22: #{transformer_forward.1} parent=11 // pred_check_branch
          %305 = sbr.rel (%p303) target = $region24
        $region23: #{transformer_forward.1} parent=11 // pred_region
          _
        $region24: #{transformer_forward.1} parent=11 // pred_fallthru
          _
        // Predicated region
        $region25: #{transformer_forward.1} parent=11 // pred_check
          %p306 = pneg %p130
        $region26: #{transformer_forward.1} parent=11 // pred_check_branch
          %308 = sbr.rel (%p306) target = $region28
        $region27: #{transformer_forward.1} parent=11 // pred_region
          _
        $region28: #{transformer_forward.1} parent=11 // pred_fallthru
          _
        // Predicated region
        $region29: #{transformer_forward.1} parent=11 // pred_check
          %p309 = pneg %p151
        $region30: #{transformer_forward.1} parent=11 // pred_check_branch
          %311 = sbr.rel (%p309) target = $region32
        $region31: #{transformer_forward.1} parent=11 // pred_region
          _
        $region32: #{transformer_forward.1} parent=11 // pred_fallthru
          _
        // Predicated region
        $region33: #{transformer_forward.1} parent=11 // pred_check
          %p312 = pneg %p172
        $region34: #{transformer_forward.1} parent=11 // pred_check_branch
          %314 = sbr.rel (%p312) target = $region36
        $region35: #{transformer_forward.1} parent=11 // pred_region
          _
        $region36: #{transformer_forward.1} parent=11 // pred_fallthru
          _
        // Predicated region
        $region37: #{transformer_forward.1} parent=11 // pred_check
          %p315 = pneg %p193
        $region38: #{transformer_forward.1} parent=11 // pred_check_branch
          %317 = sbr.rel (%p315) target = $region40
        $region39: #{transformer_forward.1} parent=11 // pred_region
          _
        $region40: #{transformer_forward.1} parent=11 // pred_fallthru
          _
        // Predicated region
        $region41: #{transformer_forward.1} parent=11 // pred_check
          %p318 = pneg %p214
        $region42: #{transformer_forward.1} parent=11 // pred_check_branch
          %320 = sbr.rel (%p318) target = $region44
        $region43: #{transformer_forward.1} parent=11 // pred_region
          _
        $region44: #{transformer_forward.1} parent=11 // pred_fallthru
          _
        // Predicated region
        $region45: #{transformer_forward.1} parent=11 // pred_check
          %p321 = pneg %p235
        $region46: #{transformer_forward.1} parent=11 // pred_check_branch
          %323 = sbr.rel (%p321) target = $region48
        $region47: #{transformer_forward.1} parent=11 // pred_region
          _
        $region48: #{transformer_forward.1} parent=11 // pred_fallthru
          _
        // Predicated region
        $region49: #{transformer_forward.1} parent=11 // pred_check
          %p324 = pneg %p256
        $region50: #{transformer_forward.1} parent=11 // pred_check_branch
          %326 = sbr.rel (%p324) target = $region52
        $region51: #{transformer_forward.1} parent=11 // pred_region
          _
        $region52: #{transformer_forward.1} parent=11 // pred_fallthru
          _
      $region12: #{transformer_forward.1} parent=5 // pred_fallthru
        _
      %p327 = scmp.lt.s32.totalorder %s20, 2
      // Predicated region
      $region53: #{transformer_forward.1} parent=5 // pred_check
        %p328 = pneg %p327
      $region54: #{transformer_forward.1} parent=5 // pred_check_branch
        %330 = sbr.rel (%p328) target = $region56
      $region55: #{transformer_forward.1} parent=5 // pred_region
        // Predicated region
        $region57: #{transformer_forward.1} parent=55 // pred_check
          %p331 = pneg %p40
        $region58: #{transformer_forward.1} parent=55 // pred_check_branch
          %333 = sbr.rel (%p331) target = $region60
        $region59: #{transformer_forward.1} parent=55 // pred_region
          %p334 = scmp.lt.s32.totalorder %s20, 1
          %s335 = scalar_select %p334, %s20, 1
          %s336 = smul.addr %s335, 2
          %s337 = smul.addr %s336, 8
          %s338 = scalar_lea.vmem %s0, %s337
        $region60: #{transformer_forward.1} parent=55 // pred_fallthru
          _
      $region56: #{transformer_forward.1} parent=5 // pred_fallthru
        _
      %p339 = scmp.le.s32.totalorder 1, %s20
      %p340 = scmp.lt.s32.totalorder %s20, 3
      %p341 = pnand %p339, %p340
      %p342 = pneg %p341
      // Predicated region
      $region61: #{transformer_forward.1} parent=5 // pred_check
        _
      $region62: #{transformer_forward.1} parent=5 // pred_check_branch
        %344 = sbr.rel (%p341) target = $region64
      $region63: #{transformer_forward.1} parent=5 // pred_region
        %s345 = ssub.s32 %s20, 1
        %p346 = scmp.lt.s32.totalorder %s25, 1
        %s347 = scalar_select %p346, %s25, 1
        %s348 = smul.addr %s347, 2
        %s349 = smul.addr %s348, 8
        %s350 = scalar_lea.vmem %s0, %s349
        %p351 = pneg %p46
        %p352 = pneg %p43
        %p353 = pneg %p67
        %p354 = pneg %p64
        %p355 = pneg %p88
        %p356 = pneg %p85
        %p357 = pneg %p109
        %p358 = pneg %p106
        %p359 = pneg %p130
        %p360 = pneg %p127
        %p361 = pneg %p151
        %p362 = pneg %p148
        %p363 = pneg %p172
        %p364 = pneg %p169
        %p365 = pneg %p193
        %p366 = pneg %p190
        %p367 = pneg %p214
        %p368 = pneg %p211
        %p369 = pneg %p235
        %p370 = pneg %p232
        %p371 = pneg %p256
        %p372 = pneg %p253
        %p373 = pneg %p282
        %p374 = pneg %p279
        %s375 = sand.u32 %s269, 1
        %s376 = scalar_lea.sflag [#allocation3], %s375
        %s377 = sand.u32 %s269, 1
        %s378 = smul.addr %s377, 16
        %s379 = scalar_lea.vmem [#allocation2], %s378
        %p380 = scmp.lt.s32.totalorder %s25, 1
        %s381 = scalar_select %p380, %s25, 1
        %s382 = smul.addr %s381, 2
        %s383 = smul.addr %s382, 8
        %s384 = scalar_lea.vmem %s0, %s383
        %s385 = smul.u32 2, %s25
        %v387 = vld [vmem:[%s384] sm:$0xff]
        %v388 = vld [vmem:[%s384 + $0x8] sm:$0xff]
        %v389 = vlaneseq
        %v390 = vand.u32 %v389, 127
        %391 = vset.pattern.permute.xlu0 0
        %392 = vperm.xlu0 %391, %v387
        %v393 = vpop.permute.xlu0 %392
        %394 = vset.pattern.permute.xlu0 0
        %395 = vperm.xlu0 %394, %v388
        %v396 = vpop.permute.xlu0 %395
        %vm397 = vcmp.eq.s32.totalorder %v393, %v390
        %vm398 = vcmp.eq.s32.totalorder %v396, %v390
        %v399 = vsel %vm397, 1, 0
        %v400 = vsel %vm398, 1, 0
        %v401 = vcvt.s32.f32 %v399
        %v402 = vcvt.s32.f32 %v400
        %v403 = vpack.c.bf16 %v402, %v401
        %v404 = vld [vmem:[%s1] sm:$0xf]
        %v405 = vld [vmem:[%s1 + $0x4] sm:$0xf]
        %v406 = vld [vmem:[%s1 + $0x8] sm:$0xf]
        %v407 = vld [vmem:[%s1 + $0xc] sm:$0xf]
        %v408 = vld [vmem:[%s1 + $0x10] sm:$0xf]
        %v409 = vld [vmem:[%s1 + $0x14] sm:$0xf]
        %v410 = vld [vmem:[%s1 + $0x18] sm:$0xf]
        %v411 = vld [vmem:[%s1 + $0x1c] sm:$0xf]
        %v412 = vld [vmem:[%s1 + $0x20] sm:$0xf]
        %v413 = vld [vmem:[%s1 + $0x24] sm:$0xf]
        %v414 = vld [vmem:[%s1 + $0x28] sm:$0xf]
        %v415 = vld [vmem:[%s1 + $0x2c] sm:$0xf]
        %v416 = vld [vmem:[%s1 + $0x30] sm:$0xf]
        %v417 = vld [vmem:[%s1 + $0x34] sm:$0xf]
        %v418 = vld [vmem:[%s1 + $0x38] sm:$0xf]
        %v419 = vld [vmem:[%s1 + $0x3c] sm:$0xf]
        %v436 = vunpack.c.l.b16 %v404
        %v437 = vunpack.c.l.b16 %v405
        %v438 = vunpack.c.l.b16 %v406
        %v439 = vunpack.c.l.b16 %v407
        %v440 = vunpack.c.l.b16 %v408
        %v441 = vunpack.c.l.b16 %v409
        %v442 = vunpack.c.l.b16 %v410
        %v443 = vunpack.c.l.b16 %v411
        %v444 = vunpack.c.l.b16 %v412
        %v445 = vunpack.c.l.b16 %v413
        %v446 = vunpack.c.l.b16 %v414
        %v447 = vunpack.c.l.b16 %v415
        %v448 = vunpack.c.l.b16 %v416
        %v449 = vunpack.c.l.b16 %v417
        %v450 = vunpack.c.l.b16 %v418
        %v451 = vunpack.c.l.b16 %v419
        %v452 = vpack.c.b16 %v437, %v436
        %v453 = vpack.c.b16 %v439, %v438
        %v454 = vpack.c.b16 %v441, %v440
        %v455 = vpack.c.b16 %v443, %v442
        %v456 = vpack.c.b16 %v445, %v444
        %v457 = vpack.c.b16 %v447, %v446
        %v458 = vpack.c.b16 %v449, %v448
        %v459 = vpack.c.b16 %v451, %v450
        %468 = vmatprep.subr.bf16.mxu0 0
        %469 = vmatpush1.bf16.msra.mxu0 %v452
        %470 = vmatprep.subr.bf16.mxu0 0
        %471 = vmatpush1.bf16.msra.mxu0 %v453
        %472 = vmatprep.subr.bf16.mxu0 0
        %473 = vmatpush1.bf16.msra.mxu0 %v454
        %474 = vmatprep.subr.bf16.mxu0 0
        %475 = vmatpush1.bf16.msra.mxu0 %v455
        %476 = vmatprep.subr.bf16.mxu0 0
        %477 = vmatpush1.bf16.msra.mxu0 %v456
        %478 = vmatprep.subr.bf16.mxu0 0
        %479 = vmatpush1.bf16.msra.mxu0 %v457
        %480 = vmatprep.subr.bf16.mxu0 0
        %481 = vmatpush1.bf16.msra.mxu0 %v458
        %482 = vmatprep.subr.bf16.mxu0 0
        %483 = vmatpush1.bf16.msra.mxu0 %v459
        %484 = vmatprep.subr.bf16.mxu0 0
        %485 = vmatpush1.bf16.msra.mxu0 0
        %486 = vmatprep.subr.bf16.mxu0 0
        %487 = vmatpush1.bf16.msra.mxu0 0
        %488 = vmatprep.subr.bf16.mxu0 0
        %489 = vmatpush1.bf16.msra.mxu0 0
        %490 = vmatprep.subr.bf16.mxu0 0
        %491 = vmatpush1.bf16.msra.mxu0 0
        %492 = vmatprep.subr.bf16.mxu0 0
        %493 = vmatpush1.bf16.msra.mxu0 0
        %494 = vmatprep.subr.bf16.mxu0 0
        %495 = vmatpush1.bf16.msra.mxu0 0
        %496 = vmatprep.subr.bf16.mxu0 0
        %497 = vmatpush1.bf16.msra.mxu0 0
        %498 = vmatprep.subr.bf16.mxu0 0
        %499 = vmatpush1.bf16.msra.mxu0 0
        %500 = vmatprep.mubr.bf16.mxu0 0
        %501 = vmatmul.mubr.bf16.gmra.mrb[0].mxu0 %v403
        %v502 = vpop.f32.mrb[0].mxu0
        %v503 = vadd.f32 0.0, %v502
        %v504 = vpop.f32.mrb[0].mxu0
        %v505 = vpop.f32.mrb[0].mxu0
        %v506 = vadd.f32 0.0, %v505
        %v507 = vpop.f32.mrb[0].mxu0
        %508 = vdwg.mxu0
        %v509 = vld [vmem:[%s9] sm:$0xff]
        %v510 = vld [vmem:[%s9 + $0x8] sm:$0xff]
        %v511 = vld [vmem:[%s9 + $0x18] sm:$0xff]
        %v512 = vld [vmem:[%s9 + $0x20] sm:$0xff]
        %v513 = vld [vmem:[%s10] sm:$0xff]
        %v514 = vld [vmem:[%s10 + $0x8] sm:$0xff]
        %v515 = vld [vmem:[%s10 + $0x10] sm:$0xff]
        %v516 = vld [vmem:[%s10 + $0x18] sm:$0xff]
        %v517 = vld [vmem:[%s10 + $0x20] sm:$0xff]
        %v518 = vld [vmem:[%s10 + $0x28] sm:$0xff]
        %v519 = vld [vmem:[%s10 + $0x30] sm:$0xff]
        %v520 = vld [vmem:[%s10 + $0x38] sm:$0xff]
        %v521 = vld [vmem:[%s7] sm:$0xff]
        %v522 = vld [vmem:[%s3] sm:$0xff]
        %v523 = vld [vmem:[%s3 + $0x8] sm:$0xff]
        %v524 = vld [vmem:[%s3 + $0x10] sm:$0xff]
        %v525 = vld [vmem:[%s3 + $0x18] sm:$0xff]
        %vm526 = vcmask 261120
        %v527 = vsel %vm526, %v503, 0.0
        %528 = vadd.xlane.f32.xlu0 %v527
        %v529 = vpop.xlane.xlu0 %528
        %v530 = vsel %vm526, %v506, 0.0
        %531 = vadd.xlane.f32.xlu0 %v530
        %v532 = vpop.xlane.xlu0 %531
        %v533 = vrcp.pop 32.0
        %v534 = vmul.f32 %v529, %v533
        %v535 = vmul.f32 %v532, %v533
        %v536 = vsub.f32 %v503, %v534
        %v537 = vsub.f32 %v506, %v535
        %v538 = vmul.f32 %v536, %v536
        %v539 = vmul.f32 %v537, %v537
        %v540 = vsel %vm526, %v538, 0.0
        %541 = vadd.xlane.f32.xlu0 %v540
        %v542 = vpop.xlane.xlu0 %541
        %v543 = vsel %vm526, %v539, 0.0
        %544 = vadd.xlane.f32.xlu0 %v543
        %v545 = vpop.xlane.xlu0 %544
        %v546 = vmul.f32 %v542, %v533
        %v547 = vmul.f32 %v545, %v533
        %v548 = vadd.f32 %v546, 1e-05
        %v549 = vadd.f32 %v547, 1e-05
        %v550 = vrsqrt.pop %v548
        %v551 = vrsqrt.pop %v549
        %v552 = vmul.f32 %v536, %v550
        %v553 = vmul.f32 %v537, %v551
        %v554 = vlaneseq
        %v555 = vshrl.u32 %v554, 7
        %v556 = vsub.s32 0, %v555
        %v557 = vrot.slane %v521, %v556
        %v558 = vmul.f32 %v552, %v557
        %v559 = vmul.f32 %v553, %v557
        %v560 = vlaneseq
        %v561 = vshrl.u32 %v560, 7
        %v562 = vsub.s32 1, %v561
        %v563 = vrot.slane %v521, %v562
        %v564 = vadd.f32 %v558, %v563
        %v565 = vadd.f32 %v559, %v563
        %v566 = vpack.c.bf16 %v565, %v564
        %v567 = vld [vmem:[%s2] sm:$0xff]
        %v568 = vld [vmem:[%s2 + $0x8] sm:$0xf]
        %v569 = vld [vmem:[%s2 + $0xc] sm:$0xff]
        %v570 = vld [vmem:[%s2 + $0x14] sm:$0xf]
        %v571 = vld [vmem:[%s2 + $0x18] sm:$0xff]
        %v572 = vld [vmem:[%s2 + $0x20] sm:$0xf]
        %v573 = vld [vmem:[%s2 + $0x24] sm:$0xff]
        %v574 = vld [vmem:[%s2 + $0x2c] sm:$0xf]
        %v583 = vunpack.c.l.b16 %v567
        %v584 = vunpack.c.h.b16 %v567
        %v585 = vunpack.c.l.b16 %v568
        %v586 = vunpack.c.l.b16 %v569
        %v587 = vunpack.c.h.b16 %v569
        %v588 = vunpack.c.l.b16 %v570
        %v589 = vunpack.c.l.b16 %v571
        %v590 = vunpack.c.h.b16 %v571
        %v591 = vunpack.c.l.b16 %v572
        %v592 = vunpack.c.l.b16 %v573
        %v593 = vunpack.c.h.b16 %v573
        %v594 = vunpack.c.l.b16 %v574
        %v595 = vpack.c.b16 %v586, %v583
        %v596 = vpack.c.b16 %v587, %v584
        %v597 = vpack.c.b16 %v588, %v585
        %v598 = vpack.c.b16 %v592, %v589
        %v599 = vpack.c.b16 %v593, %v590
        %v600 = vpack.c.b16 %v594, %v591
        %v608 = vsel %vm526, %v566, 0
        %610 = vmatprep.subr.bf16.mxu0 %v596
        %611 = vmatpush1.bf16.msra.mxu0 %v595
        %612 = vmatprep.subr.bf16.mxu0 %v599
        %613 = vmatpush1.bf16.msra.mxu0 %v598
        %614 = vmatprep.subr.bf16.mxu0 0
        %615 = vmatpush1.bf16.msra.mxu0 0
        %616 = vmatprep.subr.bf16.mxu0 0
        %617 = vmatpush1.bf16.msra.mxu0 0
        %618 = vmatprep.subr.bf16.mxu0 0
        %619 = vmatpush1.bf16.msra.mxu0 0
        %620 = vmatprep.subr.bf16.mxu0 0
        %621 = vmatpush1.bf16.msra.mxu0 0
        %622 = vmatprep.subr.bf16.mxu0 0
        %623 = vmatpush1.bf16.msra.mxu0 0
        %624 = vmatprep.subr.bf16.mxu0 0
        %625 = vmatpush1.bf16.msra.mxu0 0
        %626 = vmatprep.subr.bf16.mxu0 0
        %627 = vmatpush1.bf16.msra.mxu0 0
        %628 = vmatprep.subr.bf16.mxu0 0
        %629 = vmatpush1.bf16.msra.mxu0 0
        %630 = vmatprep.subr.bf16.mxu0 0
        %631 = vmatpush1.bf16.msra.mxu0 0
        %632 = vmatprep.subr.bf16.mxu0 0
        %633 = vmatpush1.bf16.msra.mxu0 0
        %634 = vmatprep.subr.bf16.mxu0 0
        %635 = vmatpush1.bf16.msra.mxu0 0
        %636 = vmatprep.subr.bf16.mxu0 0
        %637 = vmatpush1.bf16.msra.mxu0 0
        %638 = vmatprep.subr.bf16.mxu0 0
        %639 = vmatpush1.bf16.msra.mxu0 0
        %640 = vmatprep.subr.bf16.mxu0 0
        %641 = vmatpush1.bf16.msra.mxu0 0
        %642 = vmatprep.mubr.bf16.mxu0 0
        %643 = vmatmul.mubr.bf16.gmra.mrb[0].mxu0 %v608
        %v644 = vpop.f32.mrb[0].mxu0
        %v645 = vadd.f32 0.0, %v644
        %v646 = vpop.f32.mrb[0].mxu0
        %v647 = vadd.f32 0.0, %v646
        %v648 = vpop.f32.mrb[0].mxu0
        %v649 = vadd.f32 0.0, %v648
        %v650 = vpop.f32.mrb[0].mxu0
        %v651 = vadd.f32 0.0, %v650
        %652 = vdwg.mxu0
        %653 = vmatprep.subr.bf16.mxu0 0
        %654 = vmatpush1.bf16.msra.mxu0 %v597
        %655 = vmatprep.subr.bf16.mxu0 0
        %656 = vmatpush1.bf16.msra.mxu0 %v600
        %657 = vmatprep.subr.bf16.mxu0 0
        %658 = vmatpush1.bf16.msra.mxu0 0
        %659 = vmatprep.subr.bf16.mxu0 0
        %660 = vmatpush1.bf16.msra.mxu0 0
        %661 = vmatprep.subr.bf16.mxu0 0
        %662 = vmatpush1.bf16.msra.mxu0 0
        %663 = vmatprep.subr.bf16.mxu0 0
        %664 = vmatpush1.bf16.msra.mxu0 0
        %665 = vmatprep.subr.bf16.mxu0 0
        %666 = vmatpush1.bf16.msra.mxu0 0
        %667 = vmatprep.subr.bf16.mxu0 0
        %668 = vmatpush1.bf16.msra.mxu0 0
        %669 = vmatprep.subr.bf16.mxu0 0
        %670 = vmatpush1.bf16.msra.mxu0 0
        %671 = vmatprep.subr.bf16.mxu0 0
        %672 = vmatpush1.bf16.msra.mxu0 0
        %673 = vmatprep.subr.bf16.mxu0 0
        %674 = vmatpush1.bf16.msra.mxu0 0
        %675 = vmatprep.subr.bf16.mxu0 0
        %676 = vmatpush1.bf16.msra.mxu0 0
        %677 = vmatprep.subr.bf16.mxu0 0
        %678 = vmatpush1.bf16.msra.mxu0 0
        %679 = vmatprep.subr.bf16.mxu0 0
        %680 = vmatpush1.bf16.msra.mxu0 0
        %681 = vmatprep.subr.bf16.mxu0 0
        %682 = vmatpush1.bf16.msra.mxu0 0
        %683 = vmatprep.subr.bf16.mxu0 0
        %684 = vmatpush1.bf16.msra.mxu0 0
        %685 = vmatprep.mubr.bf16.mxu0 0
        %686 = vmatmul.mubr.bf16.gmra.mrb[0].mxu0 %v608
        %v687 = vpop.f32.mrb[0].mxu0
        %v688 = vadd.f32 0.0, %v687
        %v689 = vpop.f32.mrb[0].mxu0
        %v690 = vpop.f32.mrb[0].mxu0
        %v691 = vadd.f32 0.0, %v690
        %v692 = vpop.f32.mrb[0].mxu0
        %693 = vdwg.mxu0
        %v694 = vmul.f32 %v645, %v509
        %v695 = vmul.f32 %v649, %v511
        %v696 = vmul.f32 %v647, %v510
        %v697 = vmul.f32 %v651, %v512
        %v698 = vadd.f32 %v694, %v696
        %v699 = vadd.f32 %v695, %v697
        %v700 = vpack.c.bf16 %v699, %v698
        %v701 = vpack.c.bf16 %v691, %v688
        %703 = vrot.lane.b32.xlu0 %v700, 96
        %v704 = vpop.permute.xlu0 %703
        %vm705 = vcmask 64512
        %v707 = vsel %vm705, %v700, 0
        %v710 = vsel %vm705, %v704, 0
        %712 = vmatprep.subr.bf16.mxu0 0
        %713 = vmatpush1.bf16.xpose.msra.mxu0 %v710
        %714 = vmatprep.subr.bf16.mxu0 0
        %715 = vmatpush1.bf16.xpose.msra.mxu0 0
        %716 = vmatprep.subr.bf16.mxu0 0
        %717 = vmatpush1.bf16.xpose.msra.mxu0 0
        %718 = vmatprep.subr.bf16.mxu0 0
        %719 = vmatpush1.bf16.xpose.msra.mxu0 0
        %720 = vmatprep.subr.bf16.mxu0 0
        %721 = vmatpush1.bf16.xpose.msra.mxu0 0
        %722 = vmatprep.subr.bf16.mxu0 0
        %723 = vmatpush1.bf16.xpose.msra.mxu0 0
        %724 = vmatprep.subr.bf16.mxu0 0
        %725 = vmatpush1.bf16.xpose.msra.mxu0 0
        %726 = vmatprep.subr.bf16.mxu0 0
        %727 = vmatpush1.bf16.xpose.msra.mxu0 0
        %728 = vmatprep.subr.bf16.mxu0 0
        %729 = vmatpush1.bf16.xpose.msra.mxu0 0
        %730 = vmatprep.subr.bf16.mxu0 0
        %731 = vmatpush1.bf16.xpose.msra.mxu0 0
        %732 = vmatprep.subr.bf16.mxu0 0
        %733 = vmatpush1.bf16.xpose.msra.mxu0 0
        %734 = vmatprep.subr.bf16.mxu0 0
        %735 = vmatpush1.bf16.xpose.msra.mxu0 0
        %736 = vmatprep.subr.bf16.mxu0 0
        %737 = vmatpush1.bf16.xpose.msra.mxu0 0
        %738 = vmatprep.subr.bf16.mxu0 0
        %739 = vmatpush1.bf16.xpose.msra.mxu0 0
        %740 = vmatprep.subr.bf16.mxu0 0
        %741 = vmatpush1.bf16.xpose.msra.mxu0 0
        %742 = vmatprep.subr.bf16.mxu0 0
        %743 = vmatpush1.bf16.xpose.msra.mxu0 0
        %744 = vmatprep.mubr.bf16.mxu0 0
        %745 = vmatmul.mubr.bf16.gmra.mrb[0].mxu0 %v707
        %v746 = vpop.f32.mrb[0].mxu0
        %v747 = vadd.f32 0.0, %v746
        %v748 = vpop.f32.mrb[0].mxu0
        %v749 = vpop.f32.mrb[0].mxu0
        %v750 = vadd.f32 0.0, %v749
        %v751 = vpop.f32.mrb[0].mxu0
        %752 = vdwg.mxu0
        %753 = vrot.lane.b32.xlu0 %v700, 120
        %v754 = vpop.permute.xlu0 %753
        %755 = vrot.lane.b32.xlu0 %v700, 88
        %v756 = vpop.permute.xlu0 %755
        %v758 = vsel %vm705, %v754, 0
        %v761 = vsel %vm705, %v756, 0
        %763 = vmatprep.subr.bf16.mxu0 0
        %764 = vmatpush1.bf16.xpose.msra.mxu0 %v761
        %765 = vmatprep.subr.bf16.mxu0 0
        %766 = vmatpush1.bf16.xpose.msra.mxu0 0
        %767 = vmatprep.subr.bf16.mxu0 0
        %768 = vmatpush1.bf16.xpose.msra.mxu0 0
        %769 = vmatprep.subr.bf16.mxu0 0
        %770 = vmatpush1.bf16.xpose.msra.mxu0 0
        %771 = vmatprep.subr.bf16.mxu0 0
        %772 = vmatpush1.bf16.xpose.msra.mxu0 0
        %773 = vmatprep.subr.bf16.mxu0 0
        %774 = vmatpush1.bf16.xpose.msra.mxu0 0
        %775 = vmatprep.subr.bf16.mxu0 0
        %776 = vmatpush1.bf16.xpose.msra.mxu0 0
        %777 = vmatprep.subr.bf16.mxu0 0
        %778 = vmatpush1.bf16.xpose.msra.mxu0 0
        %779 = vmatprep.subr.bf16.mxu0 0
        %780 = vmatpush1.bf16.xpose.msra.mxu0 0
        %781 = vmatprep.subr.bf16.mxu0 0
        %782 = vmatpush1.bf16.xpose.msra.mxu0 0
        %783 = vmatprep.subr.bf16.mxu0 0
        %784 = vmatpush1.bf16.xpose.msra.mxu0 0
        %785 = vmatprep.subr.bf16.mxu0 0
        %786 = vmatpush1.bf16.xpose.msra.mxu0 0
        %787 = vmatprep.subr.bf16.mxu0 0
        %788 = vmatpush1.bf16.xpose.msra.mxu0 0
        %789 = vmatprep.subr.bf16.mxu0 0
        %790 = vmatpush1.bf16.xpose.msra.mxu0 0
        %791 = vmatprep.subr.bf16.mxu0 0
        %792 = vmatpush1.bf16.xpose.msra.mxu0 0
        %793 = vmatprep.subr.bf16.mxu0 0
        %794 = vmatpush1.bf16.xpose.msra.mxu0 0
        %795 = vmatprep.mubr.bf16.mxu0 0
        %796 = vmatmul.mubr.bf16.gmra.mrb[0].mxu0 %v758
        %v797 = vpop.f32.mrb[0].mxu0
        %v798 = vadd.f32 0.0, %v797
        %v799 = vpop.f32.mrb[0].mxu0
        %v800 = vpop.f32.mrb[0].mxu0
        %v801 = vadd.f32 0.0, %v800
        %v802 = vpop.f32.mrb[0].mxu0
        %803 = vdwg.mxu0
        %804 = vrot.lane.b32.xlu0 %v700, 112
        %v805 = vpop.permute.xlu0 %804
        %806 = vrot.lane.b32.xlu0 %v700, 80
        %v807 = vpop.permute.xlu0 %806
        %v809 = vsel %vm705, %v805, 0
        %v812 = vsel %vm705, %v807, 0
        %814 = vmatprep.subr.bf16.mxu0 0
        %815 = vmatpush1.bf16.xpose.msra.mxu0 %v812
        %816 = vmatprep.subr.bf16.mxu0 0
        %817 = vmatpush1.bf16.xpose.msra.mxu0 0
        %818 = vmatprep.subr.bf16.mxu0 0
        %819 = vmatpush1.bf16.xpose.msra.mxu0 0
        %820 = vmatprep.subr.bf16.mxu0 0
        %821 = vmatpush1.bf16.xpose.msra.mxu0 0
        %822 = vmatprep.subr.bf16.mxu0 0
        %823 = vmatpush1.bf16.xpose.msra.mxu0 0
        %824 = vmatprep.subr.bf16.mxu0 0
        %825 = vmatpush1.bf16.xpose.msra.mxu0 0
        %826 = vmatprep.subr.bf16.mxu0 0
        %827 = vmatpush1.bf16.xpose.msra.mxu0 0
        %828 = vmatprep.subr.bf16.mxu0 0
        %829 = vmatpush1.bf16.xpose.msra.mxu0 0
        %830 = vmatprep.subr.bf16.mxu0 0
        %831 = vmatpush1.bf16.xpose.msra.mxu0 0
        %832 = vmatprep.subr.bf16.mxu0 0
        %833 = vmatpush1.bf16.xpose.msra.mxu0 0
        %834 = vmatprep.subr.bf16.mxu0 0
        %835 = vmatpush1.bf16.xpose.msra.mxu0 0
        %836 = vmatprep.subr.bf16.mxu0 0
        %837 = vmatpush1.bf16.xpose.msra.mxu0 0
        %838 = vmatprep.subr.bf16.mxu0 0
        %839 = vmatpush1.bf16.xpose.msra.mxu0 0
        %840 = vmatprep.subr.bf16.mxu0 0
        %841 = vmatpush1.bf16.xpose.msra.mxu0 0
        %842 = vmatprep.subr.bf16.mxu0 0
        %843 = vmatpush1.bf16.xpose.msra.mxu0 0
        %844 = vmatprep.subr.bf16.mxu0 0
        %845 = vmatpush1.bf16.xpose.msra.mxu0 0
        %846 = vmatprep.mubr.bf16.mxu0 0
        %847 = vmatmul.mubr.bf16.gmra.mrb[0].mxu0 %v809
        %v848 = vpop.f32.mrb[0].mxu0
        %v849 = vadd.f32 0.0, %v848
        %v850 = vpop.f32.mrb[0].mxu0
        %v851 = vpop.f32.mrb[0].mxu0
        %v852 = vadd.f32 0.0, %v851
        %v853 = vpop.f32.mrb[0].mxu0
        %854 = vdwg.mxu0
        %855 = vrot.lane.b32.xlu0 %v700, 104
        %v856 = vpop.permute.xlu0 %855
        %857 = vrot.lane.b32.xlu0 %v700, 72
        %v858 = vpop.permute.xlu0 %857
        %v860 = vsel %vm705, %v856, 0
        %v863 = vsel %vm705, %v858, 0
        %865 = vmatprep.subr.bf16.mxu0 0
        %866 = vmatpush1.bf16.xpose.msra.mxu0 %v863
        %867 = vmatprep.subr.bf16.mxu0 0
        %868 = vmatpush1.bf16.xpose.msra.mxu0 0
        %869 = vmatprep.subr.bf16.mxu0 0
        %870 = vmatpush1.bf16.xpose.msra.mxu0 0
        %871 = vmatprep.subr.bf16.mxu0 0
        %872 = vmatpush1.bf16.xpose.msra.mxu0 0
        %873 = vmatprep.subr.bf16.mxu0 0
        %874 = vmatpush1.bf16.xpose.msra.mxu0 0
        %875 = vmatprep.subr.bf16.mxu0 0
        %876 = vmatpush1.bf16.xpose.msra.mxu0 0
        %877 = vmatprep.subr.bf16.mxu0 0
        %878 = vmatpush1.bf16.xpose.msra.mxu0 0
        %879 = vmatprep.subr.bf16.mxu0 0
        %880 = vmatpush1.bf16.xpose.msra.mxu0 0
        %881 = vmatprep.subr.bf16.mxu0 0
        %882 = vmatpush1.bf16.xpose.msra.mxu0 0
        %883 = vmatprep.subr.bf16.mxu0 0
        %884 = vmatpush1.bf16.xpose.msra.mxu0 0
        %885 = vmatprep.subr.bf16.mxu0 0
        %886 = vmatpush1.bf16.xpose.msra.mxu0 0
        %887 = vmatprep.subr.bf16.mxu0 0
        %888 = vmatpush1.bf16.xpose.msra.mxu0 0
        %889 = vmatprep.subr.bf16.mxu0 0
        %890 = vmatpush1.bf16.xpose.msra.mxu0 0
        %891 = vmatprep.subr.bf16.mxu0 0
        %892 = vmatpush1.bf16.xpose.msra.mxu0 0
        %893 = vmatprep.subr.bf16.mxu0 0
        %894 = vmatpush1.bf16.xpose.msra.mxu0 0
        %895 = vmatprep.subr.bf16.mxu0 0
        %896 = vmatpush1.bf16.xpose.msra.mxu0 0
        %897 = vmatprep.mubr.bf16.mxu0 0
        %898 = vmatmul.mubr.bf16.gmra.mrb[0].mxu0 %v860
        %v899 = vpop.f32.mrb[0].mxu0
        %v900 = vadd.f32 0.0, %v899
        %v901 = vpop.f32.mrb[0].mxu0
        %v902 = vpop.f32.mrb[0].mxu0
        %v903 = vadd.f32 0.0, %v902
        %v904 = vpop.f32.mrb[0].mxu0
        %905 = vdwg.mxu0
        %v906 = vmul.f32 %v747, 0.35355338
        %v907 = vmul.f32 %v750, 0.35355338
        %v908 = vmul.f32 %v798, 0.35355338
        %v909 = vmul.f32 %v801, 0.35355338
        %v910 = vmul.f32 %v849, 0.35355338
        %v911 = vmul.f32 %v852, 0.35355338
        %v912 = vmul.f32 %v900, 0.35355338
        %v913 = vmul.f32 %v903, 0.35355338
        %v914 = vadd.f32 %v906, %v513
        %v915 = vadd.f32 %v907, %v514
        %v916 = vadd.f32 %v908, %v515
        %v917 = vadd.f32 %v909, %v516
        %v918 = vadd.f32 %v910, %v517
        %v919 = vadd.f32 %v911, %v518
        %v920 = vadd.f32 %v912, %v519
        %v921 = vadd.f32 %v913, %v520
        %vm922 = vcmask 130048
        %v923 = vsel %vm922, %v914, -inf
        %924 = vmax.xlane.f32.xlu0 %v923
        %v925 = vpop.xlane.xlu0 %924
        %v926 = vsel %vm922, %v915, -inf
        %927 = vmax.xlane.f32.xlu0 %v926
        %v928 = vpop.xlane.xlu0 %927
        %v929 = vsel %vm922, %v916, -inf
        %930 = vmax.xlane.f32.xlu0 %v929
        %v931 = vpop.xlane.xlu0 %930
        %v932 = vsel %vm922, %v917, -inf
        %933 = vmax.xlane.f32.xlu0 %v932
        %v934 = vpop.xlane.xlu0 %933
        %v935 = vsel %vm922, %v918, -inf
        %936 = vmax.xlane.f32.xlu0 %v935
        %v937 = vpop.xlane.xlu0 %936
        %v938 = vsel %vm922, %v919, -inf
        %939 = vmax.xlane.f32.xlu0 %v938
        %v940 = vpop.xlane.xlu0 %939
        %v941 = vsel %vm922, %v920, -inf
        %942 = vmax.xlane.f32.xlu0 %v941
        %v943 = vpop.xlane.xlu0 %942
        %v944 = vsel %vm922, %v921, -inf
        %945 = vmax.xlane.f32.xlu0 %v944
        %v946 = vpop.xlane.xlu0 %945
        %v947 = vsub.f32 %v914, %v925
        %v948 = vsub.f32 %v915, %v928
        %v949 = vsub.f32 %v916, %v931
        %v950 = vsub.f32 %v917, %v934
        %v951 = vsub.f32 %v918, %v937
        %v952 = vsub.f32 %v919, %v940
        %v953 = vsub.f32 %v920, %v943
        %v954 = vsub.f32 %v921, %v946
        %v955 = vmul.f32 %v947, 1.442695
        %v956 = vpow.pop %v955
        %v957 = vmul.f32 %v948, 1.442695
        %v958 = vpow.pop %v957
        %v959 = vmul.f32 %v949, 1.442695
        %v960 = vpow.pop %v959
        %v961 = vmul.f32 %v950, 1.442695
        %v962 = vpow.pop %v961
        %v963 = vmul.f32 %v951, 1.442695
        %v964 = vpow.pop %v963
        %v965 = vmul.f32 %v952, 1.442695
        %v966 = vpow.pop %v965
        %v967 = vmul.f32 %v953, 1.442695
        %v968 = vpow.pop %v967
        %v969 = vmul.f32 %v954, 1.442695
        %v970 = vpow.pop %v969
        %v971 = vsel %vm922, %v956, 0.0
        %972 = vadd.xlane.f32.xlu0 %v971
        %v973 = vpop.xlane.xlu0 %972
        %v974 = vsel %vm922, %v958, 0.0
        %975 = vadd.xlane.f32.xlu0 %v974
        %v976 = vpop.xlane.xlu0 %975
        %v977 = vsel %vm922, %v960, 0.0
        %978 = vadd.xlane.f32.xlu0 %v977
        %v979 = vpop.xlane.xlu0 %978
        %v980 = vsel %vm922, %v962, 0.0
        %981 = vadd.xlane.f32.xlu0 %v980
        %v982 = vpop.xlane.xlu0 %981
        %v983 = vsel %vm922, %v964, 0.0
        %984 = vadd.xlane.f32.xlu0 %v983
        %v985 = vpop.xlane.xlu0 %984
        %v986 = vsel %vm922, %v966, 0.0
        %987 = vadd.xlane.f32.xlu0 %v986
        %v988 = vpop.xlane.xlu0 %987
        %v989 = vsel %vm922, %v968, 0.0
        %990 = vadd.xlane.f32.xlu0 %v989
        %v991 = vpop.xlane.xlu0 %990
        %v992 = vsel %vm922, %v970, 0.0
        %993 = vadd.xlane.f32.xlu0 %v992
        %v994 = vpop.xlane.xlu0 %993
        %v995 = vrcp.pop %v973
        %v996 = vrcp.pop %v976
        %v997 = vrcp.pop %v979
        %v998 = vrcp.pop %v982
        %v999 = vrcp.pop %v985
        %v1000 = vrcp.pop %v988
        %v1001 = vrcp.pop %v991
        %v1002 = vrcp.pop %v994
        %v1003 = vmul.f32 %v956, %v995
        %v1004 = vmul.f32 %v958, %v996
        %v1005 = vmul.f32 %v960, %v997
        %v1006 = vmul.f32 %v962, %v998
        %v1007 = vmul.f32 %v964, %v999
        %v1008 = vmul.f32 %v966, %v1000
        %v1009 = vmul.f32 %v968, %v1001
        %v1010 = vmul.f32 %v970, %v1002
        %v1011 = vpack.c.bf16 %v1004, %v1003
        %v1012 = vpack.c.bf16 %v1006, %v1005
        %v1013 = vpack.c.bf16 %v1008, %v1007
        %v1014 = vpack.c.bf16 %v1010, %v1009
        %v1016 = vsel %vm922, %v1011, 0
        %1018 = vmatprep.subr.bf16.mxu0 0
        %1019 = vmatpush1.bf16.msra.mxu0 %v701
        %1020 = vmatprep.subr.bf16.mxu0 0
        %1021 = vmatpush1.bf16.msra.mxu0 0
        %1022 = vmatprep.subr.bf16.mxu0 0
        %1023 = vmatpush1.bf16.msra.mxu0 0
        %1024 = vmatprep.subr.bf16.mxu0 0
        %1025 = vmatpush1.bf16.msra.mxu0 0
        %1026 = vmatprep.subr.bf16.mxu0 0
        %1027 = vmatpush1.bf16.msra.mxu0 0
        %1028 = vmatprep.subr.bf16.mxu0 0
        %1029 = vmatpush1.bf16.msra.mxu0 0
        %1030 = vmatprep.subr.bf16.mxu0 0
        %1031 = vmatpush1.bf16.msra.mxu0 0
        %1032 = vmatprep.subr.bf16.mxu0 0
        %1033 = vmatpush1.bf16.msra.mxu0 0
        %1034 = vmatprep.subr.bf16.mxu0 0
        %1035 = vmatpush1.bf16.msra.mxu0 0
        %1036 = vmatprep.subr.bf16.mxu0 0
        %1037 = vmatpush1.bf16.msra.mxu0 0
        %1038 = vmatprep.subr.bf16.mxu0 0
        %1039 = vmatpush1.bf16.msra.mxu0 0
        %1040 = vmatprep.subr.bf16.mxu0 0
        %1041 = vmatpush1.bf16.msra.mxu0 0
        %1042 = vmatprep.subr.bf16.mxu0 0
        %1043 = vmatpush1.bf16.msra.mxu0 0
        %1044 = vmatprep.subr.bf16.mxu0 0
        %1045 = vmatpush1.bf16.msra.mxu0 0
        %1046 = vmatprep.subr.bf16.mxu0 0
        %1047 = vmatpush1.bf16.msra.mxu0 0
        %1048 = vmatprep.subr.bf16.mxu0 0
        %1049 = vmatpush1.bf16.msra.mxu0 0
        %1050 = vmatprep.mubr.bf16.mxu0 0
        %1051 = vmatmul.mubr.bf16.gmra.mrb[0].mxu0 %v1016
        %v1052 = vpop.f32.mrb[0].mxu0
        %v1053 = vadd.f32 0.0, %v1052
        %v1054 = vpop.f32.mrb[0].mxu0
        %v1055 = vpop.f32.mrb[0].mxu0
        %v1056 = vadd.f32 0.0, %v1055
        %v1057 = vpop.f32.mrb[0].mxu0
        %1058 = vdwg.mxu0
        %1060 = vrot.lane.b32.xlu0 %v701, 120
        %v1061 = vpop.permute.xlu0 %1060
        %v1064 = vsel %vm922, %v1012, 0
        %1066 = vmatprep.subr.bf16.mxu0 0
        %1067 = vmatpush1.bf16.msra.mxu0 %v1061
        %1068 = vmatprep.subr.bf16.mxu0 0
        %1069 = vmatpush1.bf16.msra.mxu0 0
        %1070 = vmatprep.subr.bf16.mxu0 0
        %1071 = vmatpush1.bf16.msra.mxu0 0
        %1072 = vmatprep.subr.bf16.mxu0 0
        %1073 = vmatpush1.bf16.msra.mxu0 0
        %1074 = vmatprep.subr.bf16.mxu0 0
        %1075 = vmatpush1.bf16.msra.mxu0 0
        %1076 = vmatprep.subr.bf16.mxu0 0
        %1077 = vmatpush1.bf16.msra.mxu0 0
        %1078 = vmatprep.subr.bf16.mxu0 0
        %1079 = vmatpush1.bf16.msra.mxu0 0
        %1080 = vmatprep.subr.bf16.mxu0 0
        %1081 = vmatpush1.bf16.msra.mxu0 0
        %1082 = vmatprep.subr.bf16.mxu0 0
        %1083 = vmatpush1.bf16.msra.mxu0 0
        %1084 = vmatprep.subr.bf16.mxu0 0
        %1085 = vmatpush1.bf16.msra.mxu0 0
        %1086 = vmatprep.subr.bf16.mxu0 0
        %1087 = vmatpush1.bf16.msra.mxu0 0
        %1088 = vmatprep.subr.bf16.mxu0 0
        %1089 = vmatpush1.bf16.msra.mxu0 0
        %1090 = vmatprep.subr.bf16.mxu0 0
        %1091 = vmatpush1.bf16.msra.mxu0 0
        %1092 = vmatprep.subr.bf16.mxu0 0
        %1093 = vmatpush1.bf16.msra.mxu0 0
        %1094 = vmatprep.subr.bf16.mxu0 0
        %1095 = vmatpush1.bf16.msra.mxu0 0
        %1096 = vmatprep.subr.bf16.mxu0 0
        %1097 = vmatpush1.bf16.msra.mxu0 0
        %1098 = vmatprep.mubr.bf16.mxu0 0
        %1099 = vmatmul.mubr.bf16.gmra.mrb[0].mxu0 %v1064
        %v1100 = vpop.f32.mrb[0].mxu0
        %v1101 = vadd.f32 0.0, %v1100
        %v1102 = vpop.f32.mrb[0].mxu0
        %v1103 = vpop.f32.mrb[0].mxu0
        %v1104 = vadd.f32 0.0, %v1103
        %v1105 = vpop.f32.mrb[0].mxu0
        %1106 = vdwg.mxu0
        %v1108 = vsel %vm705, %v1101, 0
        %v1111 = vsel %vm705, %v1104, 0
        %1113 = vmatprep.subr.mxu0 0.0
        %1114 = vmatpush1.msra.mxu0 %v523
        %1115 = vmatprep.subr.mxu0 0.0
        %1116 = vmatpush1.msra.mxu0 0.0
        %1117 = vmatprep.subr.mxu0 0.0
        %1118 = vmatpush1.msra.mxu0 0.0
        %1119 = vmatprep.subr.mxu0 0.0
        %1120 = vmatpush1.msra.mxu0 0.0
        %1121 = vmatprep.subr.mxu0 0.0
        %1122 = vmatpush1.msra.mxu0 0.0
        %1123 = vmatprep.subr.mxu0 0.0
        %1124 = vmatpush1.msra.mxu0 0.0
        %1125 = vmatprep.subr.mxu0 0.0
        %1126 = vmatpush1.msra.mxu0 0.0
        %1127 = vmatprep.subr.mxu0 0.0
        %1128 = vmatpush1.msra.mxu0 0.0
        %1129 = vmatprep.subr.mxu0 0.0
        %1130 = vmatpush1.msra.mxu0 0.0
        %1131 = vmatprep.subr.mxu0 0.0
        %1132 = vmatpush1.msra.mxu0 0.0
        %1133 = vmatprep.subr.mxu0 0.0
        %1134 = vmatpush1.msra.mxu0 0.0
        %1135 = vmatprep.subr.mxu0 0.0
        %1136 = vmatpush1.msra.mxu0 0.0
        %1137 = vmatprep.subr.mxu0 0.0
        %1138 = vmatpush1.msra.mxu0 0.0
        %1139 = vmatprep.subr.mxu0 0.0
        %1140 = vmatpush1.msra.mxu0 0.0
        %1141 = vmatprep.subr.mxu0 0.0
        %1142 = vmatpush1.msra.mxu0 0.0
        %1143 = vmatprep.subr.mxu0 0.0
        %1144 = vmatpush1.msra.mxu0 0.0
        %1145 = vmatprep.subr.mxu0 0.0
        %1146 = vmatpush1.msra.mxu0 0.0
        %1147 = vmatprep.subr.mxu0 0.0
        %1148 = vmatpush1.msra.mxu0 0.0
        %1149 = vmatprep.subr.mxu0 0.0
        %1150 = vmatpush1.msra.mxu0 0.0
        %1151 = vmatprep.subr.mxu0 0.0
        %1152 = vmatpush1.msra.mxu0 0.0
        %1153 = vmatprep.subr.mxu0 0.0
        %1154 = vmatpush1.msra.mxu0 0.0
        %1155 = vmatprep.subr.mxu0 0.0
        %1156 = vmatpush1.msra.mxu0 0.0
        %1157 = vmatprep.subr.mxu0 0.0
        %1158 = vmatpush1.msra.mxu0 0.0
        %1159 = vmatprep.subr.mxu0 0.0
        %1160 = vmatpush1.msra.mxu0 0.0
        %1161 = vmatprep.subr.mxu0 0.0
        %1162 = vmatpush1.msra.mxu0 0.0
        %1163 = vmatprep.subr.mxu0 0.0
        %1164 = vmatpush1.msra.mxu0 0.0
        %1165 = vmatprep.subr.mxu0 0.0
        %1166 = vmatpush1.msra.mxu0 0.0
        %1167 = vmatprep.subr.mxu0 0.0
        %1168 = vmatpush1.msra.mxu0 0.0
        %1169 = vmatprep.subr.mxu0 0.0
        %1170 = vmatpush1.msra.mxu0 0.0
        %1171 = vmatprep.subr.mxu0 0.0
        %1172 = vmatpush1.msra.mxu0 0.0
        %1173 = vmatprep.subr.mxu0 0.0
        %1174 = vmatpush1.msra.mxu0 0.0
        %1175 = vmatprep.subr.mxu0 0.0
        %1176 = vmatpush1.msra.mxu0 0.0
        %1177 = vmatprep.mubr.f32.mxu0 0.0
        %1178 = vmatmul.mubr.f32.gmra.mrb[0].mxu0 %v1108
        %v1179 = vpop.f32.mrb[0].mxu0
        %v1180 = vadd.f32 0.0, %v1179
        %v1181 = vpop.f32.mrb[0].mxu0
        %1182 = vmatprep.mubr.f32.mxu0 0.0
        %1183 = vmatmul.mubr.f32.gmra.mrb[0].mxu0 %v1111
        %v1184 = vpop.f32.mrb[0].mxu0
        %v1185 = vadd.f32 0.0, %v1184
        %v1186 = vpop.f32.mrb[0].mxu0
        %1187 = vdwg.mxu0
        %v1189 = vsel %vm705, %v1053, 0
        %v1192 = vsel %vm705, %v1056, 0
        %1194 = vmatprep.subr.mxu0 0.0
        %1195 = vmatpush1.msra.mxu0 %v522
        %1196 = vmatprep.subr.mxu0 0.0
        %1197 = vmatpush1.msra.mxu0 0.0
        %1198 = vmatprep.subr.mxu0 0.0
        %1199 = vmatpush1.msra.mxu0 0.0
        %1200 = vmatprep.subr.mxu0 0.0
        %1201 = vmatpush1.msra.mxu0 0.0
        %1202 = vmatprep.subr.mxu0 0.0
        %1203 = vmatpush1.msra.mxu0 0.0
        %1204 = vmatprep.subr.mxu0 0.0
        %1205 = vmatpush1.msra.mxu0 0.0
        %1206 = vmatprep.subr.mxu0 0.0
        %1207 = vmatpush1.msra.mxu0 0.0
        %1208 = vmatprep.subr.mxu0 0.0
        %1209 = vmatpush1.msra.mxu0 0.0
        %1210 = vmatprep.subr.mxu0 0.0
        %1211 = vmatpush1.msra.mxu0 0.0
        %1212 = vmatprep.subr.mxu0 0.0
        %1213 = vmatpush1.msra.mxu0 0.0
        %1214 = vmatprep.subr.mxu0 0.0
        %1215 = vmatpush1.msra.mxu0 0.0
        %1216 = vmatprep.subr.mxu0 0.0
        %1217 = vmatpush1.msra.mxu0 0.0
        %1218 = vmatprep.subr.mxu0 0.0
        %1219 = vmatpush1.msra.mxu0 0.0
        %1220 = vmatprep.subr.mxu0 0.0
        %1221 = vmatpush1.msra.mxu0 0.0
        %1222 = vmatprep.subr.mxu0 0.0
        %1223 = vmatpush1.msra.mxu0 0.0
        %1224 = vmatprep.subr.mxu0 0.0
        %1225 = vmatpush1.msra.mxu0 0.0
        %1226 = vmatprep.subr.mxu0 0.0
        %1227 = vmatpush1.msra.mxu0 0.0
        %1228 = vmatprep.subr.mxu0 0.0
        %1229 = vmatpush1.msra.mxu0 0.0
        %1230 = vmatprep.subr.mxu0 0.0
        %1231 = vmatpush1.msra.mxu0 0.0
        %1232 = vmatprep.subr.mxu0 0.0
        %1233 = vmatpush1.msra.mxu0 0.0
        %1234 = vmatprep.subr.mxu0 0.0
        %1235 = vmatpush1.msra.mxu0 0.0
        %1236 = vmatprep.subr.mxu0 0.0
        %1237 = vmatpush1.msra.mxu0 0.0
        %1238 = vmatprep.subr.mxu0 0.0
        %1239 = vmatpush1.msra.mxu0 0.0
        %1240 = vmatprep.subr.mxu0 0.0
        %1241 = vmatpush1.msra.mxu0 0.0
        %1242 = vmatprep.subr.mxu0 0.0
        %1243 = vmatpush1.msra.mxu0 0.0
        %1244 = vmatprep.subr.mxu0 0.0
        %1245 = vmatpush1.msra.mxu0 0.0
        %1246 = vmatprep.subr.mxu0 0.0
        %1247 = vmatpush1.msra.mxu0 0.0
        %1248 = vmatprep.subr.mxu0 0.0
        %1249 = vmatpush1.msra.mxu0 0.0
        %1250 = vmatprep.subr.mxu0 0.0
        %1251 = vmatpush1.msra.mxu0 0.0
        %1252 = vmatprep.subr.mxu0 0.0
        %1253 = vmatpush1.msra.mxu0 0.0
        %1254 = vmatprep.subr.mxu0 0.0
        %1255 = vmatpush1.msra.mxu0 0.0
        %1256 = vmatprep.subr.mxu0 0.0
        %1257 = vmatpush1.msra.mxu0 0.0
        %1258 = vmatprep.mubr.f32.mxu0 0.0
        %1259 = vmatmul.mubr.f32.gmra.mrb[0].mxu0 %v1189
        %v1260 = vpop.f32.mrb[0].mxu0
        %v1261 = vadd.f32 %v1180, %v1260
        %v1262 = vpop.f32.mrb[0].mxu0
        %1263 = vmatprep.mubr.f32.mxu0 0.0
        %1264 = vmatmul.mubr.f32.gmra.mrb[0].mxu0 %v1192
        %v1265 = vpop.f32.mrb[0].mxu0
        %v1266 = vadd.f32 %v1185, %v1265
        %v1267 = vpop.f32.mrb[0].mxu0
        %1268 = vdwg.mxu0
        %1269 = vrot.lane.b32.xlu0 %v701, 112
        %v1270 = vpop.permute.xlu0 %1269
        %v1273 = vsel %vm922, %v1013, 0
        %1275 = vmatprep.subr.bf16.mxu0 0
        %1276 = vmatpush1.bf16.msra.mxu0 %v1270
        %1277 = vmatprep.subr.bf16.mxu0 0
        %1278 = vmatpush1.bf16.msra.mxu0 0
        %1279 = vmatprep.subr.bf16.mxu0 0
        %1280 = vmatpush1.bf16.msra.mxu0 0
        %1281 = vmatprep.subr.bf16.mxu0 0
        %1282 = vmatpush1.bf16.msra.mxu0 0
        %1283 = vmatprep.subr.bf16.mxu0 0
        %1284 = vmatpush1.bf16.msra.mxu0 0
        %1285 = vmatprep.subr.bf16.mxu0 0
        %1286 = vmatpush1.bf16.msra.mxu0 0
        %1287 = vmatprep.subr.bf16.mxu0 0
        %1288 = vmatpush1.bf16.msra.mxu0 0
        %1289 = vmatprep.subr.bf16.mxu0 0
        %1290 = vmatpush1.bf16.msra.mxu0 0
        %1291 = vmatprep.subr.bf16.mxu0 0
        %1292 = vmatpush1.bf16.msra.mxu0 0
        %1293 = vmatprep.subr.bf16.mxu0 0
        %1294 = vmatpush1.bf16.msra.mxu0 0
        %1295 = vmatprep.subr.bf16.mxu0 0
        %1296 = vmatpush1.bf16.msra.mxu0 0
        %1297 = vmatprep.subr.bf16.mxu0 0
        %1298 = vmatpush1.bf16.msra.mxu0 0
        %1299 = vmatprep.subr.bf16.mxu0 0
        %1300 = vmatpush1.bf16.msra.mxu0 0
        %1301 = vmatprep.subr.bf16.mxu0 0
        %1302 = vmatpush1.bf16.msra.mxu0 0
        %1303 = vmatprep.subr.bf16.mxu0 0
        %1304 = vmatpush1.bf16.msra.mxu0 0
        %1305 = vmatprep.subr.bf16.mxu0 0
        %1306 = vmatpush1.bf16.msra.mxu0 0
        %1307 = vmatprep.mubr.bf16.mxu0 0
        %1308 = vmatmul.mubr.bf16.gmra.mrb[0].mxu0 %v1273
        %v1309 = vpop.f32.mrb[0].mxu0
        %v1310 = vadd.f32 0.0, %v1309
        %v1311 = vpop.f32.mrb[0].mxu0
        %v1312 = vpop.f32.mrb[0].mxu0
        %v1313 = vadd.f32 0.0, %v1312
        %v1314 = vpop.f32.mrb[0].mxu0
        %1315 = vdwg.mxu0
        %v1317 = vsel %vm705, %v1310, 0
        %v1320 = vsel %vm705, %v1313, 0
        %1322 = vmatprep.subr.mxu0 0.0
        %1323 = vmatpush1.msra.mxu0 %v524
        %1324 = vmatprep.subr.mxu0 0.0
        %1325 = vmatpush1.msra.mxu0 0.0
        %1326 = vmatprep.subr.mxu0 0.0
        %1327 = vmatpush1.msra.mxu0 0.0
        %1328 = vmatprep.subr.mxu0 0.0
        %1329 = vmatpush1.msra.mxu0 0.0
        %1330 = vmatprep.subr.mxu0 0.0
        %1331 = vmatpush1.msra.mxu0 0.0
        %1332 = vmatprep.subr.mxu0 0.0
        %1333 = vmatpush1.msra.mxu0 0.0
        %1334 = vmatprep.subr.mxu0 0.0
        %1335 = vmatpush1.msra.mxu0 0.0
        %1336 = vmatprep.subr.mxu0 0.0
        %1337 = vmatpush1.msra.mxu0 0.0
        %1338 = vmatprep.subr.mxu0 0.0
        %1339 = vmatpush1.msra.mxu0 0.0
        %1340 = vmatprep.subr.mxu0 0.0
        %1341 = vmatpush1.msra.mxu0 0.0
        %1342 = vmatprep.subr.mxu0 0.0
        %1343 = vmatpush1.msra.mxu0 0.0
        %1344 = vmatprep.subr.mxu0 0.0
        %1345 = vmatpush1.msra.mxu0 0.0
        %1346 = vmatprep.subr.mxu0 0.0
        %1347 = vmatpush1.msra.mxu0 0.0
        %1348 = vmatprep.subr.mxu0 0.0
        %1349 = vmatpush1.msra.mxu0 0.0
        %1350 = vmatprep.subr.mxu0 0.0
        %1351 = vmatpush1.msra.mxu0 0.0
        %1352 = vmatprep.subr.mxu0 0.0
        %1353 = vmatpush1.msra.mxu0 0.0
        %1354 = vmatprep.subr.mxu0 0.0
        %1355 = vmatpush1.msra.mxu0 0.0
        %1356 = vmatprep.subr.mxu0 0.0
        %1357 = vmatpush1.msra.mxu0 0.0
        %1358 = vmatprep.subr.mxu0 0.0
        %1359 = vmatpush1.msra.mxu0 0.0
        %1360 = vmatprep.subr.mxu0 0.0
        %1361 = vmatpush1.msra.mxu0 0.0
        %1362 = vmatprep.subr.mxu0 0.0
        %1363 = vmatpush1.msra.mxu0 0.0
        %1364 = vmatprep.subr.mxu0 0.0
        %1365 = vmatpush1.msra.mxu0 0.0
        %1366 = vmatprep.subr.mxu0 0.0
        %1367 = vmatpush1.msra.mxu0 0.0
        %1368 = vmatprep.subr.mxu0 0.0
        %1369 = vmatpush1.msra.mxu0 0.0
        %1370 = vmatprep.subr.mxu0 0.0
        %1371 = vmatpush1.msra.mxu0 0.0
        %1372 = vmatprep.subr.mxu0 0.0
        %1373 = vmatpush1.msra.mxu0 0.0
        %1374 = vmatprep.subr.mxu0 0.0
        %1375 = vmatpush1.msra.mxu0 0.0
        %1376 = vmatprep.subr.mxu0 0.0
        %1377 = vmatpush1.msra.mxu0 0.0
        %1378 = vmatprep.subr.mxu0 0.0
        %1379 = vmatpush1.msra.mxu0 0.0
        %1380 = vmatprep.subr.mxu0 0.0
        %1381 = vmatpush1.msra.mxu0 0.0
        %1382 = vmatprep.subr.mxu0 0.0
        %1383 = vmatpush1.msra.mxu0 0.0
        %1384 = vmatprep.subr.mxu0 0.0
        %1385 = vmatpush1.msra.mxu0 0.0
        %1386 = vmatprep.mubr.f32.mxu0 0.0
        %1387 = vmatmul.mubr.f32.gmra.mrb[0].mxu0 %v1317
        %v1388 = vpop.f32.mrb[0].mxu0
        %v1389 = vadd.f32 0.0, %v1388
        %v1390 = vpop.f32.mrb[0].mxu0
        %1391 = vmatprep.mubr.f32.mxu0 0.0
        %1392 = vmatmul.mubr.f32.gmra.mrb[0].mxu0 %v1320
        %v1393 = vpop.f32.mrb[0].mxu0
        %v1394 = vadd.f32 0.0, %v1393
        %v1395 = vpop.f32.mrb[0].mxu0
        %1396 = vdwg.mxu0
        %v1397 = vadd.f32 %v1261, %v1389
        %v1398 = vadd.f32 %v1266, %v1394
        %1399 = vrot.lane.b32.xlu0 %v701, 104
        %v1400 = vpop.permute.xlu0 %1399
        %v1403 = vsel %vm922, %v1014, 0
        %1405 = vmatprep.subr.bf16.mxu0 0
        %1406 = vmatpush1.bf16.msra.mxu0 %v1400
        %1407 = vmatprep.subr.bf16.mxu0 0
        %1408 = vmatpush1.bf16.msra.mxu0 0
        %1409 = vmatprep.subr.bf16.mxu0 0
        %1410 = vmatpush1.bf16.msra.mxu0 0
        %1411 = vmatprep.subr.bf16.mxu0 0
        %1412 = vmatpush1.bf16.msra.mxu0 0
        %1413 = vmatprep.subr.bf16.mxu0 0
        %1414 = vmatpush1.bf16.msra.mxu0 0
        %1415 = vmatprep.subr.bf16.mxu0 0
        %1416 = vmatpush1.bf16.msra.mxu0 0
        %1417 = vmatprep.subr.bf16.mxu0 0
        %1418 = vmatpush1.bf16.msra.mxu0 0
        %1419 = vmatprep.subr.bf16.mxu0 0
        %1420 = vmatpush1.bf16.msra.mxu0 0
        %1421 = vmatprep.subr.bf16.mxu0 0
        %1422 = vmatpush1.bf16.msra.mxu0 0
        %1423 = vmatprep.subr.bf16.mxu0 0
        %1424 = vmatpush1.bf16.msra.mxu0 0
        %1425 = vmatprep.subr.bf16.mxu0 0
        %1426 = vmatpush1.bf16.msra.mxu0 0
        %1427 = vmatprep.subr.bf16.mxu0 0
        %1428 = vmatpush1.bf16.msra.mxu0 0
        %1429 = vmatprep.subr.bf16.mxu0 0
        %1430 = vmatpush1.bf16.msra.mxu0 0
        %1431 = vmatprep.subr.bf16.mxu0 0
        %1432 = vmatpush1.bf16.msra.mxu0 0
        %1433 = vmatprep.subr.bf16.mxu0 0
        %1434 = vmatpush1.bf16.msra.mxu0 0
        %1435 = vmatprep.subr.bf16.mxu0 0
        %1436 = vmatpush1.bf16.msra.mxu0 0
        %1437 = vmatprep.mubr.bf16.mxu0 0
        %1438 = vmatmul.mubr.bf16.gmra.mrb[0].mxu0 %v1403
        %v1439 = vpop.f32.mrb[0].mxu0
        %v1440 = vadd.f32 0.0, %v1439
        %v1441 = vpop.f32.mrb[0].mxu0
        %v1442 = vpop.f32.mrb[0].mxu0
        %v1443 = vadd.f32 0.0, %v1442
        %v1444 = vpop.f32.mrb[0].mxu0
        %1445 = vdwg.mxu0
        %v1447 = vsel %vm705, %v1440, 0
        %v1450 = vsel %vm705, %v1443, 0
        %1452 = vmatprep.subr.mxu0 0.0
        %1453 = vmatpush1.msra.mxu0 %v525
        %1454 = vmatprep.subr.mxu0 0.0
        %1455 = vmatpush1.msra.mxu0 0.0
        %1456 = vmatprep.subr.mxu0 0.0
        %1457 = vmatpush1.msra.mxu0 0.0
        %1458 = vmatprep.subr.mxu0 0.0
        %1459 = vmatpush1.msra.mxu0 0.0
        %1460 = vmatprep.subr.mxu0 0.0
        %1461 = vmatpush1.msra.mxu0 0.0
        %1462 = vmatprep.subr.mxu0 0.0
        %1463 = vmatpush1.msra.mxu0 0.0
        %1464 = vmatprep.subr.mxu0 0.0
        %1465 = vmatpush1.msra.mxu0 0.0
        %1466 = vmatprep.subr.mxu0 0.0
        %1467 = vmatpush1.msra.mxu0 0.0
        %1468 = vmatprep.subr.mxu0 0.0
        %1469 = vmatpush1.msra.mxu0 0.0
        %1470 = vmatprep.subr.mxu0 0.0
        %1471 = vmatpush1.msra.mxu0 0.0
        %1472 = vmatprep.subr.mxu0 0.0
        %1473 = vmatpush1.msra.mxu0 0.0
        %1474 = vmatprep.subr.mxu0 0.0
        %1475 = vmatpush1.msra.mxu0 0.0
        %1476 = vmatprep.subr.mxu0 0.0
        %1477 = vmatpush1.msra.mxu0 0.0
        %1478 = vmatprep.subr.mxu0 0.0
        %1479 = vmatpush1.msra.mxu0 0.0
        %1480 = vmatprep.subr.mxu0 0.0
        %1481 = vmatpush1.msra.mxu0 0.0
        %1482 = vmatprep.subr.mxu0 0.0
        %1483 = vmatpush1.msra.mxu0 0.0
        %1484 = vmatprep.subr.mxu0 0.0
        %1485 = vmatpush1.msra.mxu0 0.0
        %1486 = vmatprep.subr.mxu0 0.0
        %1487 = vmatpush1.msra.mxu0 0.0
        %1488 = vmatprep.subr.mxu0 0.0
        %1489 = vmatpush1.msra.mxu0 0.0
        %1490 = vmatprep.subr.mxu0 0.0
        %1491 = vmatpush1.msra.mxu0 0.0
        %1492 = vmatprep.subr.mxu0 0.0
        %1493 = vmatpush1.msra.mxu0 0.0
        %1494 = vmatprep.subr.mxu0 0.0
        %1495 = vmatpush1.msra.mxu0 0.0
        %1496 = vmatprep.subr.mxu0 0.0
        %1497 = vmatpush1.msra.mxu0 0.0
        %1498 = vmatprep.subr.mxu0 0.0
        %1499 = vmatpush1.msra.mxu0 0.0
        %1500 = vmatprep.subr.mxu0 0.0
        %1501 = vmatpush1.msra.mxu0 0.0
        %1502 = vmatprep.subr.mxu0 0.0
        %1503 = vmatpush1.msra.mxu0 0.0
        %1504 = vmatprep.subr.mxu0 0.0
        %1505 = vmatpush1.msra.mxu0 0.0
        %1506 = vmatprep.subr.mxu0 0.0
        %1507 = vmatpush1.msra.mxu0 0.0
        %1508 = vmatprep.subr.mxu0 0.0
        %1509 = vmatpush1.msra.mxu0 0.0
        %1510 = vmatprep.subr.mxu0 0.0
        %1511 = vmatpush1.msra.mxu0 0.0
        %1512 = vmatprep.subr.mxu0 0.0
        %1513 = vmatpush1.msra.mxu0 0.0
        %1514 = vmatprep.subr.mxu0 0.0
        %1515 = vmatpush1.msra.mxu0 0.0
        %1516 = vmatprep.mubr.f32.mxu0 0.0
        %1517 = vmatmul.mubr.f32.gmra.mrb[0].mxu0 %v1447
        %v1518 = vpop.f32.mrb[0].mxu0
        %v1519 = vadd.f32 0.0, %v1518
        %v1520 = vpop.f32.mrb[0].mxu0
        %1521 = vmatprep.mubr.f32.mxu0 0.0
        %1522 = vmatmul.mubr.f32.gmra.mrb[0].mxu0 %v1450
        %v1523 = vpop.f32.mrb[0].mxu0
        %v1524 = vadd.f32 0.0, %v1523
        %v1525 = vpop.f32.mrb[0].mxu0
        %1526 = vdwg.mxu0
        %v1527 = vadd.f32 %v1397, %v1519
        %v1528 = vadd.f32 %v1398, %v1524
        %v1529 = vadd.f32 %v503, %v1527
        %v1530 = vadd.f32 %v506, %v1528
        %v1531 = vlaneseq
        %v1532 = vshrl.u32 %v1531, 7
        %v1533 = vsub.s32 4, %v1532
        %v1534 = vrot.slane %v521, %v1533
        %v1535 = vadd.f32 %v1529, %v1534
        %v1536 = vadd.f32 %v1530, %v1534
        %v1537 = vsel %vm526, %v1535, 0.0
        %1538 = vadd.xlane.f32.xlu0 %v1537
        %v1539 = vpop.xlane.xlu0 %1538
        %v1540 = vsel %vm526, %v1536, 0.0
        %1541 = vadd.xlane.f32.xlu0 %v1540
        %v1542 = vpop.xlane.xlu0 %1541
        %v1543 = vmul.f32 %v1539, %v533
        %v1544 = vmul.f32 %v1542, %v533
        %v1545 = vsub.f32 %v1535, %v1543
        %v1546 = vsub.f32 %v1536, %v1544
        %v1547 = vmul.f32 %v1545, %v1545
        %v1548 = vmul.f32 %v1546, %v1546
        %v1549 = vsel %vm526, %v1547, 0.0
        %1550 = vadd.xlane.f32.xlu0 %v1549
        %v1551 = vpop.xlane.xlu0 %1550
        %v1552 = vsel %vm526, %v1548, 0.0
        %1553 = vadd.xlane.f32.xlu0 %v1552
        %v1554 = vpop.xlane.xlu0 %1553
        %v1555 = vmul.f32 %v1551, %v533
        %v1556 = vmul.f32 %v1554, %v533
        %v1557 = vadd.f32 %v1555, 1e-05
        %v1558 = vadd.f32 %v1556, 1e-05
        %v1559 = vrsqrt.pop %v1557
        %v1560 = vrsqrt.pop %v1558
        %v1561 = vmul.f32 %v1545, %v1559
        %v1562 = vmul.f32 %v1546, %v1560
        %v1563 = vlaneseq
        %v1564 = vshrl.u32 %v1563, 7
        %v1565 = vsub.s32 2, %v1564
        %v1566 = vrot.slane %v521, %v1565
        %v1567 = vmul.f32 %v1561, %v1566
        %v1568 = vmul.f32 %v1562, %v1566
        %v1569 = vlaneseq
        %v1570 = vshrl.u32 %v1569, 7
        %v1571 = vsub.s32 3, %v1570
        %v1572 = vrot.slane %v521, %v1571
        %v1573 = vadd.f32 %v1567, %v1572
        %v1574 = vadd.f32 %v1568, %v1572
        %v1575 = vpack.c.bf16 %v1574, %v1573
        %v1576 = vld [vmem:[%s4] sm:$0xf]
        %v1577 = vld [vmem:[%s4 + $0x4] sm:$0xf]
        %v1578 = vld [vmem:[%s4 + $0x8] sm:$0xf]
        %v1579 = vld [vmem:[%s4 + $0xc] sm:$0xf]
        %v1580 = vlaneseq
        %v1581 = vshrl.u32 %v1580, 7
        %v1582 = vsub.s32 6, %v1581
        %v1583 = vrot.slane %v521, %v1582
        %v1588 = vunpack.c.l.b16 %v1576
        %v1589 = vunpack.c.l.b16 %v1577
        %v1590 = vunpack.c.l.b16 %v1578
        %v1591 = vunpack.c.l.b16 %v1579
        %v1592 = vpack.c.b16 %v1589, %v1588
        %v1593 = vpack.c.b16 %v1591, %v1590
        %v1597 = vsel %vm526, %v1575, 0
        %1599 = vmatprep.subr.bf16.mxu0 0
        %1600 = vmatpush1.bf16.msra.mxu0 %v1592
        %1601 = vmatprep.subr.bf16.mxu0 0
        %1602 = vmatpush1.bf16.msra.mxu0 %v1593
        %1603 = vmatprep.subr.bf16.mxu0 0
        %1604 = vmatpush1.bf16.msra.mxu0 0
        %1605 = vmatprep.subr.bf16.mxu0 0
        %1606 = vmatpush1.bf16.msra.mxu0 0
        %1607 = vmatprep.subr.bf16.mxu0 0
        %1608 = vmatpush1.bf16.msra.mxu0 0
        %1609 = vmatprep.subr.bf16.mxu0 0
        %1610 = vmatpush1.bf16.msra.mxu0 0
        %1611 = vmatprep.subr.bf16.mxu0 0
        %1612 = vmatpush1.bf16.msra.mxu0 0
        %1613 = vmatprep.subr.bf16.mxu0 0
        %1614 = vmatpush1.bf16.msra.mxu0 0
        %1615 = vmatprep.subr.bf16.mxu0 0
        %1616 = vmatpush1.bf16.msra.mxu0 0
        %1617 = vmatprep.subr.bf16.mxu0 0
        %1618 = vmatpush1.bf16.msra.mxu0 0
        %1619 = vmatprep.subr.bf16.mxu0 0
        %1620 = vmatpush1.bf16.msra.mxu0 0
        %1621 = vmatprep.subr.bf16.mxu0 0
        %1622 = vmatpush1.bf16.msra.mxu0 0
        %1623 = vmatprep.subr.bf16.mxu0 0
        %1624 = vmatpush1.bf16.msra.mxu0 0
        %1625 = vmatprep.subr.bf16.mxu0 0
        %1626 = vmatpush1.bf16.msra.mxu0 0
        %1627 = vmatprep.subr.bf16.mxu0 0
        %1628 = vmatpush1.bf16.msra.mxu0 0
        %1629 = vmatprep.subr.bf16.mxu0 0
        %1630 = vmatpush1.bf16.msra.mxu0 0
        %1631 = vmatprep.mubr.bf16.mxu0 0
        %1632 = vmatmul.mubr.bf16.gmra.mrb[0].mxu0 %v1597
        %v1633 = vpop.f32.mrb[0].mxu0
        %v1634 = vadd.f32 %v1583, %v1633
        %v1635 = vpop.f32.mrb[0].mxu0
        %v1636 = vpop.f32.mrb[0].mxu0
        %v1637 = vadd.f32 %v1583, %v1636
        %v1638 = vpop.f32.mrb[0].mxu0
        %1639 = vdwg.mxu0
        %v1640 = vmax.f32 %v1634, 0.0
        %v1641 = vmax.f32 %v1637, 0.0
        %v1642 = vpack.c.bf16 %v1641, %v1640
        %v1643 = vld [vmem:[%s5] sm:$0xf]
        %v1644 = vld [vmem:[%s5 + $0x4] sm:$0xf]
        %v1645 = vld [vmem:[%s5 + $0x8] sm:$0xf]
        %v1646 = vld [vmem:[%s5 + $0xc] sm:$0xf]
        %v1647 = vld [vmem:[%s5 + $0x10] sm:$0xf]
        %v1648 = vld [vmem:[%s5 + $0x14] sm:$0xf]
        %v1649 = vld [vmem:[%s5 + $0x18] sm:$0xf]
        %v1650 = vld [vmem:[%s5 + $0x1c] sm:$0xf]
        %v1651 = vld [vmem:[%s5 + $0x20] sm:$0xf]
        %v1652 = vld [vmem:[%s5 + $0x24] sm:$0xf]
        %v1653 = vld [vmem:[%s5 + $0x28] sm:$0xf]
        %v1654 = vld [vmem:[%s5 + $0x2c] sm:$0xf]
        %v1655 = vld [vmem:[%s5 + $0x30] sm:$0xf]
        %v1656 = vld [vmem:[%s5 + $0x34] sm:$0xf]
        %v1657 = vld [vmem:[%s5 + $0x38] sm:$0xf]
        %v1658 = vld [vmem:[%s5 + $0x3c] sm:$0xf]
        %v1659 = vlaneseq
        %v1660 = vshrl.u32 %v1659, 7
        %v1661 = vsub.s32 5, %v1660
        %v1662 = vrot.slane %v521, %v1661
        %v1679 = vunpack.c.l.b16 %v1643
        %v1680 = vunpack.c.l.b16 %v1644
        %v1681 = vunpack.c.l.b16 %v1645
        %v1682 = vunpack.c.l.b16 %v1646
        %v1683 = vunpack.c.l.b16 %v1647
        %v1684 = vunpack.c.l.b16 %v1648
        %v1685 = vunpack.c.l.b16 %v1649
        %v1686 = vunpack.c.l.b16 %v1650
        %v1687 = vunpack.c.l.b16 %v1651
        %v1688 = vunpack.c.l.b16 %v1652
        %v1689 = vunpack.c.l.b16 %v1653
        %v1690 = vunpack.c.l.b16 %v1654
        %v1691 = vunpack.c.l.b16 %v1655
        %v1692 = vunpack.c.l.b16 %v1656
        %v1693 = vunpack.c.l.b16 %v1657
        %v1694 = vunpack.c.l.b16 %v1658
        %v1695 = vpack.c.b16 %v1680, %v1679
        %v1696 = vpack.c.b16 %v1682, %v1681
        %v1697 = vpack.c.b16 %v1684, %v1683
        %v1698 = vpack.c.b16 %v1686, %v1685
        %v1699 = vpack.c.b16 %v1688, %v1687
        %v1700 = vpack.c.b16 %v1690, %v1689
        %v1701 = vpack.c.b16 %v1692, %v1691
        %v1702 = vpack.c.b16 %v1694, %v1693
        %1711 = vmatprep.subr.bf16.mxu0 0
        %1712 = vmatpush1.bf16.msra.mxu0 %v1695
        %1713 = vmatprep.subr.bf16.mxu0 0
        %1714 = vmatpush1.bf16.msra.mxu0 %v1696
        %1715 = vmatprep.subr.bf16.mxu0 0
        %1716 = vmatpush1.bf16.msra.mxu0 %v1697
        %1717 = vmatprep.subr.bf16.mxu0 0
        %1718 = vmatpush1.bf16.msra.mxu0 %v1698
        %1719 = vmatprep.subr.bf16.mxu0 0
        %1720 = vmatpush1.bf16.msra.mxu0 %v1699
        %1721 = vmatprep.subr.bf16.mxu0 0
        %1722 = vmatpush1.bf16.msra.mxu0 %v1700
        %1723 = vmatprep.subr.bf16.mxu0 0
        %1724 = vmatpush1.bf16.msra.mxu0 %v1701
        %1725 = vmatprep.subr.bf16.mxu0 0
        %1726 = vmatpush1.bf16.msra.mxu0 %v1702
        %1727 = vmatprep.subr.bf16.mxu0 0
        %1728 = vmatpush1.bf16.msra.mxu0 0
        %1729 = vmatprep.subr.bf16.mxu0 0
        %1730 = vmatpush1.bf16.msra.mxu0 0
        %1731 = vmatprep.subr.bf16.mxu0 0
        %1732 = vmatpush1.bf16.msra.mxu0 0
        %1733 = vmatprep.subr.bf16.mxu0 0
        %1734 = vmatpush1.bf16.msra.mxu0 0
        %1735 = vmatprep.subr.bf16.mxu0 0
        %1736 = vmatpush1.bf16.msra.mxu0 0
        %1737 = vmatprep.subr.bf16.mxu0 0
        %1738 = vmatpush1.bf16.msra.mxu0 0
        %1739 = vmatprep.subr.bf16.mxu0 0
        %1740 = vmatpush1.bf16.msra.mxu0 0
        %1741 = vmatprep.subr.bf16.mxu0 0
        %1742 = vmatpush1.bf16.msra.mxu0 0
        %1743 = vmatprep.mubr.bf16.mxu0 0
        %1744 = vmatmul.mubr.bf16.gmra.mrb[0].mxu0 %v1642
        %v1745 = vpop.f32.mrb[0].mxu0
        %v1746 = vadd.f32 %v1662, %v1745
        %v1747 = vpop.f32.mrb[0].mxu0
        %v1748 = vpop.f32.mrb[0].mxu0
        %v1749 = vadd.f32 %v1662, %v1748
        %v1750 = vpop.f32.mrb[0].mxu0
        %1751 = vdwg.mxu0
        %v1752 = vadd.f32 %v1535, %v1746
        %v1753 = vadd.f32 %v1536, %v1749
        %s1754 = scalar_lea.vmem %s7, 8
        %v1755 = vld [vmem:[%s1754] sm:$0xff]
        %s1756 = scalar_lea.vmem %s3, 32
        %v1757 = vld [vmem:[%s1756] sm:$0xff]
        %v1758 = vld [vmem:[%s1756 + $0x8] sm:$0xff]
        %v1759 = vld [vmem:[%s1756 + $0x10] sm:$0xff]
        %v1760 = vld [vmem:[%s1756 + $0x18] sm:$0xff]
        %v1761 = vsel %vm526, %v1752, 0.0
        %1762 = vadd.xlane.f32.xlu0 %v1761
        %v1763 = vpop.xlane.xlu0 %1762
        %v1764 = vsel %vm526, %v1753, 0.0
        %1765 = vadd.xlane.f32.xlu0 %v1764
        %v1766 = vpop.xlane.xlu0 %1765
        %v1767 = vmul.f32 %v1763, %v533
        %v1768 = vmul.f32 %v1766, %v533
        %v1769 = vsub.f32 %v1752, %v1767
        %v1770 = vsub.f32 %v1753, %v1768
        %v1771 = vmul.f32 %v1769, %v1769
        %v1772 = vmul.f32 %v1770, %v1770
        %v1773 = vsel %vm526, %v1771, 0.0
        %1774 = vadd.xlane.f32.xlu0 %v1773
        %v1775 = vpop.xlane.xlu0 %1774
        %v1776 = vsel %vm526, %v1772, 0.0
        %1777 = vadd.xlane.f32.xlu0 %v1776
        %v1778 = vpop.xlane.xlu0 %1777
        %v1779 = vmul.f32 %v1775, %v533
        %v1780 = vmul.f32 %v1778, %v533
        %v1781 = vadd.f32 %v1779, 1e-05
        %v1782 = vadd.f32 %v1780, 1e-05
        %v1783 = vrsqrt.pop %v1781
        %v1784 = vrsqrt.pop %v1782
        %v1785 = vmul.f32 %v1769, %v1783
        %v1786 = vmul.f32 %v1770, %v1784
        %v1787 = vlaneseq
        %v1788 = vshrl.u32 %v1787, 7
        %v1789 = vsub.s32 0, %v1788
        %v1790 = vrot.slane %v1755, %v1789
        %v1791 = vmul.f32 %v1785, %v1790
        %v1792 = vmul.f32 %v1786, %v1790
        %v1793 = vlaneseq
        %v1794 = vshrl.u32 %v1793, 7
        %v1795 = vsub.s32 1, %v1794
        %v1796 = vrot.slane %v1755, %v1795
        %v1797 = vadd.f32 %v1791, %v1796
        %v1798 = vadd.f32 %v1792, %v1796
        %v1799 = vpack.c.bf16 %v1798, %v1797
        %s1800 = scalar_lea.vmem %s2, 48
        %v1801 = vld [vmem:[%s1800] sm:$0xff]
        %v1802 = vld [vmem:[%s1800 + $0x8] sm:$0xf]
        %v1803 = vld [vmem:[%s1800 + $0xc] sm:$0xff]
        %v1804 = vld [vmem:[%s1800 + $0x14] sm:$0xf]
        %v1805 = vld [vmem:[%s1800 + $0x18] sm:$0xff]
        %v1806 = vld [vmem:[%s1800 + $0x20] sm:$0xf]
        %v1807 = vld [vmem:[%s1800 + $0x24] sm:$0xff]
        %v1808 = vld [vmem:[%s1800 + $0x2c] sm:$0xf]
        %v1817 = vunpack.c.l.b16 %v1801
        %v1818 = vunpack.c.h.b16 %v1801
        %v1819 = vunpack.c.l.b16 %v1802
        %v1820 = vunpack.c.l.b16 %v1803
        %v1821 = vunpack.c.h.b16 %v1803
        %v1822 = vunpack.c.l.b16 %v1804
        %v1823 = vunpack.c.l.b16 %v1805
        %v1824 = vunpack.c.h.b16 %v1805
        %v1825 = vunpack.c.l.b16 %v1806
        %v1826 = vunpack.c.l.b16 %v1807
        %v1827 = vunpack.c.h.b16 %v1807
        %v1828 = vunpack.c.l.b16 %v1808
        %v1829 = vpack.c.b16 %v1820, %v1817
        %v1830 = vpack.c.b16 %v1821, %v1818
        %v1831 = vpack.c.b16 %v1822, %v1819
        %v1832 = vpack.c.b16 %v1826, %v1823
        %v1833 = vpack.c.b16 %v1827, %v1824
        %v1834 = vpack.c.b16 %v1828, %v1825
        %v1842 = vsel %vm526, %v1799, 0
        %1844 = vmatprep.subr.bf16.mxu0 %v1830
        %1845 = vmatpush1.bf16.msra.mxu0 %v1829
        %1846 = vmatprep.subr.bf16.mxu0 %v1833
        %1847 = vmatpush1.bf16.msra.mxu0 %v1832
        %1848 = vmatprep.subr.bf16.mxu0 0
        %1849 = vmatpush1.bf16.msra.mxu0 0
        %1850 = vmatprep.subr.bf16.mxu0 0
        %1851 = vmatpush1.bf16.msra.mxu0 0
        %1852 = vmatprep.subr.bf16.mxu0 0
        %1853 = vmatpush1.bf16.msra.mxu0 0
        %1854 = vmatprep.subr.bf16.mxu0 0
        %1855 = vmatpush1.bf16.msra.mxu0 0
        %1856 = vmatprep.subr.bf16.mxu0 0
        %1857 = vmatpush1.bf16.msra.mxu0 0
        %1858 = vmatprep.subr.bf16.mxu0 0
        %1859 = vmatpush1.bf16.msra.mxu0 0
        %1860 = vmatprep.subr.bf16.mxu0 0
        %1861 = vmatpush1.bf16.msra.mxu0 0
        %1862 = vmatprep.subr.bf16.mxu0 0
        %1863 = vmatpush1.bf16.msra.mxu0 0
        %1864 = vmatprep.subr.bf16.mxu0 0
        %1865 = vmatpush1.bf16.msra.mxu0 0
        %1866 = vmatprep.subr.bf16.mxu0 0
        %1867 = vmatpush1.bf16.msra.mxu0 0
        %1868 = vmatprep.subr.bf16.mxu0 0
        %1869 = vmatpush1.bf16.msra.mxu0 0
        %1870 = vmatprep.subr.bf16.mxu0 0
        %1871 = vmatpush1.bf16.msra.mxu0 0
        %1872 = vmatprep.subr.bf16.mxu0 0
        %1873 = vmatpush1.bf16.msra.mxu0 0
        %1874 = vmatprep.subr.bf16.mxu0 0
        %1875 = vmatpush1.bf16.msra.mxu0 0
        %1876 = vmatprep.mubr.bf16.mxu0 0
        %1877 = vmatmul.mubr.bf16.gmra.mrb[0].mxu0 %v1842
        %v1878 = vpop.f32.mrb[0].mxu0
        %v1879 = vadd.f32 0.0, %v1878
        %v1880 = vpop.f32.mrb[0].mxu0
        %v1881 = vadd.f32 0.0, %v1880
        %v1882 = vpop.f32.mrb[0].mxu0
        %v1883 = vadd.f32 0.0, %v1882
        %v1884 = vpop.f32.mrb[0].mxu0
        %v1885 = vadd.f32 0.0, %v1884
        %1886 = vdwg.mxu0
        %1887 = vmatprep.subr.bf16.mxu0 0
        %1888 = vmatpush1.bf16.msra.mxu0 %v1831
        %1889 = vmatprep.subr.bf16.mxu0 0
        %1890 = vmatpush1.bf16.msra.mxu0 %v1834
        %1891 = vmatprep.subr.bf16.mxu0 0
        %1892 = vmatpush1.bf16.msra.mxu0 0
        %1893 = vmatprep.subr.bf16.mxu0 0
        %1894 = vmatpush1.bf16.msra.mxu0 0
        %1895 = vmatprep.subr.bf16.mxu0 0
        %1896 = vmatpush1.bf16.msra.mxu0 0
        %1897 = vmatprep.subr.bf16.mxu0 0
        %1898 = vmatpush1.bf16.msra.mxu0 0
        %1899 = vmatprep.subr.bf16.mxu0 0
        %1900 = vmatpush1.bf16.msra.mxu0 0
        %1901 = vmatprep.subr.bf16.mxu0 0
        %1902 = vmatpush1.bf16.msra.mxu0 0
        %1903 = vmatprep.subr.bf16.mxu0 0
        %1904 = vmatpush1.bf16.msra.mxu0 0
        %1905 = vmatprep.subr.bf16.mxu0 0
        %1906 = vmatpush1.bf16.msra.mxu0 0
        %1907 = vmatprep.subr.bf16.mxu0 0
        %1908 = vmatpush1.bf16.msra.mxu0 0
        %1909 = vmatprep.subr.bf16.mxu0 0
        %1910 = vmatpush1.bf16.msra.mxu0 0
        %1911 = vmatprep.subr.bf16.mxu0 0
        %1912 = vmatpush1.bf16.msra.mxu0 0
        %1913 = vmatprep.subr.bf16.mxu0 0
        %1914 = vmatpush1.bf16.msra.mxu0 0
        %1915 = vmatprep.subr.bf16.mxu0 0
        %1916 = vmatpush1.bf16.msra.mxu0 0
        %1917 = vmatprep.subr.bf16.mxu0 0
        %1918 = vmatpush1.bf16.msra.mxu0 0
        %1919 = vmatprep.mubr.bf16.mxu0 0
        %1920 = vmatmul.mubr.bf16.gmra.mrb[0].mxu0 %v1842
        %v1921 = vpop.f32.mrb[0].mxu0
        %v1922 = vadd.f32 0.0, %v1921
        %v1923 = vpop.f32.mrb[0].mxu0
        %v1924 = vpop.f32.mrb[0].mxu0
        %v1925 = vadd.f32 0.0, %v1924
        %v1926 = vpop.f32.mrb[0].mxu0
        %1927 = vdwg.mxu0
        %v1928 = vmul.f32 %v1879, %v509
        %v1929 = vmul.f32 %v1883, %v511
        %v1930 = vmul.f32 %v1881, %v510
        %v1931 = vmul.f32 %v1885, %v512
        %v1932 = vadd.f32 %v1928, %v1930
        %v1933 = vadd.f32 %v1929, %v1931
        %v1934 = vpack.c.bf16 %v1933, %v1932
        %v1935 = vpack.c.bf16 %v1925, %v1922
        %1937 = vrot.lane.b32.xlu0 %v1934, 96
        %v1938 = vpop.permute.xlu0 %1937
        %v1940 = vsel %vm705, %v1934, 0
        %v1943 = vsel %vm705, %v1938, 0
        %1945 = vmatprep.subr.bf16.mxu0 0
        %1946 = vmatpush1.bf16.xpose.msra.mxu0 %v1943
        %1947 = vmatprep.subr.bf16.mxu0 0
        %1948 = vmatpush1.bf16.xpose.msra.mxu0 0
        %1949 = vmatprep.subr.bf16.mxu0 0
        %1950 = vmatpush1.bf16.xpose.msra.mxu0 0
        %1951 = vmatprep.subr.bf16.mxu0 0
        %1952 = vmatpush1.bf16.xpose.msra.mxu0 0
        %1953 = vmatprep.subr.bf16.mxu0 0
        %1954 = vmatpush1.bf16.xpose.msra.mxu0 0
        %1955 = vmatprep.subr.bf16.mxu0 0
        %1956 = vmatpush1.bf16.xpose.msra.mxu0 0
        %1957 = vmatprep.subr.bf16.mxu0 0
        %1958 = vmatpush1.bf16.xpose.msra.mxu0 0
        %1959 = vmatprep.subr.bf16.mxu0 0
        %1960 = vmatpush1.bf16.xpose.msra.mxu0 0
        %1961 = vmatprep.subr.bf16.mxu0 0
        %1962 = vmatpush1.bf16.xpose.msra.mxu0 0
        %1963 = vmatprep.subr.bf16.mxu0 0
        %1964 = vmatpush1.bf16.xpose.msra.mxu0 0
        %1965 = vmatprep.subr.bf16.mxu0 0
        %1966 = vmatpush1.bf16.xpose.msra.mxu0 0
        %1967 = vmatprep.subr.bf16.mxu0 0
        %1968 = vmatpush1.bf16.xpose.msra.mxu0 0
        %1969 = vmatprep.subr.bf16.mxu0 0
        %1970 = vmatpush1.bf16.xpose.msra.mxu0 0
        %1971 = vmatprep.subr.bf16.mxu0 0
        %1972 = vmatpush1.bf16.xpose.msra.mxu0 0
        %1973 = vmatprep.subr.bf16.mxu0 0
        %1974 = vmatpush1.bf16.xpose.msra.mxu0 0
        %1975 = vmatprep.subr.bf16.mxu0 0
        %1976 = vmatpush1.bf16.xpose.msra.mxu0 0
        %1977 = vmatprep.mubr.bf16.mxu0 0
        %1978 = vmatmul.mubr.bf16.gmra.mrb[0].mxu0 %v1940
        %v1979 = vpop.f32.mrb[0].mxu0
        %v1980 = vadd.f32 0.0, %v1979
        %v1981 = vpop.f32.mrb[0].mxu0
        %v1982 = vpop.f32.mrb[0].mxu0
        %v1983 = vadd.f32 0.0, %v1982
        %v1984 = vpop.f32.mrb[0].mxu0
        %1985 = vdwg.mxu0
        %1986 = vrot.lane.b32.xlu0 %v1934, 120
        %v1987 = vpop.permute.xlu0 %1986
        %1988 = vrot.lane.b32.xlu0 %v1934, 88
        %v1989 = vpop.permute.xlu0 %1988
        %v1991 = vsel %vm705, %v1987, 0
        %v1994 = vsel %vm705, %v1989, 0
        %1996 = vmatprep.subr.bf16.mxu0 0
        %1997 = vmatpush1.bf16.xpose.msra.mxu0 %v1994
        %1998 = vmatprep.subr.bf16.mxu0 0
        %1999 = vmatpush1.bf16.xpose.msra.mxu0 0
        %2000 = vmatprep.subr.bf16.mxu0 0
        %2001 = vmatpush1.bf16.xpose.msra.mxu0 0
        %2002 = vmatprep.subr.bf16.mxu0 0
        %2003 = vmatpush1.bf16.xpose.msra.mxu0 0
        %2004 = vmatprep.subr.bf16.mxu0 0
        %2005 = vmatpush1.bf16.xpose.msra.mxu0 0
        %2006 = vmatprep.subr.bf16.mxu0 0
        %2007 = vmatpush1.bf16.xpose.msra.mxu0 0
        %2008 = vmatprep.subr.bf16.mxu0 0
        %2009 = vmatpush1.bf16.xpose.msra.mxu0 0
        %2010 = vmatprep.subr.bf16.mxu0 0
        %2011 = vmatpush1.bf16.xpose.msra.mxu0 0
        %2012 = vmatprep.subr.bf16.mxu0 0
        %2013 = vmatpush1.bf16.xpose.msra.mxu0 0
        %2014 = vmatprep.subr.bf16.mxu0 0
        %2015 = vmatpush1.bf16.xpose.msra.mxu0 0
        %2016 = vmatprep.subr.bf16.mxu0 0
        %2017 = vmatpush1.bf16.xpose.msra.mxu0 0
        %2018 = vmatprep.subr.bf16.mxu0 0
        %2019 = vmatpush1.bf16.xpose.msra.mxu0 0
        %2020 = vmatprep.subr.bf16.mxu0 0
        %2021 = vmatpush1.bf16.xpose.msra.mxu0 0
        %2022 = vmatprep.subr.bf16.mxu0 0
        %2023 = vmatpush1.bf16.xpose.msra.mxu0 0
        %2024 = vmatprep.subr.bf16.mxu0 0
        %2025 = vmatpush1.bf16.xpose.msra.mxu0 0
        %2026 = vmatprep.subr.bf16.mxu0 0
        %2027 = vmatpush1.bf16.xpose.msra.mxu0 0
        %2028 = vmatprep.mubr.bf16.mxu0 0
        %2029 = vmatmul.mubr.bf16.gmra.mrb[0].mxu0 %v1991
        %v2030 = vpop.f32.mrb[0].mxu0
        %v2031 = vadd.f32 0.0, %v2030
        %v2032 = vpop.f32.mrb[0].mxu0
        %v2033 = vpop.f32.mrb[0].mxu0
        %v2034 = vadd.f32 0.0, %v2033
        %v2035 = vpop.f32.mrb[0].mxu0
        %2036 = vdwg.mxu0
        %2037 = vrot.lane.b32.xlu0 %v1934, 112
        %v2038 = vpop.permute.xlu0 %2037
        %2039 = vrot.lane.b32.xlu0 %v1934, 80
        %v2040 = vpop.permute.xlu0 %2039
        %v2042 = vsel %vm705, %v2038, 0
        %v2045 = vsel %vm705, %v2040, 0
        %2047 = vmatprep.subr.bf16.mxu0 0
        %2048 = vmatpush1.bf16.xpose.msra.mxu0 %v2045
        %2049 = vmatprep.subr.bf16.mxu0 0
        %2050 = vmatpush1.bf16.xpose.msra.mxu0 0
        %2051 = vmatprep.subr.bf16.mxu0 0
        %2052 = vmatpush1.bf16.xpose.msra.mxu0 0
        %2053 = vmatprep.subr.bf16.mxu0 0
        %2054 = vmatpush1.bf16.xpose.msra.mxu0 0
        %2055 = vmatprep.subr.bf16.mxu0 0
        %2056 = vmatpush1.bf16.xpose.msra.mxu0 0
        %2057 = vmatprep.subr.bf16.mxu0 0
        %2058 = vmatpush1.bf16.xpose.msra.mxu0 0
        %2059 = vmatprep.subr.bf16.mxu0 0
        %2060 = vmatpush1.bf16.xpose.msra.mxu0 0
        %2061 = vmatprep.subr.bf16.mxu0 0
        %2062 = vmatpush1.bf16.xpose.msra.mxu0 0
        %2063 = vmatprep.subr.bf16.mxu0 0
        %2064 = vmatpush1.bf16.xpose.msra.mxu0 0
        %2065 = vmatprep.subr.bf16.mxu0 0
        %2066 = vmatpush1.bf16.xpose.msra.mxu0 0
        %2067 = vmatprep.subr.bf16.mxu0 0
        %2068 = vmatpush1.bf16.xpose.msra.mxu0 0
        %2069 = vmatprep.subr.bf16.mxu0 0
        %2070 = vmatpush1.bf16.xpose.msra.mxu0 0
        %2071 = vmatprep.subr.bf16.mxu0 0
        %2072 = vmatpush1.bf16.xpose.msra.mxu0 0
        %2073 = vmatprep.subr.bf16.mxu0 0
        %2074 = vmatpush1.bf16.xpose.msra.mxu0 0
        %2075 = vmatprep.subr.bf16.mxu0 0
        %2076 = vmatpush1.bf16.xpose.msra.mxu0 0
        %2077 = vmatprep.subr.bf16.mxu0 0
        %2078 = vmatpush1.bf16.xpose.msra.mxu0 0
        %2079 = vmatprep.mubr.bf16.mxu0 0
        %2080 = vmatmul.mubr.bf16.gmra.mrb[0].mxu0 %v2042
        %v2081 = vpop.f32.mrb[0].mxu0
        %v2082 = vadd.f32 0.0, %v2081
        %v2083 = vpop.f32.mrb[0].mxu0
        %v2084 = vpop.f32.mrb[0].mxu0
        %v2085 = vadd.f32 0.0, %v2084
        %v2086 = vpop.f32.mrb[0].mxu0
        %2087 = vdwg.mxu0
        %2088 = vrot.lane.b32.xlu0 %v1934, 104
        %v2089 = vpop.permute.xlu0 %2088
        %2090 = vrot.lane.b32.xlu0 %v1934, 72
        %v2091 = vpop.permute.xlu0 %2090
        %v2093 = vsel %vm705, %v2089, 0
        %v2096 = vsel %vm705, %v2091, 0
        %2098 = vmatprep.subr.bf16.mxu0 0
        %2099 = vmatpush1.bf16.xpose.msra.mxu0 %v2096
        %2100 = vmatprep.subr.bf16.mxu0 0
        %2101 = vmatpush1.bf16.xpose.msra.mxu0 0
        %2102 = vmatprep.subr.bf16.mxu0 0
        %2103 = vmatpush1.bf16.xpose.msra.mxu0 0
        %2104 = vmatprep.subr.bf16.mxu0 0
        %2105 = vmatpush1.bf16.xpose.msra.mxu0 0
        %2106 = vmatprep.subr.bf16.mxu0 0
        %2107 = vmatpush1.bf16.xpose.msra.mxu0 0
        %2108 = vmatprep.subr.bf16.mxu0 0
        %2109 = vmatpush1.bf16.xpose.msra.mxu0 0
        %2110 = vmatprep.subr.bf16.mxu0 0
        %2111 = vmatpush1.bf16.xpose.msra.mxu0 0
        %2112 = vmatprep.subr.bf16.mxu0 0
        %2113 = vmatpush1.bf16.xpose.msra.mxu0 0
        %2114 = vmatprep.subr.bf16.mxu0 0
        %2115 = vmatpush1.bf16.xpose.msra.mxu0 0
        %2116 = vmatprep.subr.bf16.mxu0 0
        %2117 = vmatpush1.bf16.xpose.msra.mxu0 0
        %2118 = vmatprep.subr.bf16.mxu0 0
        %2119 = vmatpush1.bf16.xpose.msra.mxu0 0
        %2120 = vmatprep.subr.bf16.mxu0 0
        %2121 = vmatpush1.bf16.xpose.msra.mxu0 0
        %2122 = vmatprep.subr.bf16.mxu0 0
        %2123 = vmatpush1.bf16.xpose.msra.mxu0 0
        %2124 = vmatprep.subr.bf16.mxu0 0
        %2125 = vmatpush1.bf16.xpose.msra.mxu0 0
        %2126 = vmatprep.subr.bf16.mxu0 0
        %2127 = vmatpush1.bf16.xpose.msra.mxu0 0
        %2128 = vmatprep.subr.bf16.mxu0 0
        %2129 = vmatpush1.bf16.xpose.msra.mxu0 0
        %2130 = vmatprep.mubr.bf16.mxu0 0
        %2131 = vmatmul.mubr.bf16.gmra.mrb[0].mxu0 %v2093
        %v2132 = vpop.f32.mrb[0].mxu0
        %v2133 = vadd.f32 0.0, %v2132
        %v2134 = vpop.f32.mrb[0].mxu0
        %v2135 = vpop.f32.mrb[0].mxu0
        %v2136 = vadd.f32 0.0, %v2135
        %v2137 = vpop.f32.mrb[0].mxu0
        %2138 = vdwg.mxu0
        %v2139 = vmul.f32 %v1980, 0.35355338
        %v2140 = vmul.f32 %v1983, 0.35355338
        %v2141 = vmul.f32 %v2031, 0.35355338
        %v2142 = vmul.f32 %v2034, 0.35355338
        %v2143 = vmul.f32 %v2082, 0.35355338
        %v2144 = vmul.f32 %v2085, 0.35355338
        %v2145 = vmul.f32 %v2133, 0.35355338
        %v2146 = vmul.f32 %v2136, 0.35355338
        %v2147 = vadd.f32 %v2139, %v513
        %v2148 = vadd.f32 %v2140, %v514
        %v2149 = vadd.f32 %v2141, %v515
        %v2150 = vadd.f32 %v2142, %v516
        %v2151 = vadd.f32 %v2143, %v517
        %v2152 = vadd.f32 %v2144, %v518
        %v2153 = vadd.f32 %v2145, %v519
        %v2154 = vadd.f32 %v2146, %v520
        %v2155 = vsel %vm922, %v2147, -inf
        %2156 = vmax.xlane.f32.xlu0 %v2155
        %v2157 = vpop.xlane.xlu0 %2156
        %v2158 = vsel %vm922, %v2148, -inf
        %2159 = vmax.xlane.f32.xlu0 %v2158
        %v2160 = vpop.xlane.xlu0 %2159
        %v2161 = vsel %vm922, %v2149, -inf
        %2162 = vmax.xlane.f32.xlu0 %v2161
        %v2163 = vpop.xlane.xlu0 %2162
        %v2164 = vsel %vm922, %v2150, -inf
        %2165 = vmax.xlane.f32.xlu0 %v2164
        %v2166 = vpop.xlane.xlu0 %2165
        %v2167 = vsel %vm922, %v2151, -inf
        %2168 = vmax.xlane.f32.xlu0 %v2167
        %v2169 = vpop.xlane.xlu0 %2168
        %v2170 = vsel %vm922, %v2152, -inf
        %2171 = vmax.xlane.f32.xlu0 %v2170
        %v2172 = vpop.xlane.xlu0 %2171
        %v2173 = vsel %vm922, %v2153, -inf
        %2174 = vmax.xlane.f32.xlu0 %v2173
        %v2175 = vpop.xlane.xlu0 %2174
        %v2176 = vsel %vm922, %v2154, -inf
        %2177 = vmax.xlane.f32.xlu0 %v2176
        %v2178 = vpop.xlane.xlu0 %2177
        %v2179 = vsub.f32 %v2147, %v2157
        %v2180 = vsub.f32 %v2148, %v2160
        %v2181 = vsub.f32 %v2149, %v2163
        %v2182 = vsub.f32 %v2150, %v2166
        %v2183 = vsub.f32 %v2151, %v2169
        %v2184 = vsub.f32 %v2152, %v2172
        %v2185 = vsub.f32 %v2153, %v2175
        %v2186 = vsub.f32 %v2154, %v2178
        %v2187 = vmul.f32 %v2179, 1.442695
        %v2188 = vpow.pop %v2187
        %v2189 = vmul.f32 %v2180, 1.442695
        %v2190 = vpow.pop %v2189
        %v2191 = vmul.f32 %v2181, 1.442695
        %v2192 = vpow.pop %v2191
        %v2193 = vmul.f32 %v2182, 1.442695
        %v2194 = vpow.pop %v2193
        %v2195 = vmul.f32 %v2183, 1.442695
        %v2196 = vpow.pop %v2195
        %v2197 = vmul.f32 %v2184, 1.442695
        %v2198 = vpow.pop %v2197
        %v2199 = vmul.f32 %v2185, 1.442695
        %v2200 = vpow.pop %v2199
        %v2201 = vmul.f32 %v2186, 1.442695
        %v2202 = vpow.pop %v2201
        %v2203 = vsel %vm922, %v2188, 0.0
        %2204 = vadd.xlane.f32.xlu0 %v2203
        %v2205 = vpop.xlane.xlu0 %2204
        %v2206 = vsel %vm922, %v2190, 0.0
        %2207 = vadd.xlane.f32.xlu0 %v2206
        %v2208 = vpop.xlane.xlu0 %2207
        %v2209 = vsel %vm922, %v2192, 0.0
        %2210 = vadd.xlane.f32.xlu0 %v2209
        %v2211 = vpop.xlane.xlu0 %2210
        %v2212 = vsel %vm922, %v2194, 0.0
        %2213 = vadd.xlane.f32.xlu0 %v2212
        %v2214 = vpop.xlane.xlu0 %2213
        %v2215 = vsel %vm922, %v2196, 0.0
        %2216 = vadd.xlane.f32.xlu0 %v2215
        %v2217 = vpop.xlane.xlu0 %2216
        %v2218 = vsel %vm922, %v2198, 0.0
        %2219 = vadd.xlane.f32.xlu0 %v2218
        %v2220 = vpop.xlane.xlu0 %2219
        %v2221 = vsel %vm922, %v2200, 0.0
        %2222 = vadd.xlane.f32.xlu0 %v2221
        %v2223 = vpop.xlane.xlu0 %2222
        %v2224 = vsel %vm922, %v2202, 0.0
        %2225 = vadd.xlane.f32.xlu0 %v2224
        %v2226 = vpop.xlane.xlu0 %2225
        %v2227 = vrcp.pop %v2205
        %v2228 = vrcp.pop %v2208
        %v2229 = vrcp.pop %v2211
        %v2230 = vrcp.pop %v2214
        %v2231 = vrcp.pop %v2217
        %v2232 = vrcp.pop %v2220
        %v2233 = vrcp.pop %v2223
        %v2234 = vrcp.pop %v2226
        %v2235 = vmul.f32 %v2188, %v2227
        %v2236 = vmul.f32 %v2190, %v2228
        %v2237 = vmul.f32 %v2192, %v2229
        %v2238 = vmul.f32 %v2194, %v2230
        %v2239 = vmul.f32 %v2196, %v2231
        %v2240 = vmul.f32 %v2198, %v2232
        %v2241 = vmul.f32 %v2200, %v2233
        %v2242 = vmul.f32 %v2202, %v2234
        %v2243 = vpack.c.bf16 %v2236, %v2235
        %v2244 = vpack.c.bf16 %v2238, %v2237
        %v2245 = vpack.c.bf16 %v2240, %v2239
        %v2246 = vpack.c.bf16 %v2242, %v2241
        %v2248 = vsel %vm922, %v2243, 0
        %2250 = vmatprep.subr.bf16.mxu0 0
        %2251 = vmatpush1.bf16.msra.mxu0 %v1935
        %2252 = vmatprep.subr.bf16.mxu0 0
        %2253 = vmatpush1.bf16.msra.mxu0 0
        %2254 = vmatprep.subr.bf16.mxu0 0
        %2255 = vmatpush1.bf16.msra.mxu0 0
        %2256 = vmatprep.subr.bf16.mxu0 0
        %2257 = vmatpush1.bf16.msra.mxu0 0
        %2258 = vmatprep.subr.bf16.mxu0 0
        %2259 = vmatpush1.bf16.msra.mxu0 0
        %2260 = vmatprep.subr.bf16.mxu0 0
        %2261 = vmatpush1.bf16.msra.mxu0 0
        %2262 = vmatprep.subr.bf16.mxu0 0
        %2263 = vmatpush1.bf16.msra.mxu0 0
        %2264 = vmatprep.subr.bf16.mxu0 0
        %2265 = vmatpush1.bf16.msra.mxu0 0
        %2266 = vmatprep.subr.bf16.mxu0 0
        %2267 = vmatpush1.bf16.msra.mxu0 0
        %2268 = vmatprep.subr.bf16.mxu0 0
        %2269 = vmatpush1.bf16.msra.mxu0 0
        %2270 = vmatprep.subr.bf16.mxu0 0
        %2271 = vmatpush1.bf16.msra.mxu0 0
        %2272 = vmatprep.subr.bf16.mxu0 0
        %2273 = vmatpush1.bf16.msra.mxu0 0
        %2274 = vmatprep.subr.bf16.mxu0 0
        %2275 = vmatpush1.bf16.msra.mxu0 0
        %2276 = vmatprep.subr.bf16.mxu0 0
        %2277 = vmatpush1.bf16.msra.mxu0 0
        %2278 = vmatprep.subr.bf16.mxu0 0
        %2279 = vmatpush1.bf16.msra.mxu0 0
        %2280 = vmatprep.subr.bf16.mxu0 0
        %2281 = vmatpush1.bf16.msra.mxu0 0
        %2282 = vmatprep.mubr.bf16.mxu0 0
        %2283 = vmatmul.mubr.bf16.gmra.mrb[0].mxu0 %v2248
        %v2284 = vpop.f32.mrb[0].mxu0
        %v2285 = vadd.f32 0.0, %v2284
        %v2286 = vpop.f32.mrb[0].mxu0
        %v2287 = vpop.f32.mrb[0].mxu0
        %v2288 = vadd.f32 0.0, %v2287
        %v2289 = vpop.f32.mrb[0].mxu0
        %2290 = vdwg.mxu0
        %2292 = vrot.lane.b32.xlu0 %v1935, 120
        %v2293 = vpop.permute.xlu0 %2292
        %v2296 = vsel %vm922, %v2244, 0
        %2298 = vmatprep.subr.bf16.mxu0 0
        %2299 = vmatpush1.bf16.msra.mxu0 %v2293
        %2300 = vmatprep.subr.bf16.mxu0 0
        %2301 = vmatpush1.bf16.msra.mxu0 0
        %2302 = vmatprep.subr.bf16.mxu0 0
        %2303 = vmatpush1.bf16.msra.mxu0 0
        %2304 = vmatprep.subr.bf16.mxu0 0
        %2305 = vmatpush1.bf16.msra.mxu0 0
        %2306 = vmatprep.subr.bf16.mxu0 0
        %2307 = vmatpush1.bf16.msra.mxu0 0
        %2308 = vmatprep.subr.bf16.mxu0 0
        %2309 = vmatpush1.bf16.msra.mxu0 0
        %2310 = vmatprep.subr.bf16.mxu0 0
        %2311 = vmatpush1.bf16.msra.mxu0 0
        %2312 = vmatprep.subr.bf16.mxu0 0
        %2313 = vmatpush1.bf16.msra.mxu0 0
        %2314 = vmatprep.subr.bf16.mxu0 0
        %2315 = vmatpush1.bf16.msra.mxu0 0
        %2316 = vmatprep.subr.bf16.mxu0 0
        %2317 = vmatpush1.bf16.msra.mxu0 0
        %2318 = vmatprep.subr.bf16.mxu0 0
        %2319 = vmatpush1.bf16.msra.mxu0 0
        %2320 = vmatprep.subr.bf16.mxu0 0
        %2321 = vmatpush1.bf16.msra.mxu0 0
        %2322 = vmatprep.subr.bf16.mxu0 0
        %2323 = vmatpush1.bf16.msra.mxu0 0
        %2324 = vmatprep.subr.bf16.mxu0 0
        %2325 = vmatpush1.bf16.msra.mxu0 0
        %2326 = vmatprep.subr.bf16.mxu0 0
        %2327 = vmatpush1.bf16.msra.mxu0 0
        %2328 = vmatprep.subr.bf16.mxu0 0
        %2329 = vmatpush1.bf16.msra.mxu0 0
        %2330 = vmatprep.mubr.bf16.mxu0 0
        %2331 = vmatmul.mubr.bf16.gmra.mrb[0].mxu0 %v2296
        %v2332 = vpop.f32.mrb[0].mxu0
        %v2333 = vadd.f32 0.0, %v2332
        %v2334 = vpop.f32.mrb[0].mxu0
        %v2335 = vpop.f32.mrb[0].mxu0
        %v2336 = vadd.f32 0.0, %v2335
        %v2337 = vpop.f32.mrb[0].mxu0
        %2338 = vdwg.mxu0
        %v2340 = vsel %vm705, %v2333, 0
        %v2343 = vsel %vm705, %v2336, 0
        %2345 = vmatprep.subr.mxu0 0.0
        %2346 = vmatpush1.msra.mxu0 %v1758
        %2347 = vmatprep.subr.mxu0 0.0
        %2348 = vmatpush1.msra.mxu0 0.0
        %2349 = vmatprep.subr.mxu0 0.0
        %2350 = vmatpush1.msra.mxu0 0.0
        %2351 = vmatprep.subr.mxu0 0.0
        %2352 = vmatpush1.msra.mxu0 0.0
        %2353 = vmatprep.subr.mxu0 0.0
        %2354 = vmatpush1.msra.mxu0 0.0
        %2355 = vmatprep.subr.mxu0 0.0
        %2356 = vmatpush1.msra.mxu0 0.0
        %2357 = vmatprep.subr.mxu0 0.0
        %2358 = vmatpush1.msra.mxu0 0.0
        %2359 = vmatprep.subr.mxu0 0.0
        %2360 = vmatpush1.msra.mxu0 0.0
        %2361 = vmatprep.subr.mxu0 0.0
        %2362 = vmatpush1.msra.mxu0 0.0
        %2363 = vmatprep.subr.mxu0 0.0
        %2364 = vmatpush1.msra.mxu0 0.0
        %2365 = vmatprep.subr.mxu0 0.0
        %2366 = vmatpush1.msra.mxu0 0.0
        %2367 = vmatprep.subr.mxu0 0.0
        %2368 = vmatpush1.msra.mxu0 0.0
        %2369 = vmatprep.subr.mxu0 0.0
        %2370 = vmatpush1.msra.mxu0 0.0
        %2371 = vmatprep.subr.mxu0 0.0
        %2372 = vmatpush1.msra.mxu0 0.0
        %2373 = vmatprep.subr.mxu0 0.0
        %2374 = vmatpush1.msra.mxu0 0.0
        %2375 = vmatprep.subr.mxu0 0.0
        %2376 = vmatpush1.msra.mxu0 0.0
        %2377 = vmatprep.subr.mxu0 0.0
        %2378 = vmatpush1.msra.mxu0 0.0
        %2379 = vmatprep.subr.mxu0 0.0
        %2380 = vmatpush1.msra.mxu0 0.0
        %2381 = vmatprep.subr.mxu0 0.0
        %2382 = vmatpush1.msra.mxu0 0.0
        %2383 = vmatprep.subr.mxu0 0.0
        %2384 = vmatpush1.msra.mxu0 0.0
        %2385 = vmatprep.subr.mxu0 0.0
        %2386 = vmatpush1.msra.mxu0 0.0
        %2387 = vmatprep.subr.mxu0 0.0
        %2388 = vmatpush1.msra.mxu0 0.0
        %2389 = vmatprep.subr.mxu0 0.0
        %2390 = vmatpush1.msra.mxu0 0.0
        %2391 = vmatprep.subr.mxu0 0.0
        %2392 = vmatpush1.msra.mxu0 0.0
        %2393 = vmatprep.subr.mxu0 0.0
        %2394 = vmatpush1.msra.mxu0 0.0
        %2395 = vmatprep.subr.mxu0 0.0
        %2396 = vmatpush1.msra.mxu0 0.0
        %2397 = vmatprep.subr.mxu0 0.0
        %2398 = vmatpush1.msra.mxu0 0.0
        %2399 = vmatprep.subr.mxu0 0.0
        %2400 = vmatpush1.msra.mxu0 0.0
        %2401 = vmatprep.subr.mxu0 0.0
        %2402 = vmatpush1.msra.mxu0 0.0
        %2403 = vmatprep.subr.mxu0 0.0
        %2404 = vmatpush1.msra.mxu0 0.0
        %2405 = vmatprep.subr.mxu0 0.0
        %2406 = vmatpush1.msra.mxu0 0.0
        %2407 = vmatprep.subr.mxu0 0.0
        %2408 = vmatpush1.msra.mxu0 0.0
        %2409 = vmatprep.mubr.f32.mxu0 0.0
        %2410 = vmatmul.mubr.f32.gmra.mrb[0].mxu0 %v2340
        %v2411 = vpop.f32.mrb[0].mxu0
        %v2412 = vadd.f32 0.0, %v2411
        %v2413 = vpop.f32.mrb[0].mxu0
        %2414 = vmatprep.mubr.f32.mxu0 0.0
        %2415 = vmatmul.mubr.f32.gmra.mrb[0].mxu0 %v2343
        %v2416 = vpop.f32.mrb[0].mxu0
        %v2417 = vadd.f32 0.0, %v2416
        %v2418 = vpop.f32.mrb[0].mxu0
        %2419 = vdwg.mxu0
        %v2421 = vsel %vm705, %v2285, 0
        %v2424 = vsel %vm705, %v2288, 0
        %2426 = vmatprep.subr.mxu0 0.0
        %2427 = vmatpush1.msra.mxu0 %v1757
        %2428 = vmatprep.subr.mxu0 0.0
        %2429 = vmatpush1.msra.mxu0 0.0
        %2430 = vmatprep.subr.mxu0 0.0
        %2431 = vmatpush1.msra.mxu0 0.0
        %2432 = vmatprep.subr.mxu0 0.0
        %2433 = vmatpush1.msra.mxu0 0.0
        %2434 = vmatprep.subr.mxu0 0.0
        %2435 = vmatpush1.msra.mxu0 0.0
        %2436 = vmatprep.subr.mxu0 0.0
        %2437 = vmatpush1.msra.mxu0 0.0
        %2438 = vmatprep.subr.mxu0 0.0
        %2439 = vmatpush1.msra.mxu0 0.0
        %2440 = vmatprep.subr.mxu0 0.0
        %2441 = vmatpush1.msra.mxu0 0.0
        %2442 = vmatprep.subr.mxu0 0.0
        %2443 = vmatpush1.msra.mxu0 0.0
        %2444 = vmatprep.subr.mxu0 0.0
        %2445 = vmatpush1.msra.mxu0 0.0
        %2446 = vmatprep.subr.mxu0 0.0
        %2447 = vmatpush1.msra.mxu0 0.0
        %2448 = vmatprep.subr.mxu0 0.0
        %2449 = vmatpush1.msra.mxu0 0.0
        %2450 = vmatprep.subr.mxu0 0.0
        %2451 = vmatpush1.msra.mxu0 0.0
        %2452 = vmatprep.subr.mxu0 0.0
        %2453 = vmatpush1.msra.mxu0 0.0
        %2454 = vmatprep.subr.mxu0 0.0
        %2455 = vmatpush1.msra.mxu0 0.0
        %2456 = vmatprep.subr.mxu0 0.0
        %2457 = vmatpush1.msra.mxu0 0.0
        %2458 = vmatprep.subr.mxu0 0.0
        %2459 = vmatpush1.msra.mxu0 0.0
        %2460 = vmatprep.subr.mxu0 0.0
        %2461 = vmatpush1.msra.mxu0 0.0
        %2462 = vmatprep.subr.mxu0 0.0
        %2463 = vmatpush1.msra.mxu0 0.0
        %2464 = vmatprep.subr.mxu0 0.0
        %2465 = vmatpush1.msra.mxu0 0.0
        %2466 = vmatprep.subr.mxu0 0.0
        %2467 = vmatpush1.msra.mxu0 0.0
        %2468 = vmatprep.subr.mxu0 0.0
        %2469 = vmatpush1.msra.mxu0 0.0
        %2470 = vmatprep.subr.mxu0 0.0
        %2471 = vmatpush1.msra.mxu0 0.0
        %2472 = vmatprep.subr.mxu0 0.0
        %2473 = vmatpush1.msra.mxu0 0.0
        %2474 = vmatprep.subr.mxu0 0.0
        %2475 = vmatpush1.msra.mxu0 0.0
        %2476 = vmatprep.subr.mxu0 0.0
        %2477 = vmatpush1.msra.mxu0 0.0
        %2478 = vmatprep.subr.mxu0 0.0
        %2479 = vmatpush1.msra.mxu0 0.0
        %2480 = vmatprep.subr.mxu0 0.0
        %2481 = vmatpush1.msra.mxu0 0.0
        %2482 = vmatprep.subr.mxu0 0.0
        %2483 = vmatpush1.msra.mxu0 0.0
        %2484 = vmatprep.subr.mxu0 0.0
        %2485 = vmatpush1.msra.mxu0 0.0
        %2486 = vmatprep.subr.mxu0 0.0
        %2487 = vmatpush1.msra.mxu0 0.0
        %2488 = vmatprep.subr.mxu0 0.0
        %2489 = vmatpush1.msra.mxu0 0.0
        %2490 = vmatprep.mubr.f32.mxu0 0.0
        %2491 = vmatmul.mubr.f32.gmra.mrb[0].mxu0 %v2421
        %v2492 = vpop.f32.mrb[0].mxu0
        %v2493 = vadd.f32 %v2412, %v2492
        %v2494 = vpop.f32.mrb[0].mxu0
        %2495 = vmatprep.mubr.f32.mxu0 0.0
        %2496 = vmatmul.mubr.f32.gmra.mrb[0].mxu0 %v2424
        %v2497 = vpop.f32.mrb[0].mxu0
        %v2498 = vadd.f32 %v2417, %v2497
        %v2499 = vpop.f32.mrb[0].mxu0
        %2500 = vdwg.mxu0
        %2501 = vrot.lane.b32.xlu0 %v1935, 112
        %v2502 = vpop.permute.xlu0 %2501
        %v2505 = vsel %vm922, %v2245, 0
        %2507 = vmatprep.subr.bf16.mxu0 0
        %2508 = vmatpush1.bf16.msra.mxu0 %v2502
        %2509 = vmatprep.subr.bf16.mxu0 0
        %2510 = vmatpush1.bf16.msra.mxu0 0
        %2511 = vmatprep.subr.bf16.mxu0 0
        %2512 = vmatpush1.bf16.msra.mxu0 0
        %2513 = vmatprep.subr.bf16.mxu0 0
        %2514 = vmatpush1.bf16.msra.mxu0 0
        %2515 = vmatprep.subr.bf16.mxu0 0
        %2516 = vmatpush1.bf16.msra.mxu0 0
        %2517 = vmatprep.subr.bf16.mxu0 0
        %2518 = vmatpush1.bf16.msra.mxu0 0
        %2519 = vmatprep.subr.bf16.mxu0 0
        %2520 = vmatpush1.bf16.msra.mxu0 0
        %2521 = vmatprep.subr.bf16.mxu0 0
        %2522 = vmatpush1.bf16.msra.mxu0 0
        %2523 = vmatprep.subr.bf16.mxu0 0
        %2524 = vmatpush1.bf16.msra.mxu0 0
        %2525 = vmatprep.subr.bf16.mxu0 0
        %2526 = vmatpush1.bf16.msra.mxu0 0
        %2527 = vmatprep.subr.bf16.mxu0 0
        %2528 = vmatpush1.bf16.msra.mxu0 0
        %2529 = vmatprep.subr.bf16.mxu0 0
        %2530 = vmatpush1.bf16.msra.mxu0 0
        %2531 = vmatprep.subr.bf16.mxu0 0
        %2532 = vmatpush1.bf16.msra.mxu0 0
        %2533 = vmatprep.subr.bf16.mxu0 0
        %2534 = vmatpush1.bf16.msra.mxu0 0
        %2535 = vmatprep.subr.bf16.mxu0 0
        %2536 = vmatpush1.bf16.msra.mxu0 0
        %2537 = vmatprep.subr.bf16.mxu0 0
        %2538 = vmatpush1.bf16.msra.mxu0 0
        %2539 = vmatprep.mubr.bf16.mxu0 0
        %2540 = vmatmul.mubr.bf16.gmra.mrb[0].mxu0 %v2505
        %v2541 = vpop.f32.mrb[0].mxu0
        %v2542 = vadd.f32 0.0, %v2541
        %v2543 = vpop.f32.mrb[0].mxu0
        %v2544 = vpop.f32.mrb[0].mxu0
        %v2545 = vadd.f32 0.0, %v2544
        %v2546 = vpop.f32.mrb[0].mxu0
        %2547 = vdwg.mxu0
        %v2549 = vsel %vm705, %v2542, 0
        %v2552 = vsel %vm705, %v2545, 0
        %2554 = vmatprep.subr.mxu0 0.0
        %2555 = vmatpush1.msra.mxu0 %v1759
        %2556 = vmatprep.subr.mxu0 0.0
        %2557 = vmatpush1.msra.mxu0 0.0
        %2558 = vmatprep.subr.mxu0 0.0
        %2559 = vmatpush1.msra.mxu0 0.0
        %2560 = vmatprep.subr.mxu0 0.0
        %2561 = vmatpush1.msra.mxu0 0.0
        %2562 = vmatprep.subr.mxu0 0.0
        %2563 = vmatpush1.msra.mxu0 0.0
        %2564 = vmatprep.subr.mxu0 0.0
        %2565 = vmatpush1.msra.mxu0 0.0
        %2566 = vmatprep.subr.mxu0 0.0
        %2567 = vmatpush1.msra.mxu0 0.0
        %2568 = vmatprep.subr.mxu0 0.0
        %2569 = vmatpush1.msra.mxu0 0.0
        %2570 = vmatprep.subr.mxu0 0.0
        %2571 = vmatpush1.msra.mxu0 0.0
        %2572 = vmatprep.subr.mxu0 0.0
        %2573 = vmatpush1.msra.mxu0 0.0
        %2574 = vmatprep.subr.mxu0 0.0
        %2575 = vmatpush1.msra.mxu0 0.0
        %2576 = vmatprep.subr.mxu0 0.0
        %2577 = vmatpush1.msra.mxu0 0.0
        %2578 = vmatprep.subr.mxu0 0.0
        %2579 = vmatpush1.msra.mxu0 0.0
        %2580 = vmatprep.subr.mxu0 0.0
        %2581 = vmatpush1.msra.mxu0 0.0
        %2582 = vmatprep.subr.mxu0 0.0
        %2583 = vmatpush1.msra.mxu0 0.0
        %2584 = vmatprep.subr.mxu0 0.0
        %2585 = vmatpush1.msra.mxu0 0.0
        %2586 = vmatprep.subr.mxu0 0.0
        %2587 = vmatpush1.msra.mxu0 0.0
        %2588 = vmatprep.subr.mxu0 0.0
        %2589 = vmatpush1.msra.mxu0 0.0
        %2590 = vmatprep.subr.mxu0 0.0
        %2591 = vmatpush1.msra.mxu0 0.0
        %2592 = vmatprep.subr.mxu0 0.0
        %2593 = vmatpush1.msra.mxu0 0.0
        %2594 = vmatprep.subr.mxu0 0.0
        %2595 = vmatpush1.msra.mxu0 0.0
        %2596 = vmatprep.subr.mxu0 0.0
        %2597 = vmatpush1.msra.mxu0 0.0
        %2598 = vmatprep.subr.mxu0 0.0
        %2599 = vmatpush1.msra.mxu0 0.0
        %2600 = vmatprep.subr.mxu0 0.0
        %2601 = vmatpush1.msra.mxu0 0.0
        %2602 = vmatprep.subr.mxu0 0.0
        %2603 = vmatpush1.msra.mxu0 0.0
        %2604 = vmatprep.subr.mxu0 0.0
        %2605 = vmatpush1.msra.mxu0 0.0
        %2606 = vmatprep.subr.mxu0 0.0
        %2607 = vmatpush1.msra.mxu0 0.0
        %2608 = vmatprep.subr.mxu0 0.0
        %2609 = vmatpush1.msra.mxu0 0.0
        %2610 = vmatprep.subr.mxu0 0.0
        %2611 = vmatpush1.msra.mxu0 0.0
        %2612 = vmatprep.subr.mxu0 0.0
        %2613 = vmatpush1.msra.mxu0 0.0
        %2614 = vmatprep.subr.mxu0 0.0
        %2615 = vmatpush1.msra.mxu0 0.0
        %2616 = vmatprep.subr.mxu0 0.0
        %2617 = vmatpush1.msra.mxu0 0.0
        %2618 = vmatprep.mubr.f32.mxu0 0.0
        %2619 = vmatmul.mubr.f32.gmra.mrb[0].mxu0 %v2549
        %v2620 = vpop.f32.mrb[0].mxu0
        %v2621 = vadd.f32 0.0, %v2620
        %v2622 = vpop.f32.mrb[0].mxu0
        %2623 = vmatprep.mubr.f32.mxu0 0.0
        %2624 = vmatmul.mubr.f32.gmra.mrb[0].mxu0 %v2552
        %v2625 = vpop.f32.mrb[0].mxu0
        %v2626 = vadd.f32 0.0, %v2625
        %v2627 = vpop.f32.mrb[0].mxu0
        %2628 = vdwg.mxu0
        %v2629 = vadd.f32 %v2493, %v2621
        %v2630 = vadd.f32 %v2498, %v2626
        %2631 = vrot.lane.b32.xlu0 %v1935, 104
        %v2632 = vpop.permute.xlu0 %2631
        %v2635 = vsel %vm922, %v2246, 0
        %2637 = vmatprep.subr.bf16.mxu0 0
        %2638 = vmatpush1.bf16.msra.mxu0 %v2632
        %2639 = vmatprep.subr.bf16.mxu0 0
        %2640 = vmatpush1.bf16.msra.mxu0 0
        %2641 = vmatprep.subr.bf16.mxu0 0
        %2642 = vmatpush1.bf16.msra.mxu0 0
        %2643 = vmatprep.subr.bf16.mxu0 0
        %2644 = vmatpush1.bf16.msra.mxu0 0
        %2645 = vmatprep.subr.bf16.mxu0 0
        %2646 = vmatpush1.bf16.msra.mxu0 0
        %2647 = vmatprep.subr.bf16.mxu0 0
        %2648 = vmatpush1.bf16.msra.mxu0 0
        %2649 = vmatprep.subr.bf16.mxu0 0
        %2650 = vmatpush1.bf16.msra.mxu0 0
        %2651 = vmatprep.subr.bf16.mxu0 0
        %2652 = vmatpush1.bf16.msra.mxu0 0
        %2653 = vmatprep.subr.bf16.mxu0 0
        %2654 = vmatpush1.bf16.msra.mxu0 0
        %2655 = vmatprep.subr.bf16.mxu0 0
        %2656 = vmatpush1.bf16.msra.mxu0 0
        %2657 = vmatprep.subr.bf16.mxu0 0
        %2658 = vmatpush1.bf16.msra.mxu0 0
        %2659 = vmatprep.subr.bf16.mxu0 0
        %2660 = vmatpush1.bf16.msra.mxu0 0
        %2661 = vmatprep.subr.bf16.mxu0 0
        %2662 = vmatpush1.bf16.msra.mxu0 0
        %2663 = vmatprep.subr.bf16.mxu0 0
        %2664 = vmatpush1.bf16.msra.mxu0 0
        %2665 = vmatprep.subr.bf16.mxu0 0
        %2666 = vmatpush1.bf16.msra.mxu0 0
        %2667 = vmatprep.subr.bf16.mxu0 0
        %2668 = vmatpush1.bf16.msra.mxu0 0
        %2669 = vmatprep.mubr.bf16.mxu0 0
        %2670 = vmatmul.mubr.bf16.gmra.mrb[0].mxu0 %v2635
        %v2671 = vpop.f32.mrb[0].mxu0
        %v2672 = vadd.f32 0.0, %v2671
        %v2673 = vpop.f32.mrb[0].mxu0
        %v2674 = vpop.f32.mrb[0].mxu0
        %v2675 = vadd.f32 0.0, %v2674
        %v2676 = vpop.f32.mrb[0].mxu0
        %2677 = vdwg.mxu0
        %v2679 = vsel %vm705, %v2672, 0
        %v2682 = vsel %vm705, %v2675, 0
        %2684 = vmatprep.subr.mxu0 0.0
        %2685 = vmatpush1.msra.mxu0 %v1760
        %2686 = vmatprep.subr.mxu0 0.0
        %2687 = vmatpush1.msra.mxu0 0.0
        %2688 = vmatprep.subr.mxu0 0.0
        %2689 = vmatpush1.msra.mxu0 0.0
        %2690 = vmatprep.subr.mxu0 0.0
        %2691 = vmatpush1.msra.mxu0 0.0
        %2692 = vmatprep.subr.mxu0 0.0
        %2693 = vmatpush1.msra.mxu0 0.0
        %2694 = vmatprep.subr.mxu0 0.0
        %2695 = vmatpush1.msra.mxu0 0.0
        %2696 = vmatprep.subr.mxu0 0.0
        %2697 = vmatpush1.msra.mxu0 0.0
        %2698 = vmatprep.subr.mxu0 0.0
        %2699 = vmatpush1.msra.mxu0 0.0
        %2700 = vmatprep.subr.mxu0 0.0
        %2701 = vmatpush1.msra.mxu0 0.0
        %2702 = vmatprep.subr.mxu0 0.0
        %2703 = vmatpush1.msra.mxu0 0.0
        %2704 = vmatprep.subr.mxu0 0.0
        %2705 = vmatpush1.msra.mxu0 0.0
        %2706 = vmatprep.subr.mxu0 0.0
        %2707 = vmatpush1.msra.mxu0 0.0
        %2708 = vmatprep.subr.mxu0 0.0
        %2709 = vmatpush1.msra.mxu0 0.0
        %2710 = vmatprep.subr.mxu0 0.0
        %2711 = vmatpush1.msra.mxu0 0.0
        %2712 = vmatprep.subr.mxu0 0.0
        %2713 = vmatpush1.msra.mxu0 0.0
        %2714 = vmatprep.subr.mxu0 0.0
        %2715 = vmatpush1.msra.mxu0 0.0
        %2716 = vmatprep.subr.mxu0 0.0
        %2717 = vmatpush1.msra.mxu0 0.0
        %2718 = vmatprep.subr.mxu0 0.0
        %2719 = vmatpush1.msra.mxu0 0.0
        %2720 = vmatprep.subr.mxu0 0.0
        %2721 = vmatpush1.msra.mxu0 0.0
        %2722 = vmatprep.subr.mxu0 0.0
        %2723 = vmatpush1.msra.mxu0 0.0
        %2724 = vmatprep.subr.mxu0 0.0
        %2725 = vmatpush1.msra.mxu0 0.0
        %2726 = vmatprep.subr.mxu0 0.0
        %2727 = vmatpush1.msra.mxu0 0.0
        %2728 = vmatprep.subr.mxu0 0.0
        %2729 = vmatpush1.msra.mxu0 0.0
        %2730 = vmatprep.subr.mxu0 0.0
        %2731 = vmatpush1.msra.mxu0 0.0
        %2732 = vmatprep.subr.mxu0 0.0
        %2733 = vmatpush1.msra.mxu0 0.0
        %2734 = vmatprep.subr.mxu0 0.0
        %2735 = vmatpush1.msra.mxu0 0.0
        %2736 = vmatprep.subr.mxu0 0.0
        %2737 = vmatpush1.msra.mxu0 0.0
        %2738 = vmatprep.subr.mxu0 0.0
        %2739 = vmatpush1.msra.mxu0 0.0
        %2740 = vmatprep.subr.mxu0 0.0
        %2741 = vmatpush1.msra.mxu0 0.0
        %2742 = vmatprep.subr.mxu0 0.0
        %2743 = vmatpush1.msra.mxu0 0.0
        %2744 = vmatprep.subr.mxu0 0.0
        %2745 = vmatpush1.msra.mxu0 0.0
        %2746 = vmatprep.subr.mxu0 0.0
        %2747 = vmatpush1.msra.mxu0 0.0
        %2748 = vmatprep.mubr.f32.mxu0 0.0
        %2749 = vmatmul.mubr.f32.gmra.mrb[0].mxu0 %v2679
        %v2750 = vpop.f32.mrb[0].mxu0
        %v2751 = vadd.f32 0.0, %v2750
        %v2752 = vpop.f32.mrb[0].mxu0
        %2753 = vmatprep.mubr.f32.mxu0 0.0
        %2754 = vmatmul.mubr.f32.gmra.mrb[0].mxu0 %v2682
        %v2755 = vpop.f32.mrb[0].mxu0
        %v2756 = vadd.f32 0.0, %v2755
        %v2757 = vpop.f32.mrb[0].mxu0
        %2758 = vdwg.mxu0
        %v2759 = vadd.f32 %v2629, %v2751
        %v2760 = vadd.f32 %v2630, %v2756
        %v2761 = vadd.f32 %v1752, %v2759
        %v2762 = vadd.f32 %v1753, %v2760
        %v2763 = vlaneseq
        %v2764 = vshrl.u32 %v2763, 7
        %v2765 = vsub.s32 4, %v2764
        %v2766 = vrot.slane %v1755, %v2765
        %v2767 = vadd.f32 %v2761, %v2766
        %v2768 = vadd.f32 %v2762, %v2766
        %v2769 = vsel %vm526, %v2767, 0.0
        %2770 = vadd.xlane.f32.xlu0 %v2769
        %v2771 = vpop.xlane.xlu0 %2770
        %v2772 = vsel %vm526, %v2768, 0.0
        %2773 = vadd.xlane.f32.xlu0 %v2772
        %v2774 = vpop.xlane.xlu0 %2773
        %v2775 = vmul.f32 %v2771, %v533
        %v2776 = vmul.f32 %v2774, %v533
        %v2777 = vsub.f32 %v2767, %v2775
        %v2778 = vsub.f32 %v2768, %v2776
        %v2779 = vmul.f32 %v2777, %v2777
        %v2780 = vmul.f32 %v2778, %v2778
        %v2781 = vsel %vm526, %v2779, 0.0
        %2782 = vadd.xlane.f32.xlu0 %v2781
        %v2783 = vpop.xlane.xlu0 %2782
        %v2784 = vsel %vm526, %v2780, 0.0
        %2785 = vadd.xlane.f32.xlu0 %v2784
        %v2786 = vpop.xlane.xlu0 %2785
        %v2787 = vmul.f32 %v2783, %v533
        %v2788 = vmul.f32 %v2786, %v533
        %v2789 = vadd.f32 %v2787, 1e-05
        %v2790 = vadd.f32 %v2788, 1e-05
        %v2791 = vrsqrt.pop %v2789
        %v2792 = vrsqrt.pop %v2790
        %v2793 = vmul.f32 %v2777, %v2791
        %v2794 = vmul.f32 %v2778, %v2792
        %v2795 = vlaneseq
        %v2796 = vshrl.u32 %v2795, 7
        %v2797 = vsub.s32 2, %v2796
        %v2798 = vrot.slane %v1755, %v2797
        %v2799 = vmul.f32 %v2793, %v2798
        %v2800 = vmul.f32 %v2794, %v2798
        %v2801 = vlaneseq
        %v2802 = vshrl.u32 %v2801, 7
        %v2803 = vsub.s32 3, %v2802
        %v2804 = vrot.slane %v1755, %v2803
        %v2805 = vadd.f32 %v2799, %v2804
        %v2806 = vadd.f32 %v2800, %v2804
        %v2807 = vpack.c.bf16 %v2806, %v2805
        %s2808 = scalar_lea.vmem %s4, 16
        %v2809 = vld [vmem:[%s2808] sm:$0xf]
        %v2810 = vld [vmem:[%s2808 + $0x4] sm:$0xf]
        %v2811 = vld [vmem:[%s2808 + $0x8] sm:$0xf]
        %v2812 = vld [vmem:[%s2808 + $0xc] sm:$0xf]
        %v2813 = vlaneseq
        %v2814 = vshrl.u32 %v2813, 7
        %v2815 = vsub.s32 6, %v2814
        %v2816 = vrot.slane %v1755, %v2815
        %v2821 = vunpack.c.l.b16 %v2809
        %v2822 = vunpack.c.l.b16 %v2810
        %v2823 = vunpack.c.l.b16 %v2811
        %v2824 = vunpack.c.l.b16 %v2812
        %v2825 = vpack.c.b16 %v2822, %v2821
        %v2826 = vpack.c.b16 %v2824, %v2823
        %v2830 = vsel %vm526, %v2807, 0
        %2832 = vmatprep.subr.bf16.mxu0 0
        %2833 = vmatpush1.bf16.msra.mxu0 %v2825
        %2834 = vmatprep.subr.bf16.mxu0 0
        %2835 = vmatpush1.bf16.msra.mxu0 %v2826
        %2836 = vmatprep.subr.bf16.mxu0 0
        %2837 = vmatpush1.bf16.msra.mxu0 0
        %2838 = vmatprep.subr.bf16.mxu0 0
        %2839 = vmatpush1.bf16.msra.mxu0 0
        %2840 = vmatprep.subr.bf16.mxu0 0
        %2841 = vmatpush1.bf16.msra.mxu0 0
        %2842 = vmatprep.subr.bf16.mxu0 0
        %2843 = vmatpush1.bf16.msra.mxu0 0
        %2844 = vmatprep.subr.bf16.mxu0 0
        %2845 = vmatpush1.bf16.msra.mxu0 0
        %2846 = vmatprep.subr.bf16.mxu0 0
        %2847 = vmatpush1.bf16.msra.mxu0 0
        %2848 = vmatprep.subr.bf16.mxu0 0
        %2849 = vmatpush1.bf16.msra.mxu0 0
        %2850 = vmatprep.subr.bf16.mxu0 0
        %2851 = vmatpush1.bf16.msra.mxu0 0
        %2852 = vmatprep.subr.bf16.mxu0 0
        %2853 = vmatpush1.bf16.msra.mxu0 0
        %2854 = vmatprep.subr.bf16.mxu0 0
        %2855 = vmatpush1.bf16.msra.mxu0 0
        %2856 = vmatprep.subr.bf16.mxu0 0
        %2857 = vmatpush1.bf16.msra.mxu0 0
        %2858 = vmatprep.subr.bf16.mxu0 0
        %2859 = vmatpush1.bf16.msra.mxu0 0
        %2860 = vmatprep.subr.bf16.mxu0 0
        %2861 = vmatpush1.bf16.msra.mxu0 0
        %2862 = vmatprep.subr.bf16.mxu0 0
        %2863 = vmatpush1.bf16.msra.mxu0 0
        %2864 = vmatprep.mubr.bf16.mxu0 0
        %2865 = vmatmul.mubr.bf16.gmra.mrb[0].mxu0 %v2830
        %v2866 = vpop.f32.mrb[0].mxu0
        %v2867 = vadd.f32 %v2816, %v2866
        %v2868 = vpop.f32.mrb[0].mxu0
        %v2869 = vpop.f32.mrb[0].mxu0
        %v2870 = vadd.f32 %v2816, %v2869
        %v2871 = vpop.f32.mrb[0].mxu0
        %2872 = vdwg.mxu0
        %v2873 = vmax.f32 %v2867, 0.0
        %v2874 = vmax.f32 %v2870, 0.0
        %v2875 = vpack.c.bf16 %v2874, %v2873
        %s2876 = scalar_lea.vmem %s5, 64
        %v2877 = vld [vmem:[%s2876] sm:$0xf]
        %v2878 = vld [vmem:[%s2876 + $0x4] sm:$0xf]
        %v2879 = vld [vmem:[%s2876 + $0x8] sm:$0xf]
        %v2880 = vld [vmem:[%s2876 + $0xc] sm:$0xf]
        %v2881 = vld [vmem:[%s2876 + $0x10] sm:$0xf]
        %v2882 = vld [vmem:[%s2876 + $0x14] sm:$0xf]
        %v2883 = vld [vmem:[%s2876 + $0x18] sm:$0xf]
        %v2884 = vld [vmem:[%s2876 + $0x1c] sm:$0xf]
        %v2885 = vld [vmem:[%s2876 + $0x20] sm:$0xf]
        %v2886 = vld [vmem:[%s2876 + $0x24] sm:$0xf]
        %v2887 = vld [vmem:[%s2876 + $0x28] sm:$0xf]
        %v2888 = vld [vmem:[%s2876 + $0x2c] sm:$0xf]
        %v2889 = vld [vmem:[%s2876 + $0x30] sm:$0xf]
        %v2890 = vld [vmem:[%s2876 + $0x34] sm:$0xf]
        %v2891 = vld [vmem:[%s2876 + $0x38] sm:$0xf]
        %v2892 = vld [vmem:[%s2876 + $0x3c] sm:$0xf]
        %v2893 = vlaneseq
        %v2894 = vshrl.u32 %v2893, 7
        %v2895 = vsub.s32 5, %v2894
        %v2896 = vrot.slane %v1755, %v2895
        %v2913 = vunpack.c.l.b16 %v2877
        %v2914 = vunpack.c.l.b16 %v2878
        %v2915 = vunpack.c.l.b16 %v2879
        %v2916 = vunpack.c.l.b16 %v2880
        %v2917 = vunpack.c.l.b16 %v2881
        %v2918 = vunpack.c.l.b16 %v2882
        %v2919 = vunpack.c.l.b16 %v2883
        %v2920 = vunpack.c.l.b16 %v2884
        %v2921 = vunpack.c.l.b16 %v2885
        %v2922 = vunpack.c.l.b16 %v2886
        %v2923 = vunpack.c.l.b16 %v2887
        %v2924 = vunpack.c.l.b16 %v2888
        %v2925 = vunpack.c.l.b16 %v2889
        %v2926 = vunpack.c.l.b16 %v2890
        %v2927 = vunpack.c.l.b16 %v2891
        %v2928 = vunpack.c.l.b16 %v2892
        %v2929 = vpack.c.b16 %v2914, %v2913
        %v2930 = vpack.c.b16 %v2916, %v2915
        %v2931 = vpack.c.b16 %v2918, %v2917
        %v2932 = vpack.c.b16 %v2920, %v2919
        %v2933 = vpack.c.b16 %v2922, %v2921
        %v2934 = vpack.c.b16 %v2924, %v2923
        %v2935 = vpack.c.b16 %v2926, %v2925
        %v2936 = vpack.c.b16 %v2928, %v2927
        %2945 = vmatprep.subr.bf16.mxu0 0
        %2946 = vmatpush1.bf16.msra.mxu0 %v2929
        %2947 = vmatprep.subr.bf16.mxu0 0
        %2948 = vmatpush1.bf16.msra.mxu0 %v2930
        %2949 = vmatprep.subr.bf16.mxu0 0
        %2950 = vmatpush1.bf16.msra.mxu0 %v2931
        %2951 = vmatprep.subr.bf16.mxu0 0
        %2952 = vmatpush1.bf16.msra.mxu0 %v2932
        %2953 = vmatprep.subr.bf16.mxu0 0
        %2954 = vmatpush1.bf16.msra.mxu0 %v2933
        %2955 = vmatprep.subr.bf16.mxu0 0
        %2956 = vmatpush1.bf16.msra.mxu0 %v2934
        %2957 = vmatprep.subr.bf16.mxu0 0
        %2958 = vmatpush1.bf16.msra.mxu0 %v2935
        %2959 = vmatprep.subr.bf16.mxu0 0
        %2960 = vmatpush1.bf16.msra.mxu0 %v2936
        %2961 = vmatprep.subr.bf16.mxu0 0
        %2962 = vmatpush1.bf16.msra.mxu0 0
        %2963 = vmatprep.subr.bf16.mxu0 0
        %2964 = vmatpush1.bf16.msra.mxu0 0
        %2965 = vmatprep.subr.bf16.mxu0 0
        %2966 = vmatpush1.bf16.msra.mxu0 0
        %2967 = vmatprep.subr.bf16.mxu0 0
        %2968 = vmatpush1.bf16.msra.mxu0 0
        %2969 = vmatprep.subr.bf16.mxu0 0
        %2970 = vmatpush1.bf16.msra.mxu0 0
        %2971 = vmatprep.subr.bf16.mxu0 0
        %2972 = vmatpush1.bf16.msra.mxu0 0
        %2973 = vmatprep.subr.bf16.mxu0 0
        %2974 = vmatpush1.bf16.msra.mxu0 0
        %2975 = vmatprep.subr.bf16.mxu0 0
        %2976 = vmatpush1.bf16.msra.mxu0 0
        %2977 = vmatprep.mubr.bf16.mxu0 0
        %2978 = vmatmul.mubr.bf16.gmra.mrb[0].mxu0 %v2875
        %v2979 = vpop.f32.mrb[0].mxu0
        %v2980 = vadd.f32 %v2896, %v2979
        %v2981 = vpop.f32.mrb[0].mxu0
        %v2982 = vpop.f32.mrb[0].mxu0
        %v2983 = vadd.f32 %v2896, %v2982
        %v2984 = vpop.f32.mrb[0].mxu0
        %2985 = vdwg.mxu0
        %v2986 = vadd.f32 %v2767, %v2980
        %v2987 = vadd.f32 %v2768, %v2983
        %v2988 = vld [vmem:[%s8] sm:$0xff]
        %v2989 = vsel %vm526, %v2986, 0.0
        %2990 = vadd.xlane.f32.xlu0 %v2989
        %v2991 = vpop.xlane.xlu0 %2990
        %v2992 = vsel %vm526, %v2987, 0.0
        %2993 = vadd.xlane.f32.xlu0 %v2992
        %v2994 = vpop.xlane.xlu0 %2993
        %v2995 = vmul.f32 %v2991, %v533
        %v2996 = vmul.f32 %v2994, %v533
        %v2997 = vsub.f32 %v2986, %v2995
        %v2998 = vsub.f32 %v2987, %v2996
        %v2999 = vmul.f32 %v2997, %v2997
        %v3000 = vmul.f32 %v2998, %v2998
        %v3001 = vsel %vm526, %v2999, 0.0
        %3002 = vadd.xlane.f32.xlu0 %v3001
        %v3003 = vpop.xlane.xlu0 %3002
        %v3004 = vsel %vm526, %v3000, 0.0
        %3005 = vadd.xlane.f32.xlu0 %v3004
        %v3006 = vpop.xlane.xlu0 %3005
        %v3007 = vmul.f32 %v3003, %v533
        %v3008 = vmul.f32 %v3006, %v533
        %v3009 = vadd.f32 %v3007, 1e-05
        %v3010 = vadd.f32 %v3008, 1e-05
        %v3011 = vrsqrt.pop %v3009
        %v3012 = vrsqrt.pop %v3010
        %v3013 = vmul.f32 %v2997, %v3011
        %v3014 = vmul.f32 %v2998, %v3012
        %v3015 = vlaneseq
        %v3016 = vshrl.u32 %v3015, 7
        %v3017 = vsub.s32 0, %v3016
        %v3018 = vrot.slane %v2988, %v3017
        %v3019 = vmul.f32 %v3013, %v3018
        %v3020 = vmul.f32 %v3014, %v3018
        %v3021 = vlaneseq
        %v3022 = vshrl.u32 %v3021, 7
        %v3023 = vsub.s32 1, %v3022
        %v3024 = vrot.slane %v2988, %v3023
        %v3025 = vadd.f32 %v3019, %v3024
        %v3026 = vadd.f32 %v3020, %v3024
        %v3027 = vpack.c.bf16 %v3026, %v3025
        %v3028 = vld [vmem:[%s6] sm:$0xf]
        %v3029 = vld [vmem:[%s6 + $0x4] sm:$0xf]
        %v3030 = vld [vmem:[%s6 + $0x8] sm:$0xf]
        %v3031 = vld [vmem:[%s6 + $0xc] sm:$0xf]
        %v3032 = vlaneseq
        %v3033 = vshrl.u32 %v3032, 7
        %v3034 = vsub.s32 2, %v3033
        %v3035 = vrot.slane %v2988, %v3034
        %v3040 = vunpack.c.l.b16 %v3028
        %v3041 = vunpack.c.l.b16 %v3029
        %v3042 = vunpack.c.l.b16 %v3030
        %v3043 = vunpack.c.l.b16 %v3031
        %v3044 = vpack.c.b16 %v3041, %v3040
        %v3045 = vpack.c.b16 %v3043, %v3042
        %v3049 = vsel %vm526, %v3027, 0
        %3051 = vmatprep.subr.bf16.mxu0 0
        %3052 = vmatpush1.bf16.msra.mxu0 %v3044
        %3053 = vmatprep.subr.bf16.mxu0 0
        %3054 = vmatpush1.bf16.msra.mxu0 %v3045
        %3055 = vmatprep.subr.bf16.mxu0 0
        %3056 = vmatpush1.bf16.msra.mxu0 0
        %3057 = vmatprep.subr.bf16.mxu0 0
        %3058 = vmatpush1.bf16.msra.mxu0 0
        %3059 = vmatprep.subr.bf16.mxu0 0
        %3060 = vmatpush1.bf16.msra.mxu0 0
        %3061 = vmatprep.subr.bf16.mxu0 0
        %3062 = vmatpush1.bf16.msra.mxu0 0
        %3063 = vmatprep.subr.bf16.mxu0 0
        %3064 = vmatpush1.bf16.msra.mxu0 0
        %3065 = vmatprep.subr.bf16.mxu0 0
        %3066 = vmatpush1.bf16.msra.mxu0 0
        %3067 = vmatprep.subr.bf16.mxu0 0
        %3068 = vmatpush1.bf16.msra.mxu0 0
        %3069 = vmatprep.subr.bf16.mxu0 0
        %3070 = vmatpush1.bf16.msra.mxu0 0
        %3071 = vmatprep.subr.bf16.mxu0 0
        %3072 = vmatpush1.bf16.msra.mxu0 0
        %3073 = vmatprep.subr.bf16.mxu0 0
        %3074 = vmatpush1.bf16.msra.mxu0 0
        %3075 = vmatprep.subr.bf16.mxu0 0
        %3076 = vmatpush1.bf16.msra.mxu0 0
        %3077 = vmatprep.subr.bf16.mxu0 0
        %3078 = vmatpush1.bf16.msra.mxu0 0
        %3079 = vmatprep.subr.bf16.mxu0 0
        %3080 = vmatpush1.bf16.msra.mxu0 0
        %3081 = vmatprep.subr.bf16.mxu0 0
        %3082 = vmatpush1.bf16.msra.mxu0 0
        %3083 = vmatprep.mubr.bf16.mxu0 0
        %3084 = vmatmul.mubr.bf16.gmra.mrb[0].mxu0 %v3049
        %v3085 = vpop.f32.mrb[0].mxu0
        %v3086 = vadd.f32 %v3035, %v3085
        %v3087 = vpop.f32.mrb[0].mxu0
        %v3088 = vpop.f32.mrb[0].mxu0
        %v3089 = vadd.f32 %v3035, %v3088
        %v3090 = vpop.f32.mrb[0].mxu0
        %3091 = vdwg.mxu0
        %3092 = vst [vmem:[%s379] sm:$0xff] %v3086
        %s3093 = scalar_lea.vmem %s379, 8 [#allocation2]
        %3094 = vst [vmem:[%s3093] sm:$0xff] %v3089
        %s3095 = sand.u32 %s269, 1
        %s3096 = scalar_lea.sflag [#allocation3], %s3095
        %s3097 = sand.u32 %s269, 1
        %s3098 = smul.addr %s3097, 16
        %s3099 = scalar_lea.vmem [#allocation2], %s3098
        // Predicated region
        $region65: #{transformer_forward.1} parent=63 // pred_check
          %p3100 = pneg %p279
        $region66: #{transformer_forward.1} parent=63 // pred_check_branch
          %3102 = sbr.rel (%p3100) target = $region68
        $region67: #{transformer_forward.1} parent=63 // pred_region
          %s3103 = smul.u32 2, %s25
          %s3105 = ssub.s32 256, 256
          %3106 = vsyncadd %s3096, %s3105
          %s3107 = smul.addr %s3103, 128
          %s3108 = scalar_lea.hbm %s11, %s3107
          %s3109 = sshll.u32 %s3099, 4
          %s3110 = int_to_ptr.vmem [resolvable:$true] %s3109
          %3115 = dma.vmem_to_hbm [thread:$0]  %s3110, 256, %s3108, %s3096, 128, 128, 8
        $region68: #{transformer_forward.1} parent=63 // pred_fallthru
          _
      $region64: #{transformer_forward.1} parent=5 // pred_fallthru
        _
      %p3116 = scmp.le.s32.totalorder 2, %s20
      // Predicated region
      $region69: #{transformer_forward.1} parent=5 // pred_check
        %p3117 = pneg %p3116
      $region70: #{transformer_forward.1} parent=5 // pred_check_branch
        %3119 = sbr.rel (%p3117) target = $region72
      $region71: #{transformer_forward.1} parent=5 // pred_region
        %s3120 = ssub.s32 %s20, 2
        // Predicated region
        $region73: #{transformer_forward.1} parent=71 // pred_check
          %p3121 = pneg %p285
        $region74: #{transformer_forward.1} parent=71 // pred_check_branch
          %3123 = sbr.rel (%p3121) target = $region76
        $region75: #{transformer_forward.1} parent=71 // pred_region
          %s3124 = sand.u32 %s270, 1
          %s3125 = scalar_lea.sflag [#allocation3], %s3124
          %s3126 = sand.u32 %s270, 1
          %s3127 = smul.addr %s3126, 16
          %s3128 = scalar_lea.vmem [#allocation2], %s3127
          %3129 = dma.done %s3125, 256
        $region76: #{transformer_forward.1} parent=71 // pred_fallthru
          _
      $region72: #{transformer_forward.1} parent=5 // pred_fallthru
        _
    $region6: #{transformer_forward.1} parent=1 // loop_footer
      %s24 = sadd.s32 1, %s20
    $region7: #{transformer_forward.1} parent=1 // loop_footer_branch
      %19 = sbr.rel target = $region3
    $region8: #{transformer_forward.1} parent=1 // loop_exit
      _
    %3130 = vsyncpa [#allocation3], 1
    %s3131 = scalar_lea.sflag [#allocation3], 1
    %3132 = vsyncpa %s3131, 1

</llo_original>
